<compile_context>
chip_gen: v6e
topology: v6e:2x2x1
jax: 0.10.0
libtpu: 0.0.40
codegen_flags: <defaults>
</compile_context>

<pallas_src>
import jax
import jax.numpy as jnp
from jax.experimental import pallas as pl
from jax.experimental.pallas import tpu as pltpu

LN2 = 0.6931471805599453


def scalar_coupling_kernel(x0_ref, x1_ref, xb_ref,
                           w1a_ref, w1b_ref, w1c_ref, b1_ref,
                           w2aug_ref, b2aug_ref, o_ref):
    # First dense layer of the MLP (384 -> 192): three partial bf16 matmuls
    # against the row-split W1 (mathematically identical to the concatenated
    # formulation), accumulated in f32 on the MXU.
    h = jnp.dot(x0_ref[...], w1a_ref[...], preferred_element_type=jnp.float32)
    h = h + jnp.dot(x1_ref[...], w1b_ref[...], preferred_element_type=jnp.float32)
    h = h + jnp.dot(xb_ref[...], w1c_ref[...], preferred_element_type=jnp.float32)
    h = h + b1_ref[...]

    # shifted_softplus(h) = softplus(h) - ln(2), stable single-branch f32 form.
    h = jnp.maximum(h, 0.0) + jnp.log1p(jnp.exp(-jnp.abs(h))) - LN2

    # Second dense layer (192 -> 4) with the frozen contributions_to_scalar
    # Linear folded in as an extra leading output column -> [TM, 5] directly
    # (no in-kernel concat, no extra sub-lane partial stores).
    out = jnp.dot(h.astype(jnp.bfloat16), w2aug_ref[...],
                  preferred_element_type=jnp.float32)
    out = out + b2aug_ref[...]
    o_ref[...] = out.astype(o_ref.dtype)


def _cdiv(a, b):
    return -(-a // b)


def _round_up(x, m):
    return ((x + m - 1) // m) * m


def _choose_tile(n_pairs, tm):
    """Row tile: multiple of 16 (bf16 sublane packing), multiple of 256 when
    large; clipped for small inputs but kept >= 2 tiles when the problem
    allows so v7x's two TensorCores both get work on the parallel axis."""
    tm = int(tm)
    tm = min(tm, _round_up(n_pairs, 16))
    tm = max(16, (tm // 16) * 16)
    if tm >= 256:
        tm = (tm // 256) * 256
    if n_pairs > 16 and _cdiv(n_pairs, tm) < 2:
        tm = max(16, _round_up(_cdiv(n_pairs, 2), 16))
    return tm


def scalar_coupling_forward(x_atom, x_bond, target_pairs, target_bond_idx,
                            w1, b1, w2, b2, scc_w, scc_b, *, tm=2048):
    """Forward pass of ScalarCoupling.

    x_atom:          [n_atoms, n_atom_in]  atom representations
    x_bond:          [n_bonds, n_bond_in]  bond representations
    target_pairs:    [n_pairs, 2]  int32 atom indices
    target_bond_idx: [n_pairs]     int32 bond indices (integer-index form of
                     the PyTorch boolean mask `target_mask0`)
    w1, b1:          [2*n_atom_in + n_bond_in, n_hid], [n_hid]
    w2, b2:          [n_hid, 4], [4]
    scc_w, scc_b:    [1, 4], [1]   frozen contributions_to_scalar parameters
    returns:         [n_pairs, 5]  = cat([scc, contributions], axis=1)
    """
    n_pairs = target_pairs.shape[0]
    n_atom_in = x_atom.shape[-1]
    n_bond_in = x_bond.shape[-1]
    n_hid = w1.shape[1]
    n_contrib = w2.shape[1]
    n_out = 1 + n_contrib
    assert w1.shape[0] == 2 * n_atom_in + n_bond_in

    tm = _choose_tile(n_pairs, tm)
    n_tiles = _cdiv(n_pairs, tm)
    m_pad = n_tiles * tm
    pad = m_pad - n_pairs

    # Pad the cheap int32 index vectors instead of the gathered activations;
    # padded rows just re-gather row 0 and are sliced off at the end.
    idx0 = target_pairs[:, 0].astype(jnp.int32)
    idx1 = target_pairs[:, 1].astype(jnp.int32)
    idxb = target_bond_idx.astype(jnp.int32)
    if pad:
        idx0 = jnp.pad(idx0, (0, pad))
        idx1 = jnp.pad(idx1, (0, pad))
        idxb = jnp.pad(idxb, (0, pad))

    # Gathers run as XLA gathers on the bf16 tables; the kernel streams the
    # three gathered lane-dense [TM, 128] bf16 blocks (half the f32 bytes).
    x_atom_bf = x_atom.astype(jnp.bfloat16)
    x_bond_bf = x_bond.astype(jnp.bfloat16)
    x0 = jnp.take(x_atom_bf, idx0, axis=0)
    x1 = jnp.take(x_atom_bf, idx1, axis=0)
    xb = jnp.take(x_bond_bf, idxb, axis=0)

    # Split W1 row-wise to match the three feature blocks of the concat, so
    # the [N, 384] concatenation is never materialized in HBM.
    w1_bf = w1.astype(jnp.bfloat16)
    w1a = w1_bf[:n_atom_in]
    w1b = w1_bf[n_atom_in:2 * n_atom_in]
    w1c = w1_bf[2 * n_atom_in:]

    # Fold the frozen Linear(4, 1) ([[1,1,1,1]], bias 0) into the second dense
    # layer: W2_aug = [W2 @ scc_w^T, W2], b2_aug = [b2 @ scc_w^T + scc_b, b2].
    w2_aug = jnp.concatenate([w2 @ scc_w.T, w2], axis=1).astype(jnp.bfloat16)
    b2_aug = jnp.concatenate([b2 @ scc_w.T + scc_b, b2]).astype(jnp.float32)
    b2_aug = b2_aug.reshape(1, n_out)

    b1_2d = b1.astype(jnp.float32).reshape(1, n_hid)

    def row_spec(shape):
        return pl.BlockSpec(shape, lambda i: (i, 0))

    def build(weight_pipeline_mode):
        def fixed_spec(shape):
            # Constant index map -> block is VMEM-resident across grid steps.
            if weight_pipeline_mode is None:
                return pl.BlockSpec(shape, lambda i: (0, 0))
            return pl.BlockSpec(shape, lambda i: (0, 0),
                                pipeline_mode=weight_pipeline_mode)

        return pl.pallas_call(
            scalar_coupling_kernel,
            out_shape=jax.ShapeDtypeStruct((m_pad, n_out), jnp.float32),
            grid=(n_tiles,),
            in_specs=[
                row_spec((tm, n_atom_in)),
                row_spec((tm, n_atom_in)),
                row_spec((tm, n_bond_in)),
                fixed_spec((n_atom_in, n_hid)),
                fixed_spec((n_atom_in, n_hid)),
                fixed_spec((n_bond_in, n_hid)),
                fixed_spec((1, n_hid)),
                fixed_spec((n_hid, n_out)),
                fixed_spec((1, n_out)),
            ],
            out_specs=row_spec((tm, n_out)),
            compiler_params=pltpu.CompilerParams(
                dimension_semantics=("parallel",)),
        )

    args = (x0, x1, xb, w1a, w1b, w1c, b1_2d, w2_aug, b2_aug)
    try:
        # Single-buffer the constant-index weight blocks (no re-fetch needed).
        out = build(pl.Buffered(1))(*args)
    except Exception:
        # Fallback for jax builds where Buffered(1) on the main pallas_call
        # pipeline is not accepted; default double-buffering is only ~300 KB.
        out = build(None)(*args)

    return out[:n_pairs]


def reference_forward(x_atom, x_bond, target_pairs, target_bond_idx,
                      w1, b1, w2, b2, scc_w, scc_b):
    x0 = x_atom[target_pairs[:, 0]]
    x1 = x_atom[target_pairs[:, 1]]
    xb = x_bond[target_bond_idx]
    x = jnp.concatenate([x0, x1, xb], axis=1)
    h = x @ w1 + b1
    h = jnp.logaddexp(h, 0.0) - LN2          # shifted softplus
    contrib = h @ w2 + b2
    scc = contrib @ scc_w.T + scc_b
    return jnp.concatenate([scc, contrib], axis=1)


if __name__ == "__main__":
    key = jax.random.PRNGKey(0)

    # Module-implied sizes: n_atom_in = n_bond_in = 128, MLP 384 -> 192 -> 4.
    n_atom_in, n_bond_in = 128, 128
    n_in = 2 * n_atom_in + n_bond_in          # 384
    n_hid = n_in // 2                         # 192 (schnetpack pyramidal MLP)
    n_contrib = 4
    n_atoms, n_bonds, n_pairs = 40, 64, 200

    keys = jax.random.split(key, 8)
    x_atom = jax.random.normal(keys[0], (n_atoms, n_atom_in), dtype=jnp.float32)
    x_bond = jax.random.normal(keys[1], (n_bonds, n_bond_in), dtype=jnp.float32)
    target_pairs = jax.random.randint(keys[2], (n_pairs, 2), 0, n_atoms,
                                      dtype=jnp.int32)
    target_bond_idx = jax.random.randint(keys[3], (n_pairs,), 0, n_bonds,
                                         dtype=jnp.int32)
    w1 = 0.05 * jax.random.normal(keys[4], (n_in, n_hid), dtype=jnp.float32)
    b1 = 0.05 * jax.random.normal(keys[5], (n_hid,), dtype=jnp.float32)
    w2 = 0.05 * jax.random.normal(keys[6], (n_hid, n_contrib), dtype=jnp.float32)
    b2 = 0.05 * jax.random.normal(keys[7], (n_contrib,), dtype=jnp.float32)
    # Frozen contributions_to_scalar parameters from the module __init__.
    scc_w = jnp.ones((1, n_contrib), dtype=jnp.float32)
    scc_b = jnp.zeros((1,), dtype=jnp.float32)

    ref = reference_forward(x_atom, x_bond, target_pairs, target_bond_idx,
                            w1, b1, w2, b2, scc_w, scc_b)

    # Production-style call: default tm=2048 is auto-clipped here to a 2-tile
    # grid (keeps both v7x TensorCores busy even on tiny inputs).
    out_a = scalar_coupling_forward(x_atom, x_bond, target_pairs,
                                    target_bond_idx, w1, b1, w2, b2,
                                    scc_w, scc_b)
    out_a = jax.block_until_ready(out_a)

    # Small explicit tile to exercise a longer (4-step) pipelined grid with a
    # partially-filled last block handled via index padding.
    out_b = scalar_coupling_forward(x_atom, x_bond, target_pairs,
                                    target_bond_idx, w1, b1, w2, b2,
                                    scc_w, scc_b, tm=64)
    out_b = jax.block_until_ready(out_b)

    for out in (out_a, out_b):
        assert out.shape == (n_pairs, 1 + n_contrib), out.shape
        max_err = float(jnp.max(jnp.abs(out - ref)))
        # bf16 datapath vs f32 reference: expect ~1e-2 level differences.
        assert jnp.allclose(out, ref, atol=8e-2, rtol=8e-2), max_err

    print("KERNEL_OK")
</pallas_src>

<mosaic_0001>
module attributes {stable_mosaic.version = 11 : i64} {
  func.func @scalar_coupling_kernel(%arg0: i32, %arg1: memref<112x128xbf16, #tpu.memory_space<vmem>>, %arg2: memref<112x128xbf16, #tpu.memory_space<vmem>>, %arg3: memref<112x128xbf16, #tpu.memory_space<vmem>>, %arg4: memref<128x192xbf16, #tpu.memory_space<vmem>>, %arg5: memref<128x192xbf16, #tpu.memory_space<vmem>>, %arg6: memref<128x192xbf16, #tpu.memory_space<vmem>>, %arg7: memref<1x192xf32, #tpu.memory_space<vmem>>, %arg8: memref<192x5xbf16, #tpu.memory_space<vmem>>, %arg9: memref<1x5xf32, #tpu.memory_space<vmem>>, %arg10: memref<112x5xf32, #tpu.memory_space<vmem>>) attributes {dimension_semantics = [#tpu.dimension_semantics<parallel>], iteration_bounds = array<i64: 2>, scalar_prefetch = 0 : i64, scratch_operands = 0 : i64, tpu.core_type = #tpu.core_type<tc>, window_params = [{transform_indices = @transform_0, window_bounds = array<i64: 112, 128>}, {transform_indices = @transform_1, window_bounds = array<i64: 112, 128>}, {transform_indices = @transform_2, window_bounds = array<i64: 112, 128>}, {pipeline_mode = #tpu.pipeline_mode<synchronous>, transform_indices = @transform_3, window_bounds = array<i64: 128, 192>}, {pipeline_mode = #tpu.pipeline_mode<synchronous>, transform_indices = @transform_4, window_bounds = array<i64: 128, 192>}, {pipeline_mode = #tpu.pipeline_mode<synchronous>, transform_indices = @transform_5, window_bounds = array<i64: 128, 192>}, {pipeline_mode = #tpu.pipeline_mode<synchronous>, transform_indices = @transform_6, window_bounds = array<i64: 1, 192>}, {pipeline_mode = #tpu.pipeline_mode<synchronous>, transform_indices = @transform_7, window_bounds = array<i64: 192, 5>}, {pipeline_mode = #tpu.pipeline_mode<synchronous>, transform_indices = @transform_8, window_bounds = array<i64: 1, 5>}, {transform_indices = @transform_9, window_bounds = array<i64: 112, 5>}]} {
    %c0 = arith.constant 0 : index
    %c0_0 = arith.constant 0 : index
    %0 = vector.load %arg1[%c0, %c0_0] : memref<112x128xbf16, #tpu.memory_space<vmem>>, vector<112x128xbf16>
    %c0_1 = arith.constant 0 : index
    %c0_2 = arith.constant 0 : index
    %1 = vector.load %arg4[%c0_1, %c0_2] : memref<128x192xbf16, #tpu.memory_space<vmem>>, vector<128x192xbf16>
    %cst = arith.constant dense<0.000000e+00> : vector<112x192xf32>
    %2 = tpu.matmul %0, %1, %cst {dimension_numbers = #tpu.dot_dimension_numbers<[1], [0], [0], [1], [0, 0, 1, 1], [], []>} : vector<112x128xbf16>, vector<128x192xbf16>, vector<112x192xf32> -> vector<112x192xf32>
    %c0_3 = arith.constant 0 : index
    %c0_4 = arith.constant 0 : index
    %3 = vector.load %arg2[%c0_3, %c0_4] : memref<112x128xbf16, #tpu.memory_space<vmem>>, vector<112x128xbf16>
    %c0_5 = arith.constant 0 : index
    %c0_6 = arith.constant 0 : index
    %4 = vector.load %arg5[%c0_5, %c0_6] : memref<128x192xbf16, #tpu.memory_space<vmem>>, vector<128x192xbf16>
    %cst_7 = arith.constant dense<0.000000e+00> : vector<112x192xf32>
    %5 = tpu.matmul %3, %4, %cst_7 {dimension_numbers = #tpu.dot_dimension_numbers<[1], [0], [0], [1], [0, 0, 1, 1], [], []>} : vector<112x128xbf16>, vector<128x192xbf16>, vector<112x192xf32> -> vector<112x192xf32>
    %6 = arith.addf %2, %5 : vector<112x192xf32>
    %c0_8 = arith.constant 0 : index
    %c0_9 = arith.constant 0 : index
    %7 = vector.load %arg3[%c0_8, %c0_9] : memref<112x128xbf16, #tpu.memory_space<vmem>>, vector<112x128xbf16>
    %c0_10 = arith.constant 0 : index
    %c0_11 = arith.constant 0 : index
    %8 = vector.load %arg6[%c0_10, %c0_11] : memref<128x192xbf16, #tpu.memory_space<vmem>>, vector<128x192xbf16>
    %cst_12 = arith.constant dense<0.000000e+00> : vector<112x192xf32>
    %9 = tpu.matmul %7, %8, %cst_12 {dimension_numbers = #tpu.dot_dimension_numbers<[1], [0], [0], [1], [0, 0, 1, 1], [], []>} : vector<112x128xbf16>, vector<128x192xbf16>, vector<112x192xf32> -> vector<112x192xf32>
    %10 = arith.addf %6, %9 : vector<112x192xf32>
    %c0_13 = arith.constant 0 : index
    %c0_14 = arith.constant 0 : index
    %11 = vector.load %arg7[%c0_13, %c0_14] : memref<1x192xf32, #tpu.memory_space<vmem>>, vector<1x192xf32>
    %12 = vector.broadcast %11 : vector<1x192xf32> to vector<112x192xf32>
    %13 = arith.addf %10, %12 : vector<112x192xf32>
    %cst_15 = arith.constant 0.000000e+00 : f32
    %14 = vector.broadcast %cst_15 : f32 to vector<112x192xf32>
    %15 = arith.maximumf %13, %14 : vector<112x192xf32>
    %16 = math.absf %13 : vector<112x192xf32>
    %cst_16 = arith.constant 0.000000e+00 : f32
    %17 = vector.broadcast %cst_16 : f32 to vector<112x192xf32>
    %18 = arith.subf %17, %16 : vector<112x192xf32>
    %19 = math.exp %18 : vector<112x192xf32>
    %20 = math.log1p %19 : vector<112x192xf32>
    %21 = arith.addf %15, %20 : vector<112x192xf32>
    %cst_17 = arith.constant 0.693147182 : f32
    %22 = vector.broadcast %cst_17 : f32 to vector<112x192xf32>
    %23 = arith.subf %21, %22 : vector<112x192xf32>
    %24 = arith.truncf %23 : vector<112x192xf32> to vector<112x192xbf16>
    %c0_18 = arith.constant 0 : index
    %c0_19 = arith.constant 0 : index
    %25 = vector.load %arg8[%c0_18, %c0_19] : memref<192x5xbf16, #tpu.memory_space<vmem>>, vector<192x5xbf16>
    %cst_20 = arith.constant dense<0.000000e+00> : vector<112x5xf32>
    %26 = tpu.matmul %24, %25, %cst_20 {dimension_numbers = #tpu.dot_dimension_numbers<[1], [0], [0], [1], [0, 0, 1, 1], [], []>} : vector<112x192xbf16>, vector<192x5xbf16>, vector<112x5xf32> -> vector<112x5xf32>
    %c0_21 = arith.constant 0 : index
    %c0_22 = arith.constant 0 : index
    %27 = vector.load %arg9[%c0_21, %c0_22] : memref<1x5xf32, #tpu.memory_space<vmem>>, vector<1x5xf32>
    %28 = vector.broadcast %27 : vector<1x5xf32> to vector<112x5xf32>
    %29 = arith.addf %26, %28 : vector<112x5xf32>
    %c0_23 = arith.constant 0 : index
    %c0_24 = arith.constant 0 : index
    %30 = vector.load %arg10[%c0_23, %c0_24] : memref<112x5xf32, #tpu.memory_space<vmem>>, vector<112x5xf32>
    tpu.vector_store %arg10[%c0_23, %c0_24], %29 {strides = array<i32>} : memref<112x5xf32, #tpu.memory_space<vmem>>, vector<112x5xf32>,
    return
  }
  func.func @transform_0(%arg0: i32) -> (i32, i32) {
    %c0_i32 = arith.constant 0 : i32
    %c0_i32_0 = arith.constant 0 : i32
    return %arg0, %c0_i32 : i32, i32
  }
  func.func @transform_1(%arg0: i32) -> (i32, i32) {
    %c0_i32 = arith.constant 0 : i32
    %c0_i32_0 = arith.constant 0 : i32
    return %arg0, %c0_i32 : i32, i32
  }
  func.func @transform_2(%arg0: i32) -> (i32, i32) {
    %c0_i32 = arith.constant 0 : i32
    %c0_i32_0 = arith.constant 0 : i32
    return %arg0, %c0_i32 : i32, i32
  }
  func.func @transform_3(%arg0: i32) -> (i32, i32) {
    %c0_i32 = arith.constant 0 : i32
    %c0_i32_0 = arith.constant 0 : i32
    %c0_i32_1 = arith.constant 0 : i32
    return %c0_i32, %c0_i32_0 : i32, i32
  }
  func.func @transform_4(%arg0: i32) -> (i32, i32) {
    %c0_i32 = arith.constant 0 : i32
    %c0_i32_0 = arith.constant 0 : i32
    %c0_i32_1 = arith.constant 0 : i32
    return %c0_i32, %c0_i32_0 : i32, i32
  }
  func.func @transform_5(%arg0: i32) -> (i32, i32) {
    %c0_i32 = arith.constant 0 : i32
    %c0_i32_0 = arith.constant 0 : i32
    %c0_i32_1 = arith.constant 0 : i32
    return %c0_i32, %c0_i32_0 : i32, i32
  }
  func.func @transform_6(%arg0: i32) -> (i32, i32) {
    %c0_i32 = arith.constant 0 : i32
    %c0_i32_0 = arith.constant 0 : i32
    %c0_i32_1 = arith.constant 0 : i32
    return %c0_i32, %c0_i32_0 : i32, i32
  }
  func.func @transform_7(%arg0: i32) -> (i32, i32) {
    %c0_i32 = arith.constant 0 : i32
    %c0_i32_0 = arith.constant 0 : i32
    %c0_i32_1 = arith.constant 0 : i32
    return %c0_i32, %c0_i32_0 : i32, i32
  }
  func.func @transform_8(%arg0: i32) -> (i32, i32) {
    %c0_i32 = arith.constant 0 : i32
    %c0_i32_0 = arith.constant 0 : i32
    %c0_i32_1 = arith.constant 0 : i32
    return %c0_i32, %c0_i32_0 : i32, i32
  }
  func.func @transform_9(%arg0: i32) -> (i32, i32) {
    %c0_i32 = arith.constant 0 : i32
    %c0_i32_0 = arith.constant 0 : i32
    return %arg0, %c0_i32 : i32, i32
  }
}

module attributes {stable_mosaic.version = 11 : i64} {
  func.func @scalar_coupling_kernel(%arg0: i32, %arg1: memref<112x128xbf16, #tpu.memory_space<vmem>>, %arg2: memref<112x128xbf16, #tpu.memory_space<vmem>>, %arg3: memref<112x128xbf16, #tpu.memory_space<vmem>>, %arg4: memref<128x192xbf16, #tpu.memory_space<vmem>>, %arg5: memref<128x192xbf16, #tpu.memory_space<vmem>>, %arg6: memref<128x192xbf16, #tpu.memory_space<vmem>>, %arg7: memref<1x192xf32, #tpu.memory_space<vmem>>, %arg8: memref<192x5xbf16, #tpu.memory_space<vmem>>, %arg9: memref<1x5xf32, #tpu.memory_space<vmem>>, %arg10: memref<112x5xf32, #tpu.memory_space<vmem>>) attributes {dimension_semantics = [#tpu.dimension_semantics<parallel>], iteration_bounds = array<i64: 2>, scalar_prefetch = 0 : i64, scratch_operands = 0 : i64, tpu.core_type = #tpu.core_type<tc>, window_params = [{transform_indices = @transform_0, window_bounds = array<i64: 112, 128>}, {transform_indices = @transform_1, window_bounds = array<i64: 112, 128>}, {transform_indices = @transform_2, window_bounds = array<i64: 112, 128>}, {pipeline_mode = #tpu.pipeline_mode<synchronous>, transform_indices = @transform_3, window_bounds = array<i64: 128, 192>}, {pipeline_mode = #tpu.pipeline_mode<synchronous>, transform_indices = @transform_4, window_bounds = array<i64: 128, 192>}, {pipeline_mode = #tpu.pipeline_mode<synchronous>, transform_indices = @transform_5, window_bounds = array<i64: 128, 192>}, {pipeline_mode = #tpu.pipeline_mode<synchronous>, transform_indices = @transform_6, window_bounds = array<i64: 1, 192>}, {pipeline_mode = #tpu.pipeline_mode<synchronous>, transform_indices = @transform_7, window_bounds = array<i64: 192, 5>}, {pipeline_mode = #tpu.pipeline_mode<synchronous>, transform_indices = @transform_8, window_bounds = array<i64: 1, 5>}, {transform_indices = @transform_9, window_bounds = array<i64: 112, 5>}]} {
    %c0 = arith.constant 0 : index
    %c0_0 = arith.constant 0 : index
    %0 = vector.load %arg1[%c0, %c0_0] : memref<112x128xbf16, #tpu.memory_space<vmem>>, vector<112x128xbf16>
    %c0_1 = arith.constant 0 : index
    %c0_2 = arith.constant 0 : index
    %1 = vector.load %arg4[%c0_1, %c0_2] : memref<128x192xbf16, #tpu.memory_space<vmem>>, vector<128x192xbf16>
    %cst = arith.constant dense<0.000000e+00> : vector<112x192xf32>
    %2 = tpu.matmul %0, %1, %cst {dimension_numbers = #tpu.dot_dimension_numbers<[1], [0], [0], [1], [0, 0, 1, 1], [], []>} : vector<112x128xbf16>, vector<128x192xbf16>, vector<112x192xf32> -> vector<112x192xf32>
    %c0_3 = arith.constant 0 : index
    %c0_4 = arith.constant 0 : index
    %3 = vector.load %arg2[%c0_3, %c0_4] : memref<112x128xbf16, #tpu.memory_space<vmem>>, vector<112x128xbf16>
    %c0_5 = arith.constant 0 : index
    %c0_6 = arith.constant 0 : index
    %4 = vector.load %arg5[%c0_5, %c0_6] : memref<128x192xbf16, #tpu.memory_space<vmem>>, vector<128x192xbf16>
    %cst_7 = arith.constant dense<0.000000e+00> : vector<112x192xf32>
    %5 = tpu.matmul %3, %4, %cst_7 {dimension_numbers = #tpu.dot_dimension_numbers<[1], [0], [0], [1], [0, 0, 1, 1], [], []>} : vector<112x128xbf16>, vector<128x192xbf16>, vector<112x192xf32> -> vector<112x192xf32>
    %6 = arith.addf %2, %5 : vector<112x192xf32>
    %c0_8 = arith.constant 0 : index
    %c0_9 = arith.constant 0 : index
    %7 = vector.load %arg3[%c0_8, %c0_9] : memref<112x128xbf16, #tpu.memory_space<vmem>>, vector<112x128xbf16>
    %c0_10 = arith.constant 0 : index
    %c0_11 = arith.constant 0 : index
    %8 = vector.load %arg6[%c0_10, %c0_11] : memref<128x192xbf16, #tpu.memory_space<vmem>>, vector<128x192xbf16>
    %cst_12 = arith.constant dense<0.000000e+00> : vector<112x192xf32>
    %9 = tpu.matmul %7, %8, %cst_12 {dimension_numbers = #tpu.dot_dimension_numbers<[1], [0], [0], [1], [0, 0, 1, 1], [], []>} : vector<112x128xbf16>, vector<128x192xbf16>, vector<112x192xf32> -> vector<112x192xf32>
    %10 = arith.addf %6, %9 : vector<112x192xf32>
    %c0_13 = arith.constant 0 : index
    %c0_14 = arith.constant 0 : index
    %11 = vector.load %arg7[%c0_13, %c0_14] : memref<1x192xf32, #tpu.memory_space<vmem>>, vector<1x192xf32>
    %12 = vector.broadcast %11 : vector<1x192xf32> to vector<112x192xf32>
    %13 = arith.addf %10, %12 : vector<112x192xf32>
    %cst_15 = arith.constant 0.000000e+00 : f32
    %14 = vector.broadcast %cst_15 : f32 to vector<112x192xf32>
    %15 = arith.maximumf %13, %14 : vector<112x192xf32>
    %16 = math.absf %13 : vector<112x192xf32>
    %cst_16 = arith.constant 0.000000e+00 : f32
    %17 = vector.broadcast %cst_16 : f32 to vector<112x192xf32>
    %18 = arith.subf %17, %16 : vector<112x192xf32>
    %19 = math.exp %18 : vector<112x192xf32>
    %20 = math.log1p %19 : vector<112x192xf32>
    %21 = arith.addf %15, %20 : vector<112x192xf32>
    %cst_17 = arith.constant 0.693147182 : f32
    %22 = vector.broadcast %cst_17 : f32 to vector<112x192xf32>
    %23 = arith.subf %21, %22 : vector<112x192xf32>
    %24 = arith.truncf %23 : vector<112x192xf32> to vector<112x192xbf16>
    %c0_18 = arith.constant 0 : index
    %c0_19 = arith.constant 0 : index
    %25 = vector.load %arg8[%c0_18, %c0_19] : memref<192x5xbf16, #tpu.memory_space<vmem>>, vector<192x5xbf16>
    %cst_20 = arith.constant dense<0.000000e+00> : vector<112x5xf32>
    %26 = tpu.matmul %24, %25, %cst_20 {dimension_numbers = #tpu.dot_dimension_numbers<[1], [0], [0], [1], [0, 0, 1, 1], [], []>} : vector<112x192xbf16>, vector<192x5xbf16>, vector<112x5xf32> -> vector<112x5xf32>
    %c0_21 = arith.constant 0 : index
    %c0_22 = arith.constant 0 : index
    %27 = vector.load %arg9[%c0_21, %c0_22] : memref<1x5xf32, #tpu.memory_space<vmem>>, vector<1x5xf32>
    %28 = vector.broadcast %27 : vector<1x5xf32> to vector<112x5xf32>
    %29 = arith.addf %26, %28 : vector<112x5xf32>
    %c0_23 = arith.constant 0 : index
    %c0_24 = arith.constant 0 : index
    %30 = vector.load %arg10[%c0_23, %c0_24] : memref<112x5xf32, #tpu.memory_space<vmem>>, vector<112x5xf32>
    tpu.vector_store %arg10[%c0_23, %c0_24], %29 {strides = array<i32>} : memref<112x5xf32, #tpu.memory_space<vmem>>, vector<112x5xf32>,
    return
  }
  func.func @transform_0(%arg0: i32) -> (i32, i32) {
    %c0_i32 = arith.constant 0 : i32
    %c0_i32_0 = arith.constant 0 : i32
    return %arg0, %c0_i32 : i32, i32
  }
  func.func @transform_1(%arg0: i32) -> (i32, i32) {
    %c0_i32 = arith.constant 0 : i32
    %c0_i32_0 = arith.constant 0 : i32
    return %arg0, %c0_i32 : i32, i32
  }
  func.func @transform_2(%arg0: i32) -> (i32, i32) {
    %c0_i32 = arith.constant 0 : i32
    %c0_i32_0 = arith.constant 0 : i32
    return %arg0, %c0_i32 : i32, i32
  }
  func.func @transform_3(%arg0: i32) -> (i32, i32) {
    %c0_i32 = arith.constant 0 : i32
    %c0_i32_0 = arith.constant 0 : i32
    %c0_i32_1 = arith.constant 0 : i32
    return %c0_i32, %c0_i32_0 : i32, i32
  }
  func.func @transform_4(%arg0: i32) -> (i32, i32) {
    %c0_i32 = arith.constant 0 : i32
    %c0_i32_0 = arith.constant 0 : i32
    %c0_i32_1 = arith.constant 0 : i32
    return %c0_i32, %c0_i32_0 : i32, i32
  }
  func.func @transform_5(%arg0: i32) -> (i32, i32) {
    %c0_i32 = arith.constant 0 : i32
    %c0_i32_0 = arith.constant 0 : i32
    %c0_i32_1 = arith.constant 0 : i32
    return %c0_i32, %c0_i32_0 : i32, i32
  }
  func.func @transform_6(%arg0: i32) -> (i32, i32) {
    %c0_i32 = arith.constant 0 : i32
    %c0_i32_0 = arith.constant 0 : i32
    %c0_i32_1 = arith.constant 0 : i32
    return %c0_i32, %c0_i32_0 : i32, i32
  }
  func.func @transform_7(%arg0: i32) -> (i32, i32) {
    %c0_i32 = arith.constant 0 : i32
    %c0_i32_0 = arith.constant 0 : i32
    %c0_i32_1 = arith.constant 0 : i32
    return %c0_i32, %c0_i32_0 : i32, i32
  }
  func.func @transform_8(%arg0: i32) -> (i32, i32) {
    %c0_i32 = arith.constant 0 : i32
    %c0_i32_0 = arith.constant 0 : i32
    %c0_i32_1 = arith.constant 0 : i32
    return %c0_i32, %c0_i32_0 : i32, i32
  }
  func.func @transform_9(%arg0: i32) -> (i32, i32) {
    %c0_i32 = arith.constant 0 : i32
    %c0_i32_0 = arith.constant 0 : i32
    return %arg0, %c0_i32 : i32, i32
  }
}

</mosaic_0001>

<llo_original>
// kernel: tpu_custom_call.1
$region0: #{tpu_custom_call.1}
  #allocation0 [shape = 'u32[]', space=smem, size = 0x4, offset = 0x4, fixed_abs, tag = 'smem constant byte address 0x4 - core index']
  #allocation1 [shape = 'u32[144,128]{1,0:T(1,128)}', space=vmem, size = 0x12000, scoped, tag = 'internal scratch']
  %s0 = inlined_call_operand.vmem [shape: bf16[224,128], index: 0, kind: input, shape index: {}]
  %s1 = inlined_call_operand.vmem [shape: bf16[224,128], index: 1, kind: input, shape index: {}]
  %s2 = inlined_call_operand.vmem [shape: bf16[224,128], index: 2, kind: input, shape index: {}]
  %s3 = inlined_call_operand.vmem [shape: bf16[128,192], index: 3, kind: input, shape index: {}]
  %s4 = inlined_call_operand.vmem [shape: bf16[128,192], index: 4, kind: input, shape index: {}]
  %s5 = inlined_call_operand.vmem [shape: bf16[128,192], index: 5, kind: input, shape index: {}]
  %s6 = inlined_call_operand.vmem [shape: f32[1,192], index: 6, kind: input, shape index: {}]
  %s7 = inlined_call_operand.vmem [shape: bf16[192,5], index: 7, kind: input, shape index: {}]
  %s8 = inlined_call_operand.vmem [shape: f32[1,5], index: 8, kind: input, shape index: {}]
  %s9 = inlined_call_operand.vmem [shape: f32[224,5], index: 9, kind: output, shape index: {}]
  %s10 = sld [smem:[#allocation0]]
  $region69: #{tpu_custom_call.1} parent=0
    _
  %s12 = ssub.s32 1, %s10
  %s13 = scalar_select 0, %s12, %s10
  loop: start=0, step=1, limit=4
  $region2: #{tpu_custom_call.1} parent=0 // loop_pre_header
    _
  $region3: #{tpu_custom_call.1} parent=0 // loop_header
    %s15 = sphi 0, %s19
    %p16 = scmp.ge.s32.totalorder %s15, 4
    %s25 = sphi 0, %s27
    %s28 = sphi 0, %s25
    %s29 = sphi 0, %s28
    %s45 = sphi 0, %s29
    %s51 = sphi 0, %s53
    %s54 = sphi 0, %s51
    %s55 = sphi 0, %s54
    %s71 = sphi 0, %s55
    %s77 = sphi 0, %s79
    %s80 = sphi 0, %s77
    %s81 = sphi 0, %s80
    %s97 = sphi 0, %s81
    %s101 = sphi 0, %s101
    %s103 = sphi 0, %s101
    %s104 = sphi 0, %s103
    %s118 = sphi 0, %s104
    %s122 = sphi 0, %s122
    %s124 = sphi 0, %s122
    %s125 = sphi 0, %s124
    %s139 = sphi 0, %s125
    %s143 = sphi 0, %s143
    %s145 = sphi 0, %s143
    %s146 = sphi 0, %s145
    %s160 = sphi 0, %s146
    %s164 = sphi 0, %s164
    %s166 = sphi 0, %s164
    %s167 = sphi 0, %s166
    %s181 = sphi 0, %s167
    %s185 = sphi 0, %s185
    %s187 = sphi 0, %s185
    %s188 = sphi 0, %s187
    %s202 = sphi 0, %s188
    %s206 = sphi 0, %s206
    %s208 = sphi 0, %s206
    %s209 = sphi 0, %s208
    %s223 = sphi 0, %s209
    %s229 = sphi 0, %s231
    %s232 = sphi 0, %s229
    %s233 = sphi 0, %s232
    %s249 = sphi 0, %s233
  $region4: #{tpu_custom_call.1} parent=0 // loop_header_branch
    %18 = sbr.rel (%p16) target = $region8
  $region5: #{tpu_custom_call.1} parent=0 // loop_body
    %s20 = ssub.s32 %s15, 1
    %s21 = ssub.s32 %s15, 2
    %s22 = sadd.s32 %s15, 1
    %s23 = ssub.s32 %s15, %s22
    %p24 = scmp.eq.s32.totalorder %s23, 0
    %s26 = sadd.s32 %s25, 1
    %s27 = scalar_select %p24, %s25, %s26
    %p30 = pneg %p24
    %p31 = scmp.eq.s32.totalorder %s15, 1
    %p32 = por %p30, %p31
    %p33 = scmp.ne.s32.totalorder %s25, %s28
    %p34 = scmp.eq.s32.totalorder %s15, 0
    %p35 = por %p33, %p34
    %p36 = scmp.ne.s32.totalorder %s25, %s28
    %p37 = scmp.eq.s32.totalorder %s20, 1
    %p38 = por %p36, %p37
    %p39 = scmp.ne.s32.totalorder %s28, %s29
    %p40 = scmp.eq.s32.totalorder %s20, 0
    %p41 = por %p39, %p40
    %p42 = scmp.ne.s32.totalorder %s28, %s29
    %p43 = scmp.eq.s32.totalorder %s21, 1
    %p44 = por %p42, %p43
    %p46 = scmp.ne.s32.totalorder %s29, %s45
    %p47 = scmp.eq.s32.totalorder %s21, 0
    %p48 = por %p46, %p47
    %s49 = ssub.s32 %s15, %s22
    %p50 = scmp.eq.s32.totalorder %s49, 0
    %s52 = sadd.s32 %s51, 1
    %s53 = scalar_select %p50, %s51, %s52
    %p56 = pneg %p50
    %p57 = scmp.eq.s32.totalorder %s15, 1
    %p58 = por %p56, %p57
    %p59 = scmp.ne.s32.totalorder %s51, %s54
    %p60 = scmp.eq.s32.totalorder %s15, 0
    %p61 = por %p59, %p60
    %p62 = scmp.ne.s32.totalorder %s51, %s54
    %p63 = scmp.eq.s32.totalorder %s20, 1
    %p64 = por %p62, %p63
    %p65 = scmp.ne.s32.totalorder %s54, %s55
    %p66 = scmp.eq.s32.totalorder %s20, 0
    %p67 = por %p65, %p66
    %p68 = scmp.ne.s32.totalorder %s54, %s55
    %p69 = scmp.eq.s32.totalorder %s21, 1
    %p70 = por %p68, %p69
    %p72 = scmp.ne.s32.totalorder %s55, %s71
    %p73 = scmp.eq.s32.totalorder %s21, 0
    %p74 = por %p72, %p73
    %s75 = ssub.s32 %s15, %s22
    %p76 = scmp.eq.s32.totalorder %s75, 0
    %s78 = sadd.s32 %s77, 1
    %s79 = scalar_select %p76, %s77, %s78
    %p82 = pneg %p76
    %p83 = scmp.eq.s32.totalorder %s15, 1
    %p84 = por %p82, %p83
    %p85 = scmp.ne.s32.totalorder %s77, %s80
    %p86 = scmp.eq.s32.totalorder %s15, 0
    %p87 = por %p85, %p86
    %p88 = scmp.ne.s32.totalorder %s77, %s80
    %p89 = scmp.eq.s32.totalorder %s20, 1
    %p90 = por %p88, %p89
    %p91 = scmp.ne.s32.totalorder %s80, %s81
    %p92 = scmp.eq.s32.totalorder %s20, 0
    %p93 = por %p91, %p92
    %p94 = scmp.ne.s32.totalorder %s80, %s81
    %p95 = scmp.eq.s32.totalorder %s21, 1
    %p96 = por %p94, %p95
    %p98 = scmp.ne.s32.totalorder %s81, %s97
    %p99 = scmp.eq.s32.totalorder %s21, 0
    %p100 = por %p98, %p99
    %s102 = sadd.s32 %s101, 1
    %p105 = scmp.eq.s32.totalorder %s15, 1
    %p106 = scmp.ne.s32.totalorder %s101, %s103
    %p107 = scmp.eq.s32.totalorder %s15, 0
    %p108 = por %p106, %p107
    %p109 = scmp.ne.s32.totalorder %s101, %s103
    %p110 = scmp.eq.s32.totalorder %s20, 1
    %p111 = por %p109, %p110
    %p112 = scmp.ne.s32.totalorder %s103, %s104
    %p113 = scmp.eq.s32.totalorder %s20, 0
    %p114 = por %p112, %p113
    %p115 = scmp.ne.s32.totalorder %s103, %s104
    %p116 = scmp.eq.s32.totalorder %s21, 1
    %p117 = por %p115, %p116
    %p119 = scmp.ne.s32.totalorder %s104, %s118
    %p120 = scmp.eq.s32.totalorder %s21, 0
    %p121 = por %p119, %p120
    %s123 = sadd.s32 %s122, 1
    %p126 = scmp.eq.s32.totalorder %s15, 1
    %p127 = scmp.ne.s32.totalorder %s122, %s124
    %p128 = scmp.eq.s32.totalorder %s15, 0
    %p129 = por %p127, %p128
    %p130 = scmp.ne.s32.totalorder %s122, %s124
    %p131 = scmp.eq.s32.totalorder %s20, 1
    %p132 = por %p130, %p131
    %p133 = scmp.ne.s32.totalorder %s124, %s125
    %p134 = scmp.eq.s32.totalorder %s20, 0
    %p135 = por %p133, %p134
    %p136 = scmp.ne.s32.totalorder %s124, %s125
    %p137 = scmp.eq.s32.totalorder %s21, 1
    %p138 = por %p136, %p137
    %p140 = scmp.ne.s32.totalorder %s125, %s139
    %p141 = scmp.eq.s32.totalorder %s21, 0
    %p142 = por %p140, %p141
    %s144 = sadd.s32 %s143, 1
    %p147 = scmp.eq.s32.totalorder %s15, 1
    %p148 = scmp.ne.s32.totalorder %s143, %s145
    %p149 = scmp.eq.s32.totalorder %s15, 0
    %p150 = por %p148, %p149
    %p151 = scmp.ne.s32.totalorder %s143, %s145
    %p152 = scmp.eq.s32.totalorder %s20, 1
    %p153 = por %p151, %p152
    %p154 = scmp.ne.s32.totalorder %s145, %s146
    %p155 = scmp.eq.s32.totalorder %s20, 0
    %p156 = por %p154, %p155
    %p157 = scmp.ne.s32.totalorder %s145, %s146
    %p158 = scmp.eq.s32.totalorder %s21, 1
    %p159 = por %p157, %p158
    %p161 = scmp.ne.s32.totalorder %s146, %s160
    %p162 = scmp.eq.s32.totalorder %s21, 0
    %p163 = por %p161, %p162
    %s165 = sadd.s32 %s164, 1
    %p168 = scmp.eq.s32.totalorder %s15, 1
    %p169 = scmp.ne.s32.totalorder %s164, %s166
    %p170 = scmp.eq.s32.totalorder %s15, 0
    %p171 = por %p169, %p170
    %p172 = scmp.ne.s32.totalorder %s164, %s166
    %p173 = scmp.eq.s32.totalorder %s20, 1
    %p174 = por %p172, %p173
    %p175 = scmp.ne.s32.totalorder %s166, %s167
    %p176 = scmp.eq.s32.totalorder %s20, 0
    %p177 = por %p175, %p176
    %p178 = scmp.ne.s32.totalorder %s166, %s167
    %p179 = scmp.eq.s32.totalorder %s21, 1
    %p180 = por %p178, %p179
    %p182 = scmp.ne.s32.totalorder %s167, %s181
    %p183 = scmp.eq.s32.totalorder %s21, 0
    %p184 = por %p182, %p183
    %s186 = sadd.s32 %s185, 1
    %p189 = scmp.eq.s32.totalorder %s15, 1
    %p190 = scmp.ne.s32.totalorder %s185, %s187
    %p191 = scmp.eq.s32.totalorder %s15, 0
    %p192 = por %p190, %p191
    %p193 = scmp.ne.s32.totalorder %s185, %s187
    %p194 = scmp.eq.s32.totalorder %s20, 1
    %p195 = por %p193, %p194
    %p196 = scmp.ne.s32.totalorder %s187, %s188
    %p197 = scmp.eq.s32.totalorder %s20, 0
    %p198 = por %p196, %p197
    %p199 = scmp.ne.s32.totalorder %s187, %s188
    %p200 = scmp.eq.s32.totalorder %s21, 1
    %p201 = por %p199, %p200
    %p203 = scmp.ne.s32.totalorder %s188, %s202
    %p204 = scmp.eq.s32.totalorder %s21, 0
    %p205 = por %p203, %p204
    %s207 = sadd.s32 %s206, 1
    %p210 = scmp.eq.s32.totalorder %s15, 1
    %p211 = scmp.ne.s32.totalorder %s206, %s208
    %p212 = scmp.eq.s32.totalorder %s15, 0
    %p213 = por %p211, %p212
    %p214 = scmp.ne.s32.totalorder %s206, %s208
    %p215 = scmp.eq.s32.totalorder %s20, 1
    %p216 = por %p214, %p215
    %p217 = scmp.ne.s32.totalorder %s208, %s209
    %p218 = scmp.eq.s32.totalorder %s20, 0
    %p219 = por %p217, %p218
    %p220 = scmp.ne.s32.totalorder %s208, %s209
    %p221 = scmp.eq.s32.totalorder %s21, 1
    %p222 = por %p220, %p221
    %p224 = scmp.ne.s32.totalorder %s209, %s223
    %p225 = scmp.eq.s32.totalorder %s21, 0
    %p226 = por %p224, %p225
    %s227 = ssub.s32 %s15, %s22
    %p228 = scmp.eq.s32.totalorder %s227, 0
    %s230 = sadd.s32 %s229, 1
    %s231 = scalar_select %p228, %s229, %s230
    %p234 = pneg %p228
    %p235 = scmp.eq.s32.totalorder %s15, 1
    %p236 = por %p234, %p235
    %p237 = scmp.ne.s32.totalorder %s229, %s232
    %p238 = scmp.eq.s32.totalorder %s15, 0
    %p239 = por %p237, %p238
    %p240 = scmp.ne.s32.totalorder %s229, %s232
    %p241 = scmp.eq.s32.totalorder %s20, 1
    %p242 = por %p240, %p241
    %p243 = scmp.ne.s32.totalorder %s232, %s233
    %p244 = scmp.eq.s32.totalorder %s20, 0
    %p245 = por %p243, %p244
    %p246 = scmp.ne.s32.totalorder %s232, %s233
    %p247 = scmp.eq.s32.totalorder %s21, 1
    %p248 = por %p246, %p247
    %p250 = scmp.ne.s32.totalorder %s233, %s249
    %p251 = scmp.eq.s32.totalorder %s21, 0
    %p252 = por %p250, %p251
    %p253 = scmp.le.s32.totalorder 1, %s15
    %p254 = scmp.lt.s32.totalorder %s15, 3
    %p255 = pnand %p253, %p254
    %p256 = pneg %p255
    // Predicated region
    $region9: #{tpu_custom_call.1} parent=5 // pred_check
      _
    $region10: #{tpu_custom_call.1} parent=5 // pred_check_branch
      %258 = sbr.rel (%p255) target = $region12
    $region11: #{tpu_custom_call.1} parent=5 // pred_region
      %s259 = ssub.s32 %s15, 1
      // Predicated region
      $region13: #{tpu_custom_call.1} parent=11 // pred_check
        %p260 = pneg %p114
      $region14: #{tpu_custom_call.1} parent=11 // pred_check_branch
        %262 = sbr.rel (%p260) target = $region16
      $region15: #{tpu_custom_call.1} parent=11 // pred_region
        _
      $region16: #{tpu_custom_call.1} parent=11 // pred_fallthru
        _
      // Predicated region
      $region17: #{tpu_custom_call.1} parent=11 // pred_check
        %p263 = pneg %p135
      $region18: #{tpu_custom_call.1} parent=11 // pred_check_branch
        %265 = sbr.rel (%p263) target = $region20
      $region19: #{tpu_custom_call.1} parent=11 // pred_region
        _
      $region20: #{tpu_custom_call.1} parent=11 // pred_fallthru
        _
      // Predicated region
      $region21: #{tpu_custom_call.1} parent=11 // pred_check
        %p266 = pneg %p156
      $region22: #{tpu_custom_call.1} parent=11 // pred_check_branch
        %268 = sbr.rel (%p266) target = $region24
      $region23: #{tpu_custom_call.1} parent=11 // pred_region
        _
      $region24: #{tpu_custom_call.1} parent=11 // pred_fallthru
        _
      // Predicated region
      $region25: #{tpu_custom_call.1} parent=11 // pred_check
        %p269 = pneg %p177
      $region26: #{tpu_custom_call.1} parent=11 // pred_check_branch
        %271 = sbr.rel (%p269) target = $region28
      $region27: #{tpu_custom_call.1} parent=11 // pred_region
        _
      $region28: #{tpu_custom_call.1} parent=11 // pred_fallthru
        _
      // Predicated region
      $region29: #{tpu_custom_call.1} parent=11 // pred_check
        %p272 = pneg %p198
      $region30: #{tpu_custom_call.1} parent=11 // pred_check_branch
        %274 = sbr.rel (%p272) target = $region32
      $region31: #{tpu_custom_call.1} parent=11 // pred_region
        _
      $region32: #{tpu_custom_call.1} parent=11 // pred_fallthru
        _
      // Predicated region
      $region33: #{tpu_custom_call.1} parent=11 // pred_check
        %p275 = pneg %p219
      $region34: #{tpu_custom_call.1} parent=11 // pred_check_branch
        %277 = sbr.rel (%p275) target = $region36
      $region35: #{tpu_custom_call.1} parent=11 // pred_region
        _
      $region36: #{tpu_custom_call.1} parent=11 // pred_fallthru
        _
    $region12: #{tpu_custom_call.1} parent=5 // pred_fallthru
      _
    %p278 = scmp.lt.s32.totalorder %s15, 2
    // Predicated region
    $region37: #{tpu_custom_call.1} parent=5 // pred_check
      %p279 = pneg %p278
    $region38: #{tpu_custom_call.1} parent=5 // pred_check_branch
      %281 = sbr.rel (%p279) target = $region40
    $region39: #{tpu_custom_call.1} parent=5 // pred_region
      // Predicated region
      $region41: #{tpu_custom_call.1} parent=39 // pred_check
        %p282 = pneg %p35
      $region42: #{tpu_custom_call.1} parent=39 // pred_check_branch
        %284 = sbr.rel (%p282) target = $region44
      $region43: #{tpu_custom_call.1} parent=39 // pred_region
        %s285 = smul.u32 14, %s15
        %p286 = scmp.lt.s32.totalorder %s285, 27
        %s287 = scalar_select %p286, %s285, 27
        %s288 = smul.addr %s287, 4
        %s289 = scalar_lea.vmem %s0, %s288
        %s290 = smul.u32 14, %s15
      $region44: #{tpu_custom_call.1} parent=39 // pred_fallthru
        _
      // Predicated region
      $region45: #{tpu_custom_call.1} parent=39 // pred_check
        %p291 = pneg %p61
      $region46: #{tpu_custom_call.1} parent=39 // pred_check_branch
        %293 = sbr.rel (%p291) target = $region48
      $region47: #{tpu_custom_call.1} parent=39 // pred_region
        %s294 = smul.u32 14, %s15
        %p295 = scmp.lt.s32.totalorder %s294, 27
        %s296 = scalar_select %p295, %s294, 27
        %s297 = smul.addr %s296, 4
        %s298 = scalar_lea.vmem %s1, %s297
        %s299 = smul.u32 14, %s15
      $region48: #{tpu_custom_call.1} parent=39 // pred_fallthru
        _
      // Predicated region
      $region49: #{tpu_custom_call.1} parent=39 // pred_check
        %p300 = pneg %p87
      $region50: #{tpu_custom_call.1} parent=39 // pred_check_branch
        %302 = sbr.rel (%p300) target = $region52
      $region51: #{tpu_custom_call.1} parent=39 // pred_region
        %s303 = smul.u32 14, %s15
        %p304 = scmp.lt.s32.totalorder %s303, 27
        %s305 = scalar_select %p304, %s303, 27
        %s306 = smul.addr %s305, 4
        %s307 = scalar_lea.vmem %s2, %s306
        %s308 = smul.u32 14, %s15
      $region52: #{tpu_custom_call.1} parent=39 // pred_fallthru
        _
    $region40: #{tpu_custom_call.1} parent=5 // pred_fallthru
      _
    %p309 = scmp.le.s32.totalorder 1, %s15
    %p310 = scmp.lt.s32.totalorder %s15, 3
    %p311 = pnand %p309, %p310
    %p312 = pneg %p311
    // Predicated region
    $region53: #{tpu_custom_call.1} parent=5 // pred_check
      _
    $region54: #{tpu_custom_call.1} parent=5 // pred_check_branch
      %314 = sbr.rel (%p311) target = $region56
    $region55: #{tpu_custom_call.1} parent=5 // pred_region
      %s315 = ssub.s32 %s15, 1
      %s316 = smul.u32 14, %s20
      %p317 = scmp.lt.s32.totalorder %s316, 27
      %s318 = scalar_select %p317, %s316, 27
      %s319 = smul.addr %s318, 4
      %s320 = scalar_lea.vmem %s0, %s319
      %p321 = pneg %p41
      %p322 = pneg %p38
      %s323 = smul.u32 14, %s20
      %p324 = scmp.lt.s32.totalorder %s323, 27
      %s325 = scalar_select %p324, %s323, 27
      %s326 = smul.addr %s325, 4
      %s327 = scalar_lea.vmem %s1, %s326
      %p328 = pneg %p67
      %p329 = pneg %p64
      %s330 = smul.u32 14, %s20
      %p331 = scmp.lt.s32.totalorder %s330, 27
      %s332 = scalar_select %p331, %s330, 27
      %s333 = smul.addr %s332, 4
      %s334 = scalar_lea.vmem %s2, %s333
      %p335 = pneg %p93
      %p336 = pneg %p90
      %p337 = pneg %p114
      %p338 = pneg %p111
      %p339 = pneg %p135
      %p340 = pneg %p132
      %p341 = pneg %p156
      %p342 = pneg %p153
      %p343 = pneg %p177
      %p344 = pneg %p174
      %p345 = pneg %p198
      %p346 = pneg %p195
      %p347 = pneg %p219
      %p348 = pneg %p216
      %p349 = pneg %p245
      %p350 = pneg %p242
      %s351 = smul.u32 14, %s20
      %p352 = scmp.lt.s32.totalorder %s351, 27
      %s353 = scalar_select %p352, %s351, 27
      %s354 = smul.addr %s353, 8
      %s355 = scalar_lea.vmem %s9, %s354
      %s356 = smul.u32 14, %s20
      %p357 = scmp.lt.s32.totalorder %s356, 27
      %s358 = scalar_select %p357, %s356, 27
      %s359 = smul.addr %s358, 4
      %s360 = scalar_lea.vmem %s0, %s359
      %s361 = smul.u32 14, %s20
      %s362 = smul.u32 14, %s20
      %p363 = scmp.lt.s32.totalorder %s362, 27
      %s364 = scalar_select %p363, %s362, 27
      %s365 = smul.addr %s364, 4
      %s366 = scalar_lea.vmem %s1, %s365
      %s367 = smul.u32 14, %s20
      %s368 = smul.u32 14, %s20
      %p369 = scmp.lt.s32.totalorder %s368, 27
      %s370 = scalar_select %p369, %s368, 27
      %s371 = smul.addr %s370, 4
      %s372 = scalar_lea.vmem %s2, %s371
      %s373 = smul.u32 14, %s20
      %s374 = smul.u32 14, %s20
      %p375 = scmp.lt.s32.totalorder %s374, 27
      %s376 = scalar_select %p375, %s374, 27
      %s377 = smul.addr %s376, 8
      %s378 = scalar_lea.vmem %s9, %s377
      %s379 = smul.u32 14, %s20
      %v381 = vld [vmem:[%s360] sm:$0xf]
      %v382 = vld [vmem:[%s360 + $0x4] sm:$0xf]
      %v383 = vld [vmem:[%s360 + $0x8] sm:$0xf]
      %v384 = vld [vmem:[%s360 + $0xc] sm:$0xf]
      %v385 = vld [vmem:[%s360 + $0x10] sm:$0xf]
      %v386 = vld [vmem:[%s360 + $0x14] sm:$0xf]
      %v387 = vld [vmem:[%s360 + $0x18] sm:$0xf]
      %v388 = vld [vmem:[%s360 + $0x1c] sm:$0xf]
      %v389 = vld [vmem:[%s360 + $0x20] sm:$0xf]
      %v390 = vld [vmem:[%s360 + $0x24] sm:$0xf]
      %v391 = vld [vmem:[%s360 + $0x28] sm:$0xf]
      %v392 = vld [vmem:[%s360 + $0x2c] sm:$0xf]
      %v393 = vld [vmem:[%s360 + $0x30] sm:$0xf]
      %v394 = vld [vmem:[%s360 + $0x34] sm:$0xf]
      %v395 = vld [vmem:[%s3] sm:$0xff]
      %v396 = vld [vmem:[%s3 + $0x8] sm:$0xff]
      %v397 = vld [vmem:[%s3 + $0x10] sm:$0xff]
      %v398 = vld [vmem:[%s3 + $0x18] sm:$0xff]
      %v399 = vld [vmem:[%s3 + $0x20] sm:$0xff]
      %v400 = vld [vmem:[%s3 + $0x28] sm:$0xff]
      %v401 = vld [vmem:[%s3 + $0x30] sm:$0xff]
      %v402 = vld [vmem:[%s3 + $0x38] sm:$0xff]
      %v403 = vld [vmem:[%s3 + $0x40] sm:$0xff]
      %v404 = vld [vmem:[%s3 + $0x48] sm:$0xff]
      %v405 = vld [vmem:[%s3 + $0x50] sm:$0xff]
      %v406 = vld [vmem:[%s3 + $0x58] sm:$0xff]
      %v407 = vld [vmem:[%s3 + $0x60] sm:$0xff]
      %v408 = vld [vmem:[%s3 + $0x68] sm:$0xff]
      %v409 = vld [vmem:[%s3 + $0x70] sm:$0xff]
      %v410 = vld [vmem:[%s3 + $0x78] sm:$0xff]
      %v411 = vld [vmem:[%s366] sm:$0xf]
      %v412 = vld [vmem:[%s366 + $0x4] sm:$0xf]
      %v413 = vld [vmem:[%s366 + $0x8] sm:$0xf]
      %v414 = vld [vmem:[%s366 + $0xc] sm:$0xf]
      %v415 = vld [vmem:[%s366 + $0x10] sm:$0xf]
      %v416 = vld [vmem:[%s366 + $0x14] sm:$0xf]
      %v417 = vld [vmem:[%s366 + $0x18] sm:$0xf]
      %v418 = vld [vmem:[%s366 + $0x1c] sm:$0xf]
      %v419 = vld [vmem:[%s366 + $0x20] sm:$0xf]
      %v420 = vld [vmem:[%s366 + $0x24] sm:$0xf]
      %v421 = vld [vmem:[%s366 + $0x28] sm:$0xf]
      %v422 = vld [vmem:[%s366 + $0x2c] sm:$0xf]
      %v423 = vld [vmem:[%s366 + $0x30] sm:$0xf]
      %v424 = vld [vmem:[%s366 + $0x34] sm:$0xf]
      %v425 = vld [vmem:[%s4] sm:$0xff]
      %v426 = vld [vmem:[%s4 + $0x8] sm:$0xff]
      %v427 = vld [vmem:[%s4 + $0x10] sm:$0xff]
      %v428 = vld [vmem:[%s4 + $0x18] sm:$0xff]
      %v429 = vld [vmem:[%s4 + $0x20] sm:$0xff]
      %v430 = vld [vmem:[%s4 + $0x28] sm:$0xff]
      %v431 = vld [vmem:[%s4 + $0x30] sm:$0xff]
      %v432 = vld [vmem:[%s4 + $0x38] sm:$0xff]
      %v433 = vld [vmem:[%s4 + $0x40] sm:$0xff]
      %v434 = vld [vmem:[%s4 + $0x48] sm:$0xff]
      %v435 = vld [vmem:[%s4 + $0x50] sm:$0xff]
      %v436 = vld [vmem:[%s4 + $0x58] sm:$0xff]
      %v437 = vld [vmem:[%s4 + $0x60] sm:$0xff]
      %v438 = vld [vmem:[%s4 + $0x68] sm:$0xff]
      %v439 = vld [vmem:[%s4 + $0x70] sm:$0xff]
      %v440 = vld [vmem:[%s4 + $0x78] sm:$0xff]
      %v455 = vunpack.c.l.b16 %v411
      %v456 = vunpack.c.l.b16 %v412
      %v457 = vunpack.c.l.b16 %v413
      %v458 = vunpack.c.l.b16 %v414
      %v459 = vunpack.c.l.b16 %v415
      %v460 = vunpack.c.l.b16 %v416
      %v461 = vunpack.c.l.b16 %v417
      %v462 = vunpack.c.l.b16 %v418
      %v463 = vunpack.c.l.b16 %v419
      %v464 = vunpack.c.l.b16 %v420
      %v465 = vunpack.c.l.b16 %v421
      %v466 = vunpack.c.l.b16 %v422
      %v467 = vunpack.c.l.b16 %v423
      %v468 = vunpack.c.l.b16 %v424
      %v469 = vpack.c.b16 %v456, %v455
      %v470 = vpack.c.b16 %v458, %v457
      %v471 = vpack.c.b16 %v460, %v459
      %v472 = vpack.c.b16 %v462, %v461
      %v473 = vpack.c.b16 %v464, %v463
      %v474 = vpack.c.b16 %v466, %v465
      %v475 = vpack.c.b16 %v468, %v467
      %v499 = vunpack.c.l.b16 %v425
      %v500 = vunpack.c.h.b16 %v425
      %v501 = vunpack.c.l.b16 %v426
      %v502 = vunpack.c.h.b16 %v426
      %v503 = vunpack.c.l.b16 %v427
      %v504 = vunpack.c.h.b16 %v427
      %v505 = vunpack.c.l.b16 %v428
      %v506 = vunpack.c.h.b16 %v428
      %v507 = vunpack.c.l.b16 %v429
      %v508 = vunpack.c.h.b16 %v429
      %v509 = vunpack.c.l.b16 %v430
      %v510 = vunpack.c.h.b16 %v430
      %v511 = vunpack.c.l.b16 %v431
      %v512 = vunpack.c.h.b16 %v431
      %v513 = vunpack.c.l.b16 %v432
      %v514 = vunpack.c.h.b16 %v432
      %v515 = vunpack.c.l.b16 %v433
      %v516 = vunpack.c.h.b16 %v433
      %v517 = vunpack.c.l.b16 %v434
      %v518 = vunpack.c.h.b16 %v434
      %v519 = vunpack.c.l.b16 %v435
      %v520 = vunpack.c.h.b16 %v435
      %v521 = vunpack.c.l.b16 %v436
      %v522 = vunpack.c.h.b16 %v436
      %v523 = vunpack.c.l.b16 %v437
      %v524 = vunpack.c.h.b16 %v437
      %v525 = vunpack.c.l.b16 %v438
      %v526 = vunpack.c.h.b16 %v438
      %v527 = vunpack.c.l.b16 %v439
      %v528 = vunpack.c.h.b16 %v439
      %v529 = vunpack.c.l.b16 %v440
      %v530 = vunpack.c.h.b16 %v440
      %v531 = vpack.c.b16 %v501, %v499
      %v532 = vpack.c.b16 %v502, %v500
      %v533 = vpack.c.b16 %v505, %v503
      %v534 = vpack.c.b16 %v506, %v504
      %v535 = vpack.c.b16 %v509, %v507
      %v536 = vpack.c.b16 %v510, %v508
      %v537 = vpack.c.b16 %v513, %v511
      %v538 = vpack.c.b16 %v514, %v512
      %v539 = vpack.c.b16 %v517, %v515
      %v540 = vpack.c.b16 %v518, %v516
      %v541 = vpack.c.b16 %v521, %v519
      %v542 = vpack.c.b16 %v522, %v520
      %v543 = vpack.c.b16 %v525, %v523
      %v544 = vpack.c.b16 %v526, %v524
      %v545 = vpack.c.b16 %v529, %v527
      %v546 = vpack.c.b16 %v530, %v528
      %563 = vmatprep.subr.bf16.mxu0 %v546
      %564 = vmatpush1.bf16.msra.mxu0 %v545
      %565 = vmatprep.subr.bf16.mxu0 %v544
      %566 = vmatpush1.bf16.msra.mxu0 %v543
      %567 = vmatprep.subr.bf16.mxu0 %v542
      %568 = vmatpush1.bf16.msra.mxu0 %v541
      %569 = vmatprep.subr.bf16.mxu0 %v540
      %570 = vmatpush1.bf16.msra.mxu0 %v539
      %571 = vmatprep.subr.bf16.mxu0 %v538
      %572 = vmatpush1.bf16.msra.mxu0 %v537
      %573 = vmatprep.subr.bf16.mxu0 %v536
      %574 = vmatpush1.bf16.msra.mxu0 %v535
      %575 = vmatprep.subr.bf16.mxu0 %v534
      %576 = vmatpush1.bf16.msra.mxu0 %v533
      %577 = vmatprep.subr.bf16.mxu0 %v532
      %578 = vmatpush1.bf16.msra.mxu0 %v531
      %579 = vmatprep.subr.bf16.mxu0 0
      %580 = vmatpush2.bf16.msra.mxu0 0
      %581 = vmatprep.subr.bf16.mxu0 0
      %582 = vmatpush2.bf16.msra.mxu0 0
      %583 = vmatprep.subr.bf16.mxu0 0
      %584 = vmatpush2.bf16.msra.mxu0 0
      %585 = vmatprep.subr.bf16.mxu0 0
      %586 = vmatpush2.bf16.msra.mxu0 0
      %587 = vmatprep.subr.bf16.mxu0 0
      %588 = vmatpush2.bf16.msra.mxu0 0
      %589 = vmatprep.subr.bf16.mxu0 0
      %590 = vmatpush2.bf16.msra.mxu0 0
      %591 = vmatprep.subr.bf16.mxu0 0
      %592 = vmatpush2.bf16.msra.mxu0 0
      %593 = vmatprep.subr.bf16.mxu0 0
      %594 = vmatpush2.bf16.msra.mxu0 0
      %595 = vmatprep.mubr.bf16.mxu0 0
      %596 = vmatmul.mubr.bf16.gmra.mxu0 %v469
      %v597 = vpop.f32.mrf.mxu0
      %v598 = vadd.f32 0.0, %v597
      %v599 = vpop.f32.mrf.mxu0
      %v600 = vadd.f32 0.0, %v599
      %v601 = vpop.f32.mrf.mxu0
      %v602 = vadd.f32 0.0, %v601
      %v603 = vpop.f32.mrf.mxu0
      %v604 = vadd.f32 0.0, %v603
      %605 = vmatprep.mubr.bf16.mxu0 0
      %606 = vmatmul.mubr.bf16.gmra.mxu0 %v470
      %v607 = vpop.f32.mrf.mxu0
      %v608 = vadd.f32 0.0, %v607
      %v609 = vpop.f32.mrf.mxu0
      %v610 = vadd.f32 0.0, %v609
      %v611 = vpop.f32.mrf.mxu0
      %v612 = vadd.f32 0.0, %v611
      %v613 = vpop.f32.mrf.mxu0
      %v614 = vadd.f32 0.0, %v613
      %615 = vmatprep.mubr.bf16.mxu0 0
      %616 = vmatmul.mubr.bf16.gmra.mxu0 %v471
      %v617 = vpop.f32.mrf.mxu0
      %v618 = vadd.f32 0.0, %v617
      %v619 = vpop.f32.mrf.mxu0
      %v620 = vadd.f32 0.0, %v619
      %v621 = vpop.f32.mrf.mxu0
      %v622 = vadd.f32 0.0, %v621
      %v623 = vpop.f32.mrf.mxu0
      %v624 = vadd.f32 0.0, %v623
      %625 = vmatprep.mubr.bf16.mxu0 0
      %626 = vmatmul.mubr.bf16.gmra.mxu0 %v472
      %v627 = vpop.f32.mrf.mxu0
      %v628 = vadd.f32 0.0, %v627
      %v629 = vpop.f32.mrf.mxu0
      %v630 = vadd.f32 0.0, %v629
      %v631 = vpop.f32.mrf.mxu0
      %v632 = vadd.f32 0.0, %v631
      %v633 = vpop.f32.mrf.mxu0
      %v634 = vadd.f32 0.0, %v633
      %635 = vmatprep.mubr.bf16.mxu0 0
      %636 = vmatmul.mubr.bf16.gmra.mxu0 %v473
      %v637 = vpop.f32.mrf.mxu0
      %v638 = vadd.f32 0.0, %v637
      %v639 = vpop.f32.mrf.mxu0
      %v640 = vadd.f32 0.0, %v639
      %v641 = vpop.f32.mrf.mxu0
      %v642 = vadd.f32 0.0, %v641
      %v643 = vpop.f32.mrf.mxu0
      %v644 = vadd.f32 0.0, %v643
      %645 = vmatprep.mubr.bf16.mxu0 0
      %646 = vmatmul.mubr.bf16.gmra.mxu0 %v474
      %v647 = vpop.f32.mrf.mxu0
      %v648 = vadd.f32 0.0, %v647
      %v649 = vpop.f32.mrf.mxu0
      %v650 = vadd.f32 0.0, %v649
      %v651 = vpop.f32.mrf.mxu0
      %v652 = vadd.f32 0.0, %v651
      %v653 = vpop.f32.mrf.mxu0
      %v654 = vadd.f32 0.0, %v653
      %655 = vmatprep.mubr.bf16.mxu0 0
      %656 = vmatmul.mubr.bf16.gmra.mxu0 %v475
      %v657 = vpop.f32.mrf.mxu0
      %v658 = vadd.f32 0.0, %v657
      %v659 = vpop.f32.mrf.mxu0
      %v660 = vadd.f32 0.0, %v659
      %v661 = vpop.f32.mrf.mxu0
      %v662 = vadd.f32 0.0, %v661
      %v663 = vpop.f32.mrf.mxu0
      %v664 = vadd.f32 0.0, %v663
      %665 = vdwg.mxu0
      %v680 = vunpack.c.l.b16 %v381
      %v681 = vunpack.c.l.b16 %v382
      %v682 = vunpack.c.l.b16 %v383
      %v683 = vunpack.c.l.b16 %v384
      %v684 = vunpack.c.l.b16 %v385
      %v685 = vunpack.c.l.b16 %v386
      %v686 = vunpack.c.l.b16 %v387
      %v687 = vunpack.c.l.b16 %v388
      %v688 = vunpack.c.l.b16 %v389
      %v689 = vunpack.c.l.b16 %v390
      %v690 = vunpack.c.l.b16 %v391
      %v691 = vunpack.c.l.b16 %v392
      %v692 = vunpack.c.l.b16 %v393
      %v693 = vunpack.c.l.b16 %v394
      %v694 = vpack.c.b16 %v681, %v680
      %v695 = vpack.c.b16 %v683, %v682
      %v696 = vpack.c.b16 %v685, %v684
      %v697 = vpack.c.b16 %v687, %v686
      %v698 = vpack.c.b16 %v689, %v688
      %v699 = vpack.c.b16 %v691, %v690
      %v700 = vpack.c.b16 %v693, %v692
      %v724 = vunpack.c.l.b16 %v395
      %v725 = vunpack.c.h.b16 %v395
      %v726 = vunpack.c.l.b16 %v396
      %v727 = vunpack.c.h.b16 %v396
      %v728 = vunpack.c.l.b16 %v397
      %v729 = vunpack.c.h.b16 %v397
      %v730 = vunpack.c.l.b16 %v398
      %v731 = vunpack.c.h.b16 %v398
      %v732 = vunpack.c.l.b16 %v399
      %v733 = vunpack.c.h.b16 %v399
      %v734 = vunpack.c.l.b16 %v400
      %v735 = vunpack.c.h.b16 %v400
      %v736 = vunpack.c.l.b16 %v401
      %v737 = vunpack.c.h.b16 %v401
      %v738 = vunpack.c.l.b16 %v402
      %v739 = vunpack.c.h.b16 %v402
      %v740 = vunpack.c.l.b16 %v403
      %v741 = vunpack.c.h.b16 %v403
      %v742 = vunpack.c.l.b16 %v404
      %v743 = vunpack.c.h.b16 %v404
      %v744 = vunpack.c.l.b16 %v405
      %v745 = vunpack.c.h.b16 %v405
      %v746 = vunpack.c.l.b16 %v406
      %v747 = vunpack.c.h.b16 %v406
      %v748 = vunpack.c.l.b16 %v407
      %v749 = vunpack.c.h.b16 %v407
      %v750 = vunpack.c.l.b16 %v408
      %v751 = vunpack.c.h.b16 %v408
      %v752 = vunpack.c.l.b16 %v409
      %v753 = vunpack.c.h.b16 %v409
      %v754 = vunpack.c.l.b16 %v410
      %v755 = vunpack.c.h.b16 %v410
      %v756 = vpack.c.b16 %v726, %v724
      %v757 = vpack.c.b16 %v727, %v725
      %v758 = vpack.c.b16 %v730, %v728
      %v759 = vpack.c.b16 %v731, %v729
      %v760 = vpack.c.b16 %v734, %v732
      %v761 = vpack.c.b16 %v735, %v733
      %v762 = vpack.c.b16 %v738, %v736
      %v763 = vpack.c.b16 %v739, %v737
      %v764 = vpack.c.b16 %v742, %v740
      %v765 = vpack.c.b16 %v743, %v741
      %v766 = vpack.c.b16 %v746, %v744
      %v767 = vpack.c.b16 %v747, %v745
      %v768 = vpack.c.b16 %v750, %v748
      %v769 = vpack.c.b16 %v751, %v749
      %v770 = vpack.c.b16 %v754, %v752
      %v771 = vpack.c.b16 %v755, %v753
      %788 = vmatprep.subr.bf16.mxu0 %v771
      %789 = vmatpush1.bf16.msra.mxu0 %v770
      %790 = vmatprep.subr.bf16.mxu0 %v769
      %791 = vmatpush1.bf16.msra.mxu0 %v768
      %792 = vmatprep.subr.bf16.mxu0 %v767
      %793 = vmatpush1.bf16.msra.mxu0 %v766
      %794 = vmatprep.subr.bf16.mxu0 %v765
      %795 = vmatpush1.bf16.msra.mxu0 %v764
      %796 = vmatprep.subr.bf16.mxu0 %v763
      %797 = vmatpush1.bf16.msra.mxu0 %v762
      %798 = vmatprep.subr.bf16.mxu0 %v761
      %799 = vmatpush1.bf16.msra.mxu0 %v760
      %800 = vmatprep.subr.bf16.mxu0 %v759
      %801 = vmatpush1.bf16.msra.mxu0 %v758
      %802 = vmatprep.subr.bf16.mxu0 %v757
      %803 = vmatpush1.bf16.msra.mxu0 %v756
      %804 = vmatprep.subr.bf16.mxu0 0
      %805 = vmatpush2.bf16.msra.mxu0 0
      %806 = vmatprep.subr.bf16.mxu0 0
      %807 = vmatpush2.bf16.msra.mxu0 0
      %808 = vmatprep.subr.bf16.mxu0 0
      %809 = vmatpush2.bf16.msra.mxu0 0
      %810 = vmatprep.subr.bf16.mxu0 0
      %811 = vmatpush2.bf16.msra.mxu0 0
      %812 = vmatprep.subr.bf16.mxu0 0
      %813 = vmatpush2.bf16.msra.mxu0 0
      %814 = vmatprep.subr.bf16.mxu0 0
      %815 = vmatpush2.bf16.msra.mxu0 0
      %816 = vmatprep.subr.bf16.mxu0 0
      %817 = vmatpush2.bf16.msra.mxu0 0
      %818 = vmatprep.subr.bf16.mxu0 0
      %819 = vmatpush2.bf16.msra.mxu0 0
      %820 = vmatprep.mubr.bf16.mxu0 0
      %821 = vmatmul.mubr.bf16.gmra.mxu0 %v694
      %v822 = vpop.f32.mrf.mxu0
      %v823 = vadd.f32 %v598, %v822
      %v824 = vpop.f32.mrf.mxu0
      %v825 = vadd.f32 %v600, %v824
      %v826 = vpop.f32.mrf.mxu0
      %v827 = vadd.f32 %v602, %v826
      %v828 = vpop.f32.mrf.mxu0
      %v829 = vadd.f32 %v604, %v828
      %830 = vmatprep.mubr.bf16.mxu0 0
      %831 = vmatmul.mubr.bf16.gmra.mxu0 %v695
      %v832 = vpop.f32.mrf.mxu0
      %v833 = vadd.f32 %v608, %v832
      %v834 = vpop.f32.mrf.mxu0
      %v835 = vadd.f32 %v610, %v834
      %v836 = vpop.f32.mrf.mxu0
      %v837 = vadd.f32 %v612, %v836
      %v838 = vpop.f32.mrf.mxu0
      %v839 = vadd.f32 %v614, %v838
      %840 = vmatprep.mubr.bf16.mxu0 0
      %841 = vmatmul.mubr.bf16.gmra.mxu0 %v696
      %v842 = vpop.f32.mrf.mxu0
      %v843 = vadd.f32 %v618, %v842
      %v844 = vpop.f32.mrf.mxu0
      %v845 = vadd.f32 %v620, %v844
      %v846 = vpop.f32.mrf.mxu0
      %v847 = vadd.f32 %v622, %v846
      %v848 = vpop.f32.mrf.mxu0
      %v849 = vadd.f32 %v624, %v848
      %850 = vmatprep.mubr.bf16.mxu0 0
      %851 = vmatmul.mubr.bf16.gmra.mxu0 %v697
      %v852 = vpop.f32.mrf.mxu0
      %v853 = vadd.f32 %v628, %v852
      %v854 = vpop.f32.mrf.mxu0
      %v855 = vadd.f32 %v630, %v854
      %v856 = vpop.f32.mrf.mxu0
      %v857 = vadd.f32 %v632, %v856
      %v858 = vpop.f32.mrf.mxu0
      %v859 = vadd.f32 %v634, %v858
      %860 = vmatprep.mubr.bf16.mxu0 0
      %861 = vmatmul.mubr.bf16.gmra.mxu0 %v698
      %v862 = vpop.f32.mrf.mxu0
      %v863 = vadd.f32 %v638, %v862
      %v864 = vpop.f32.mrf.mxu0
      %v865 = vadd.f32 %v640, %v864
      %v866 = vpop.f32.mrf.mxu0
      %v867 = vadd.f32 %v642, %v866
      %v868 = vpop.f32.mrf.mxu0
      %v869 = vadd.f32 %v644, %v868
      %870 = vmatprep.mubr.bf16.mxu0 0
      %871 = vmatmul.mubr.bf16.gmra.mxu0 %v699
      %v872 = vpop.f32.mrf.mxu0
      %v873 = vadd.f32 %v648, %v872
      %v874 = vpop.f32.mrf.mxu0
      %v875 = vadd.f32 %v650, %v874
      %v876 = vpop.f32.mrf.mxu0
      %v877 = vadd.f32 %v652, %v876
      %v878 = vpop.f32.mrf.mxu0
      %v879 = vadd.f32 %v654, %v878
      %880 = vmatprep.mubr.bf16.mxu0 0
      %881 = vmatmul.mubr.bf16.gmra.mxu0 %v700
      %v882 = vpop.f32.mrf.mxu0
      %v883 = vadd.f32 %v658, %v882
      %v884 = vpop.f32.mrf.mxu0
      %v885 = vadd.f32 %v660, %v884
      %v886 = vpop.f32.mrf.mxu0
      %v887 = vadd.f32 %v662, %v886
      %v888 = vpop.f32.mrf.mxu0
      %v889 = vadd.f32 %v664, %v888
      %890 = vdwg.mxu0
      %v891 = vld [vmem:[%s372] sm:$0xf]
      %v892 = vld [vmem:[%s372 + $0x4] sm:$0xf]
      %v893 = vld [vmem:[%s372 + $0x8] sm:$0xf]
      %v894 = vld [vmem:[%s372 + $0xc] sm:$0xf]
      %v895 = vld [vmem:[%s372 + $0x10] sm:$0xf]
      %v896 = vld [vmem:[%s372 + $0x14] sm:$0xf]
      %v897 = vld [vmem:[%s372 + $0x18] sm:$0xf]
      %v898 = vld [vmem:[%s372 + $0x1c] sm:$0xf]
      %v899 = vld [vmem:[%s372 + $0x20] sm:$0xf]
      %v900 = vld [vmem:[%s372 + $0x24] sm:$0xf]
      %v901 = vld [vmem:[%s372 + $0x28] sm:$0xf]
      %v902 = vld [vmem:[%s372 + $0x2c] sm:$0xf]
      %v903 = vld [vmem:[%s372 + $0x30] sm:$0xf]
      %v904 = vld [vmem:[%s372 + $0x34] sm:$0xf]
      %v905 = vld [vmem:[%s5] sm:$0xff]
      %v906 = vld [vmem:[%s5 + $0x8] sm:$0xff]
      %v907 = vld [vmem:[%s5 + $0x10] sm:$0xff]
      %v908 = vld [vmem:[%s5 + $0x18] sm:$0xff]
      %v909 = vld [vmem:[%s5 + $0x20] sm:$0xff]
      %v910 = vld [vmem:[%s5 + $0x28] sm:$0xff]
      %v911 = vld [vmem:[%s5 + $0x30] sm:$0xff]
      %v912 = vld [vmem:[%s5 + $0x38] sm:$0xff]
      %v913 = vld [vmem:[%s5 + $0x40] sm:$0xff]
      %v914 = vld [vmem:[%s5 + $0x48] sm:$0xff]
      %v915 = vld [vmem:[%s5 + $0x50] sm:$0xff]
      %v916 = vld [vmem:[%s5 + $0x58] sm:$0xff]
      %v917 = vld [vmem:[%s5 + $0x60] sm:$0xff]
      %v918 = vld [vmem:[%s5 + $0x68] sm:$0xff]
      %v919 = vld [vmem:[%s5 + $0x70] sm:$0xff]
      %v920 = vld [vmem:[%s5 + $0x78] sm:$0xff]
      %v935 = vunpack.c.l.b16 %v891
      %v936 = vunpack.c.l.b16 %v892
      %v937 = vunpack.c.l.b16 %v893
      %v938 = vunpack.c.l.b16 %v894
      %v939 = vunpack.c.l.b16 %v895
      %v940 = vunpack.c.l.b16 %v896
      %v941 = vunpack.c.l.b16 %v897
      %v942 = vunpack.c.l.b16 %v898
      %v943 = vunpack.c.l.b16 %v899
      %v944 = vunpack.c.l.b16 %v900
      %v945 = vunpack.c.l.b16 %v901
      %v946 = vunpack.c.l.b16 %v902
      %v947 = vunpack.c.l.b16 %v903
      %v948 = vunpack.c.l.b16 %v904
      %v949 = vpack.c.b16 %v936, %v935
      %v950 = vpack.c.b16 %v938, %v937
      %v951 = vpack.c.b16 %v940, %v939
      %v952 = vpack.c.b16 %v942, %v941
      %v953 = vpack.c.b16 %v944, %v943
      %v954 = vpack.c.b16 %v946, %v945
      %v955 = vpack.c.b16 %v948, %v947
      %v979 = vunpack.c.l.b16 %v905
      %v980 = vunpack.c.h.b16 %v905
      %v981 = vunpack.c.l.b16 %v906
      %v982 = vunpack.c.h.b16 %v906
      %v983 = vunpack.c.l.b16 %v907
      %v984 = vunpack.c.h.b16 %v907
      %v985 = vunpack.c.l.b16 %v908
      %v986 = vunpack.c.h.b16 %v908
      %v987 = vunpack.c.l.b16 %v909
      %v988 = vunpack.c.h.b16 %v909
      %v989 = vunpack.c.l.b16 %v910
      %v990 = vunpack.c.h.b16 %v910
      %v991 = vunpack.c.l.b16 %v911
      %v992 = vunpack.c.h.b16 %v911
      %v993 = vunpack.c.l.b16 %v912
      %v994 = vunpack.c.h.b16 %v912
      %v995 = vunpack.c.l.b16 %v913
      %v996 = vunpack.c.h.b16 %v913
      %v997 = vunpack.c.l.b16 %v914
      %v998 = vunpack.c.h.b16 %v914
      %v999 = vunpack.c.l.b16 %v915
      %v1000 = vunpack.c.h.b16 %v915
      %v1001 = vunpack.c.l.b16 %v916
      %v1002 = vunpack.c.h.b16 %v916
      %v1003 = vunpack.c.l.b16 %v917
      %v1004 = vunpack.c.h.b16 %v917
      %v1005 = vunpack.c.l.b16 %v918
      %v1006 = vunpack.c.h.b16 %v918
      %v1007 = vunpack.c.l.b16 %v919
      %v1008 = vunpack.c.h.b16 %v919
      %v1009 = vunpack.c.l.b16 %v920
      %v1010 = vunpack.c.h.b16 %v920
      %v1011 = vpack.c.b16 %v981, %v979
      %v1012 = vpack.c.b16 %v982, %v980
      %v1013 = vpack.c.b16 %v985, %v983
      %v1014 = vpack.c.b16 %v986, %v984
      %v1015 = vpack.c.b16 %v989, %v987
      %v1016 = vpack.c.b16 %v990, %v988
      %v1017 = vpack.c.b16 %v993, %v991
      %v1018 = vpack.c.b16 %v994, %v992
      %v1019 = vpack.c.b16 %v997, %v995
      %v1020 = vpack.c.b16 %v998, %v996
      %v1021 = vpack.c.b16 %v1001, %v999
      %v1022 = vpack.c.b16 %v1002, %v1000
      %v1023 = vpack.c.b16 %v1005, %v1003
      %v1024 = vpack.c.b16 %v1006, %v1004
      %v1025 = vpack.c.b16 %v1009, %v1007
      %v1026 = vpack.c.b16 %v1010, %v1008
      %1043 = vmatprep.subr.bf16.mxu0 %v1026
      %1044 = vmatpush1.bf16.msra.mxu0 %v1025
      %1045 = vmatprep.subr.bf16.mxu0 %v1024
      %1046 = vmatpush1.bf16.msra.mxu0 %v1023
      %1047 = vmatprep.subr.bf16.mxu0 %v1022
      %1048 = vmatpush1.bf16.msra.mxu0 %v1021
      %1049 = vmatprep.subr.bf16.mxu0 %v1020
      %1050 = vmatpush1.bf16.msra.mxu0 %v1019
      %1051 = vmatprep.subr.bf16.mxu0 %v1018
      %1052 = vmatpush1.bf16.msra.mxu0 %v1017
      %1053 = vmatprep.subr.bf16.mxu0 %v1016
      %1054 = vmatpush1.bf16.msra.mxu0 %v1015
      %1055 = vmatprep.subr.bf16.mxu0 %v1014
      %1056 = vmatpush1.bf16.msra.mxu0 %v1013
      %1057 = vmatprep.subr.bf16.mxu0 %v1012
      %1058 = vmatpush1.bf16.msra.mxu0 %v1011
      %1059 = vmatprep.subr.bf16.mxu0 0
      %1060 = vmatpush2.bf16.msra.mxu0 0
      %1061 = vmatprep.subr.bf16.mxu0 0
      %1062 = vmatpush2.bf16.msra.mxu0 0
      %1063 = vmatprep.subr.bf16.mxu0 0
      %1064 = vmatpush2.bf16.msra.mxu0 0
      %1065 = vmatprep.subr.bf16.mxu0 0
      %1066 = vmatpush2.bf16.msra.mxu0 0
      %1067 = vmatprep.subr.bf16.mxu0 0
      %1068 = vmatpush2.bf16.msra.mxu0 0
      %1069 = vmatprep.subr.bf16.mxu0 0
      %1070 = vmatpush2.bf16.msra.mxu0 0
      %1071 = vmatprep.subr.bf16.mxu0 0
      %1072 = vmatpush2.bf16.msra.mxu0 0
      %1073 = vmatprep.subr.bf16.mxu0 0
      %1074 = vmatpush2.bf16.msra.mxu0 0
      %1075 = vmatprep.mubr.bf16.mxu0 0
      %1076 = vmatmul.mubr.bf16.gmra.mxu0 %v949
      %v1077 = vpop.f32.mrf.mxu0
      %v1078 = vadd.f32 0.0, %v1077
      %v1079 = vpop.f32.mrf.mxu0
      %v1080 = vadd.f32 0.0, %v1079
      %v1081 = vpop.f32.mrf.mxu0
      %v1082 = vadd.f32 0.0, %v1081
      %v1083 = vpop.f32.mrf.mxu0
      %v1084 = vadd.f32 0.0, %v1083
      %1085 = vmatprep.mubr.bf16.mxu0 0
      %1086 = vmatmul.mubr.bf16.gmra.mxu0 %v950
      %v1087 = vpop.f32.mrf.mxu0
      %v1088 = vadd.f32 0.0, %v1087
      %v1089 = vpop.f32.mrf.mxu0
      %v1090 = vadd.f32 0.0, %v1089
      %v1091 = vpop.f32.mrf.mxu0
      %v1092 = vadd.f32 0.0, %v1091
      %v1093 = vpop.f32.mrf.mxu0
      %v1094 = vadd.f32 0.0, %v1093
      %1095 = vmatprep.mubr.bf16.mxu0 0
      %1096 = vmatmul.mubr.bf16.gmra.mxu0 %v951
      %v1097 = vpop.f32.mrf.mxu0
      %v1098 = vadd.f32 0.0, %v1097
      %v1099 = vpop.f32.mrf.mxu0
      %v1100 = vadd.f32 0.0, %v1099
      %v1101 = vpop.f32.mrf.mxu0
      %v1102 = vadd.f32 0.0, %v1101
      %v1103 = vpop.f32.mrf.mxu0
      %v1104 = vadd.f32 0.0, %v1103
      %1105 = vmatprep.mubr.bf16.mxu0 0
      %1106 = vmatmul.mubr.bf16.gmra.mxu0 %v952
      %v1107 = vpop.f32.mrf.mxu0
      %v1108 = vadd.f32 0.0, %v1107
      %v1109 = vpop.f32.mrf.mxu0
      %v1110 = vadd.f32 0.0, %v1109
      %v1111 = vpop.f32.mrf.mxu0
      %v1112 = vadd.f32 0.0, %v1111
      %v1113 = vpop.f32.mrf.mxu0
      %v1114 = vadd.f32 0.0, %v1113
      %1115 = vmatprep.mubr.bf16.mxu0 0
      %1116 = vmatmul.mubr.bf16.gmra.mxu0 %v953
      %v1117 = vpop.f32.mrf.mxu0
      %v1118 = vadd.f32 0.0, %v1117
      %v1119 = vpop.f32.mrf.mxu0
      %v1120 = vadd.f32 0.0, %v1119
      %v1121 = vpop.f32.mrf.mxu0
      %v1122 = vadd.f32 0.0, %v1121
      %v1123 = vpop.f32.mrf.mxu0
      %v1124 = vadd.f32 0.0, %v1123
      %1125 = vmatprep.mubr.bf16.mxu0 0
      %1126 = vmatmul.mubr.bf16.gmra.mxu0 %v954
      %v1127 = vpop.f32.mrf.mxu0
      %v1128 = vadd.f32 0.0, %v1127
      %v1129 = vpop.f32.mrf.mxu0
      %v1130 = vadd.f32 0.0, %v1129
      %v1131 = vpop.f32.mrf.mxu0
      %v1132 = vadd.f32 0.0, %v1131
      %v1133 = vpop.f32.mrf.mxu0
      %v1134 = vadd.f32 0.0, %v1133
      %1135 = vmatprep.mubr.bf16.mxu0 0
      %1136 = vmatmul.mubr.bf16.gmra.mxu0 %v955
      %v1137 = vpop.f32.mrf.mxu0
      %v1138 = vadd.f32 0.0, %v1137
      %v1139 = vpop.f32.mrf.mxu0
      %v1140 = vadd.f32 0.0, %v1139
      %v1141 = vpop.f32.mrf.mxu0
      %v1142 = vadd.f32 0.0, %v1141
      %v1143 = vpop.f32.mrf.mxu0
      %v1144 = vadd.f32 0.0, %v1143
      %1145 = vdwg.mxu0
      %v1146 = vadd.f32 %v823, %v1078
      %v1147 = vadd.f32 %v825, %v1080
      %v1148 = vadd.f32 %v827, %v1082
      %v1149 = vadd.f32 %v829, %v1084
      %v1150 = vadd.f32 %v833, %v1088
      %v1151 = vadd.f32 %v835, %v1090
      %v1152 = vadd.f32 %v837, %v1092
      %v1153 = vadd.f32 %v839, %v1094
      %v1154 = vadd.f32 %v843, %v1098
      %v1155 = vadd.f32 %v845, %v1100
      %v1156 = vadd.f32 %v847, %v1102
      %v1157 = vadd.f32 %v849, %v1104
      %v1158 = vadd.f32 %v853, %v1108
      %v1159 = vadd.f32 %v855, %v1110
      %v1160 = vadd.f32 %v857, %v1112
      %v1161 = vadd.f32 %v859, %v1114
      %v1162 = vadd.f32 %v863, %v1118
      %v1163 = vadd.f32 %v865, %v1120
      %v1164 = vadd.f32 %v867, %v1122
      %v1165 = vadd.f32 %v869, %v1124
      %v1166 = vadd.f32 %v873, %v1128
      %v1167 = vadd.f32 %v875, %v1130
      %v1168 = vadd.f32 %v877, %v1132
      %v1169 = vadd.f32 %v879, %v1134
      %v1170 = vadd.f32 %v883, %v1138
      %v1171 = vadd.f32 %v885, %v1140
      %v1172 = vadd.f32 %v887, %v1142
      %v1173 = vadd.f32 %v889, %v1144
      %v1174 = vld [vmem:[%s6] sm:$0x3]
      %v1176 = vlaneseq
      %v1177 = vshrl.u32 %v1176, 7
      %v1178 = vsub.s32 0, %v1177
      %v1179 = vrot.slane %v1174, %v1178
      %v1180 = vlaneseq
      %v1181 = vshrl.u32 %v1180, 7
      %v1182 = vsub.s32 1, %v1181
      %v1183 = vrot.slane %v1174, %v1182
      %v1186 = vadd.f32 %v1146, %v1179
      %v1187 = vadd.f32 %v1147, %v1183
      %v1188 = vadd.f32 %v1148, %v1179
      %v1189 = vadd.f32 %v1149, %v1183
      %v1190 = vadd.f32 %v1150, %v1179
      %v1191 = vadd.f32 %v1151, %v1183
      %v1192 = vadd.f32 %v1152, %v1179
      %v1193 = vadd.f32 %v1153, %v1183
      %v1194 = vadd.f32 %v1154, %v1179
      %v1195 = vadd.f32 %v1155, %v1183
      %v1196 = vadd.f32 %v1156, %v1179
      %v1197 = vadd.f32 %v1157, %v1183
      %v1198 = vadd.f32 %v1158, %v1179
      %v1199 = vadd.f32 %v1159, %v1183
      %v1200 = vadd.f32 %v1160, %v1179
      %v1201 = vadd.f32 %v1161, %v1183
      %v1202 = vadd.f32 %v1162, %v1179
      %v1203 = vadd.f32 %v1163, %v1183
      %v1204 = vadd.f32 %v1164, %v1179
      %v1205 = vadd.f32 %v1165, %v1183
      %v1206 = vadd.f32 %v1166, %v1179
      %v1207 = vadd.f32 %v1167, %v1183
      %v1208 = vadd.f32 %v1168, %v1179
      %v1209 = vadd.f32 %v1169, %v1183
      %v1210 = vadd.f32 %v1170, %v1179
      %v1211 = vadd.f32 %v1171, %v1183
      %v1212 = vadd.f32 %v1172, %v1179
      %v1213 = vadd.f32 %v1173, %v1183
      %v1214 = vmax.f32 %v1186, 0.0
      %v1215 = vmax.f32 %v1187, 0.0
      %v1216 = vmax.f32 %v1188, 0.0
      %v1217 = vmax.f32 %v1189, 0.0
      %v1218 = vmax.f32 %v1190, 0.0
      %v1219 = vmax.f32 %v1191, 0.0
      %v1220 = vmax.f32 %v1192, 0.0
      %v1221 = vmax.f32 %v1193, 0.0
      %v1222 = vmax.f32 %v1194, 0.0
      %v1223 = vmax.f32 %v1195, 0.0
      %v1224 = vmax.f32 %v1196, 0.0
      %v1225 = vmax.f32 %v1197, 0.0
      %v1226 = vmax.f32 %v1198, 0.0
      %v1227 = vmax.f32 %v1199, 0.0
      %v1228 = vmax.f32 %v1200, 0.0
      %v1229 = vmax.f32 %v1201, 0.0
      %v1230 = vmax.f32 %v1202, 0.0
      %v1231 = vmax.f32 %v1203, 0.0
      %v1232 = vmax.f32 %v1204, 0.0
      %v1233 = vmax.f32 %v1205, 0.0
      %v1234 = vmax.f32 %v1206, 0.0
      %v1235 = vmax.f32 %v1207, 0.0
      %v1236 = vmax.f32 %v1208, 0.0
      %v1237 = vmax.f32 %v1209, 0.0
      %v1238 = vmax.f32 %v1210, 0.0
      %v1239 = vmax.f32 %v1211, 0.0
      %v1240 = vmax.f32 %v1212, 0.0
      %v1241 = vmax.f32 %v1213, 0.0
      %v1242 = vand.u32 2147483647, %v1186
      %v1243 = vand.u32 2147483647, %v1187
      %v1244 = vand.u32 2147483647, %v1188
      %v1245 = vand.u32 2147483647, %v1189
      %v1246 = vand.u32 2147483647, %v1190
      %v1247 = vand.u32 2147483647, %v1191
      %v1248 = vand.u32 2147483647, %v1192
      %v1249 = vand.u32 2147483647, %v1193
      %v1250 = vand.u32 2147483647, %v1194
      %v1251 = vand.u32 2147483647, %v1195
      %v1252 = vand.u32 2147483647, %v1196
      %v1253 = vand.u32 2147483647, %v1197
      %v1254 = vand.u32 2147483647, %v1198
      %v1255 = vand.u32 2147483647, %v1199
      %v1256 = vand.u32 2147483647, %v1200
      %v1257 = vand.u32 2147483647, %v1201
      %v1258 = vand.u32 2147483647, %v1202
      %v1259 = vand.u32 2147483647, %v1203
      %v1260 = vand.u32 2147483647, %v1204
      %v1261 = vand.u32 2147483647, %v1205
      %v1262 = vand.u32 2147483647, %v1206
      %v1263 = vand.u32 2147483647, %v1207
      %v1264 = vand.u32 2147483647, %v1208
      %v1265 = vand.u32 2147483647, %v1209
      %v1266 = vand.u32 2147483647, %v1210
      %v1267 = vand.u32 2147483647, %v1211
      %v1268 = vand.u32 2147483647, %v1212
      %v1269 = vand.u32 2147483647, %v1213
      %v1270 = vsub.f32 0.0, %v1242
      %v1271 = vsub.f32 0.0, %v1243
      %v1272 = vsub.f32 0.0, %v1244
      %v1273 = vsub.f32 0.0, %v1245
      %v1274 = vsub.f32 0.0, %v1246
      %v1275 = vsub.f32 0.0, %v1247
      %v1276 = vsub.f32 0.0, %v1248
      %v1277 = vsub.f32 0.0, %v1249
      %v1278 = vsub.f32 0.0, %v1250
      %v1279 = vsub.f32 0.0, %v1251
      %v1280 = vsub.f32 0.0, %v1252
      %v1281 = vsub.f32 0.0, %v1253
      %v1282 = vsub.f32 0.0, %v1254
      %v1283 = vsub.f32 0.0, %v1255
      %v1284 = vsub.f32 0.0, %v1256
      %v1285 = vsub.f32 0.0, %v1257
      %v1286 = vsub.f32 0.0, %v1258
      %v1287 = vsub.f32 0.0, %v1259
      %v1288 = vsub.f32 0.0, %v1260
      %v1289 = vsub.f32 0.0, %v1261
      %v1290 = vsub.f32 0.0, %v1262
      %v1291 = vsub.f32 0.0, %v1263
      %v1292 = vsub.f32 0.0, %v1264
      %v1293 = vsub.f32 0.0, %v1265
      %v1294 = vsub.f32 0.0, %v1266
      %v1295 = vsub.f32 0.0, %v1267
      %v1296 = vsub.f32 0.0, %v1268
      %v1297 = vsub.f32 0.0, %v1269
      %v1298 = vmul.f32 %v1270, 1.442695
      %v1299 = vpow.pop %v1298
      %v1300 = vmul.f32 %v1271, 1.442695
      %v1301 = vpow.pop %v1300
      %v1302 = vmul.f32 %v1272, 1.442695
      %v1303 = vpow.pop %v1302
      %v1304 = vmul.f32 %v1273, 1.442695
      %v1305 = vpow.pop %v1304
      %v1306 = vmul.f32 %v1274, 1.442695
      %v1307 = vpow.pop %v1306
      %v1308 = vmul.f32 %v1275, 1.442695
      %v1309 = vpow.pop %v1308
      %v1310 = vmul.f32 %v1276, 1.442695
      %v1311 = vpow.pop %v1310
      %v1312 = vmul.f32 %v1277, 1.442695
      %v1313 = vpow.pop %v1312
      %v1314 = vmul.f32 %v1278, 1.442695
      %v1315 = vpow.pop %v1314
      %v1316 = vmul.f32 %v1279, 1.442695
      %v1317 = vpow.pop %v1316
      %v1318 = vmul.f32 %v1280, 1.442695
      %v1319 = vpow.pop %v1318
      %v1320 = vmul.f32 %v1281, 1.442695
      %v1321 = vpow.pop %v1320
      %v1322 = vmul.f32 %v1282, 1.442695
      %v1323 = vpow.pop %v1322
      %v1324 = vmul.f32 %v1283, 1.442695
      %v1325 = vpow.pop %v1324
      %v1326 = vmul.f32 %v1284, 1.442695
      %v1327 = vpow.pop %v1326
      %v1328 = vmul.f32 %v1285, 1.442695
      %v1329 = vpow.pop %v1328
      %v1330 = vmul.f32 %v1286, 1.442695
      %v1331 = vpow.pop %v1330
      %v1332 = vmul.f32 %v1287, 1.442695
      %v1333 = vpow.pop %v1332
      %v1334 = vmul.f32 %v1288, 1.442695
      %v1335 = vpow.pop %v1334
      %v1336 = vmul.f32 %v1289, 1.442695
      %v1337 = vpow.pop %v1336
      %v1338 = vmul.f32 %v1290, 1.442695
      %v1339 = vpow.pop %v1338
      %v1340 = vmul.f32 %v1291, 1.442695
      %v1341 = vpow.pop %v1340
      %v1342 = vmul.f32 %v1292, 1.442695
      %v1343 = vpow.pop %v1342
      %v1344 = vmul.f32 %v1293, 1.442695
      %v1345 = vpow.pop %v1344
      %v1346 = vmul.f32 %v1294, 1.442695
      %v1347 = vpow.pop %v1346
      %v1348 = vmul.f32 %v1295, 1.442695
      %v1349 = vpow.pop %v1348
      %v1350 = vmul.f32 %v1296, 1.442695
      %v1351 = vpow.pop %v1350
      %v1352 = vmul.f32 %v1297, 1.442695
      %v1353 = vpow.pop %v1352
      %v1354 = vadd.f32 %v1299, 1.0
      %v1355 = vlog2.pop %v1354
      %v1356 = vmul.f32 %v1355, 0.6931472
      %v1357 = vmul.f32 -0.5, %v1299
      %v1358 = vadd.f32 %v1357, 1.0
      %v1359 = vmul.f32 %v1358, %v1299
      %v1360 = vand.u32 2147483647, %v1299
      %vm1361 = vcmp.lt.f32.partialorder %v1360, 0.0004427343
      %v1362 = vsel %vm1361, %v1359, %v1356
      %v1363 = vadd.f32 %v1301, 1.0
      %v1364 = vlog2.pop %v1363
      %v1365 = vmul.f32 %v1364, 0.6931472
      %v1366 = vmul.f32 -0.5, %v1301
      %v1367 = vadd.f32 %v1366, 1.0
      %v1368 = vmul.f32 %v1367, %v1301
      %v1369 = vand.u32 2147483647, %v1301
      %vm1370 = vcmp.lt.f32.partialorder %v1369, 0.0004427343
      %v1371 = vsel %vm1370, %v1368, %v1365
      %v1372 = vadd.f32 %v1303, 1.0
      %v1373 = vlog2.pop %v1372
      %v1374 = vmul.f32 %v1373, 0.6931472
      %v1375 = vmul.f32 -0.5, %v1303
      %v1376 = vadd.f32 %v1375, 1.0
      %v1377 = vmul.f32 %v1376, %v1303
      %v1378 = vand.u32 2147483647, %v1303
      %vm1379 = vcmp.lt.f32.partialorder %v1378, 0.0004427343
      %v1380 = vsel %vm1379, %v1377, %v1374
      %v1381 = vadd.f32 %v1305, 1.0
      %v1382 = vlog2.pop %v1381
      %v1383 = vmul.f32 %v1382, 0.6931472
      %v1384 = vmul.f32 -0.5, %v1305
      %v1385 = vadd.f32 %v1384, 1.0
      %v1386 = vmul.f32 %v1385, %v1305
      %v1387 = vand.u32 2147483647, %v1305
      %vm1388 = vcmp.lt.f32.partialorder %v1387, 0.0004427343
      %v1389 = vsel %vm1388, %v1386, %v1383
      %v1390 = vadd.f32 %v1307, 1.0
      %v1391 = vlog2.pop %v1390
      %v1392 = vmul.f32 %v1391, 0.6931472
      %v1393 = vmul.f32 -0.5, %v1307
      %v1394 = vadd.f32 %v1393, 1.0
      %v1395 = vmul.f32 %v1394, %v1307
      %v1396 = vand.u32 2147483647, %v1307
      %vm1397 = vcmp.lt.f32.partialorder %v1396, 0.0004427343
      %v1398 = vsel %vm1397, %v1395, %v1392
      %v1399 = vadd.f32 %v1309, 1.0
      %v1400 = vlog2.pop %v1399
      %v1401 = vmul.f32 %v1400, 0.6931472
      %v1402 = vmul.f32 -0.5, %v1309
      %v1403 = vadd.f32 %v1402, 1.0
      %v1404 = vmul.f32 %v1403, %v1309
      %v1405 = vand.u32 2147483647, %v1309
      %vm1406 = vcmp.lt.f32.partialorder %v1405, 0.0004427343
      %v1407 = vsel %vm1406, %v1404, %v1401
      %v1408 = vadd.f32 %v1311, 1.0
      %v1409 = vlog2.pop %v1408
      %v1410 = vmul.f32 %v1409, 0.6931472
      %v1411 = vmul.f32 -0.5, %v1311
      %v1412 = vadd.f32 %v1411, 1.0
      %v1413 = vmul.f32 %v1412, %v1311
      %v1414 = vand.u32 2147483647, %v1311
      %vm1415 = vcmp.lt.f32.partialorder %v1414, 0.0004427343
      %v1416 = vsel %vm1415, %v1413, %v1410
      %v1417 = vadd.f32 %v1313, 1.0
      %v1418 = vlog2.pop %v1417
      %v1419 = vmul.f32 %v1418, 0.6931472
      %v1420 = vmul.f32 -0.5, %v1313
      %v1421 = vadd.f32 %v1420, 1.0
      %v1422 = vmul.f32 %v1421, %v1313
      %v1423 = vand.u32 2147483647, %v1313
      %vm1424 = vcmp.lt.f32.partialorder %v1423, 0.0004427343
      %v1425 = vsel %vm1424, %v1422, %v1419
      %v1426 = vadd.f32 %v1315, 1.0
      %v1427 = vlog2.pop %v1426
      %v1428 = vmul.f32 %v1427, 0.6931472
      %v1429 = vmul.f32 -0.5, %v1315
      %v1430 = vadd.f32 %v1429, 1.0
      %v1431 = vmul.f32 %v1430, %v1315
      %v1432 = vand.u32 2147483647, %v1315
      %vm1433 = vcmp.lt.f32.partialorder %v1432, 0.0004427343
      %v1434 = vsel %vm1433, %v1431, %v1428
      %v1435 = vadd.f32 %v1317, 1.0
      %v1436 = vlog2.pop %v1435
      %v1437 = vmul.f32 %v1436, 0.6931472
      %v1438 = vmul.f32 -0.5, %v1317
      %v1439 = vadd.f32 %v1438, 1.0
      %v1440 = vmul.f32 %v1439, %v1317
      %v1441 = vand.u32 2147483647, %v1317
      %vm1442 = vcmp.lt.f32.partialorder %v1441, 0.0004427343
      %v1443 = vsel %vm1442, %v1440, %v1437
      %v1444 = vadd.f32 %v1319, 1.0
      %v1445 = vlog2.pop %v1444
      %v1446 = vmul.f32 %v1445, 0.6931472
      %v1447 = vmul.f32 -0.5, %v1319
      %v1448 = vadd.f32 %v1447, 1.0
      %v1449 = vmul.f32 %v1448, %v1319
      %v1450 = vand.u32 2147483647, %v1319
      %vm1451 = vcmp.lt.f32.partialorder %v1450, 0.0004427343
      %v1452 = vsel %vm1451, %v1449, %v1446
      %v1453 = vadd.f32 %v1321, 1.0
      %v1454 = vlog2.pop %v1453
      %v1455 = vmul.f32 %v1454, 0.6931472
      %v1456 = vmul.f32 -0.5, %v1321
      %v1457 = vadd.f32 %v1456, 1.0
      %v1458 = vmul.f32 %v1457, %v1321
      %v1459 = vand.u32 2147483647, %v1321
      %vm1460 = vcmp.lt.f32.partialorder %v1459, 0.0004427343
      %v1461 = vsel %vm1460, %v1458, %v1455
      %v1462 = vadd.f32 %v1323, 1.0
      %v1463 = vlog2.pop %v1462
      %v1464 = vmul.f32 %v1463, 0.6931472
      %v1465 = vmul.f32 -0.5, %v1323
      %v1466 = vadd.f32 %v1465, 1.0
      %v1467 = vmul.f32 %v1466, %v1323
      %v1468 = vand.u32 2147483647, %v1323
      %vm1469 = vcmp.lt.f32.partialorder %v1468, 0.0004427343
      %v1470 = vsel %vm1469, %v1467, %v1464
      %v1471 = vadd.f32 %v1325, 1.0
      %v1472 = vlog2.pop %v1471
      %v1473 = vmul.f32 %v1472, 0.6931472
      %v1474 = vmul.f32 -0.5, %v1325
      %v1475 = vadd.f32 %v1474, 1.0
      %v1476 = vmul.f32 %v1475, %v1325
      %v1477 = vand.u32 2147483647, %v1325
      %vm1478 = vcmp.lt.f32.partialorder %v1477, 0.0004427343
      %v1479 = vsel %vm1478, %v1476, %v1473
      %v1480 = vadd.f32 %v1327, 1.0
      %v1481 = vlog2.pop %v1480
      %v1482 = vmul.f32 %v1481, 0.6931472
      %v1483 = vmul.f32 -0.5, %v1327
      %v1484 = vadd.f32 %v1483, 1.0
      %v1485 = vmul.f32 %v1484, %v1327
      %v1486 = vand.u32 2147483647, %v1327
      %vm1487 = vcmp.lt.f32.partialorder %v1486, 0.0004427343
      %v1488 = vsel %vm1487, %v1485, %v1482
      %v1489 = vadd.f32 %v1329, 1.0
      %v1490 = vlog2.pop %v1489
      %v1491 = vmul.f32 %v1490, 0.6931472
      %v1492 = vmul.f32 -0.5, %v1329
      %v1493 = vadd.f32 %v1492, 1.0
      %v1494 = vmul.f32 %v1493, %v1329
      %v1495 = vand.u32 2147483647, %v1329
      %vm1496 = vcmp.lt.f32.partialorder %v1495, 0.0004427343
      %v1497 = vsel %vm1496, %v1494, %v1491
      %v1498 = vadd.f32 %v1331, 1.0
      %v1499 = vlog2.pop %v1498
      %v1500 = vmul.f32 %v1499, 0.6931472
      %v1501 = vmul.f32 -0.5, %v1331
      %v1502 = vadd.f32 %v1501, 1.0
      %v1503 = vmul.f32 %v1502, %v1331
      %v1504 = vand.u32 2147483647, %v1331
      %vm1505 = vcmp.lt.f32.partialorder %v1504, 0.0004427343
      %v1506 = vsel %vm1505, %v1503, %v1500
      %v1507 = vadd.f32 %v1333, 1.0
      %v1508 = vlog2.pop %v1507
      %v1509 = vmul.f32 %v1508, 0.6931472
      %v1510 = vmul.f32 -0.5, %v1333
      %v1511 = vadd.f32 %v1510, 1.0
      %v1512 = vmul.f32 %v1511, %v1333
      %v1513 = vand.u32 2147483647, %v1333
      %vm1514 = vcmp.lt.f32.partialorder %v1513, 0.0004427343
      %v1515 = vsel %vm1514, %v1512, %v1509
      %v1516 = vadd.f32 %v1335, 1.0
      %v1517 = vlog2.pop %v1516
      %v1518 = vmul.f32 %v1517, 0.6931472
      %v1519 = vmul.f32 -0.5, %v1335
      %v1520 = vadd.f32 %v1519, 1.0
      %v1521 = vmul.f32 %v1520, %v1335
      %v1522 = vand.u32 2147483647, %v1335
      %vm1523 = vcmp.lt.f32.partialorder %v1522, 0.0004427343
      %v1524 = vsel %vm1523, %v1521, %v1518
      %v1525 = vadd.f32 %v1337, 1.0
      %v1526 = vlog2.pop %v1525
      %v1527 = vmul.f32 %v1526, 0.6931472
      %v1528 = vmul.f32 -0.5, %v1337
      %v1529 = vadd.f32 %v1528, 1.0
      %v1530 = vmul.f32 %v1529, %v1337
      %v1531 = vand.u32 2147483647, %v1337
      %vm1532 = vcmp.lt.f32.partialorder %v1531, 0.0004427343
      %v1533 = vsel %vm1532, %v1530, %v1527
      %v1534 = vadd.f32 %v1339, 1.0
      %v1535 = vlog2.pop %v1534
      %v1536 = vmul.f32 %v1535, 0.6931472
      %v1537 = vmul.f32 -0.5, %v1339
      %v1538 = vadd.f32 %v1537, 1.0
      %v1539 = vmul.f32 %v1538, %v1339
      %v1540 = vand.u32 2147483647, %v1339
      %vm1541 = vcmp.lt.f32.partialorder %v1540, 0.0004427343
      %v1542 = vsel %vm1541, %v1539, %v1536
      %v1543 = vadd.f32 %v1341, 1.0
      %v1544 = vlog2.pop %v1543
      %v1545 = vmul.f32 %v1544, 0.6931472
      %v1546 = vmul.f32 -0.5, %v1341
      %v1547 = vadd.f32 %v1546, 1.0
      %v1548 = vmul.f32 %v1547, %v1341
      %v1549 = vand.u32 2147483647, %v1341
      %vm1550 = vcmp.lt.f32.partialorder %v1549, 0.0004427343
      %v1551 = vsel %vm1550, %v1548, %v1545
      %v1552 = vadd.f32 %v1343, 1.0
      %v1553 = vlog2.pop %v1552
      %v1554 = vmul.f32 %v1553, 0.6931472
      %v1555 = vmul.f32 -0.5, %v1343
      %v1556 = vadd.f32 %v1555, 1.0
      %v1557 = vmul.f32 %v1556, %v1343
      %v1558 = vand.u32 2147483647, %v1343
      %vm1559 = vcmp.lt.f32.partialorder %v1558, 0.0004427343
      %v1560 = vsel %vm1559, %v1557, %v1554
      %v1561 = vadd.f32 %v1345, 1.0
      %v1562 = vlog2.pop %v1561
      %v1563 = vmul.f32 %v1562, 0.6931472
      %v1564 = vmul.f32 -0.5, %v1345
      %v1565 = vadd.f32 %v1564, 1.0
      %v1566 = vmul.f32 %v1565, %v1345
      %v1567 = vand.u32 2147483647, %v1345
      %vm1568 = vcmp.lt.f32.partialorder %v1567, 0.0004427343
      %v1569 = vsel %vm1568, %v1566, %v1563
      %v1570 = vadd.f32 %v1347, 1.0
      %v1571 = vlog2.pop %v1570
      %v1572 = vmul.f32 %v1571, 0.6931472
      %v1573 = vmul.f32 -0.5, %v1347
      %v1574 = vadd.f32 %v1573, 1.0
      %v1575 = vmul.f32 %v1574, %v1347
      %v1576 = vand.u32 2147483647, %v1347
      %vm1577 = vcmp.lt.f32.partialorder %v1576, 0.0004427343
      %v1578 = vsel %vm1577, %v1575, %v1572
      %v1579 = vadd.f32 %v1349, 1.0
      %v1580 = vlog2.pop %v1579
      %v1581 = vmul.f32 %v1580, 0.6931472
      %v1582 = vmul.f32 -0.5, %v1349
      %v1583 = vadd.f32 %v1582, 1.0
      %v1584 = vmul.f32 %v1583, %v1349
      %v1585 = vand.u32 2147483647, %v1349
      %vm1586 = vcmp.lt.f32.partialorder %v1585, 0.0004427343
      %v1587 = vsel %vm1586, %v1584, %v1581
      %v1588 = vadd.f32 %v1351, 1.0
      %v1589 = vlog2.pop %v1588
      %v1590 = vmul.f32 %v1589, 0.6931472
      %v1591 = vmul.f32 -0.5, %v1351
      %v1592 = vadd.f32 %v1591, 1.0
      %v1593 = vmul.f32 %v1592, %v1351
      %v1594 = vand.u32 2147483647, %v1351
      %vm1595 = vcmp.lt.f32.partialorder %v1594, 0.0004427343
      %v1596 = vsel %vm1595, %v1593, %v1590
      %v1597 = vadd.f32 %v1353, 1.0
      %v1598 = vlog2.pop %v1597
      %v1599 = vmul.f32 %v1598, 0.6931472
      %v1600 = vmul.f32 -0.5, %v1353
      %v1601 = vadd.f32 %v1600, 1.0
      %v1602 = vmul.f32 %v1601, %v1353
      %v1603 = vand.u32 2147483647, %v1353
      %vm1604 = vcmp.lt.f32.partialorder %v1603, 0.0004427343
      %v1605 = vsel %vm1604, %v1602, %v1599
      %v1606 = vadd.f32 %v1214, %v1362
      %v1607 = vadd.f32 %v1215, %v1371
      %v1608 = vadd.f32 %v1216, %v1380
      %v1609 = vadd.f32 %v1217, %v1389
      %v1610 = vadd.f32 %v1218, %v1398
      %v1611 = vadd.f32 %v1219, %v1407
      %v1612 = vadd.f32 %v1220, %v1416
      %v1613 = vadd.f32 %v1221, %v1425
      %v1614 = vadd.f32 %v1222, %v1434
      %v1615 = vadd.f32 %v1223, %v1443
      %v1616 = vadd.f32 %v1224, %v1452
      %v1617 = vadd.f32 %v1225, %v1461
      %v1618 = vadd.f32 %v1226, %v1470
      %v1619 = vadd.f32 %v1227, %v1479
      %v1620 = vadd.f32 %v1228, %v1488
      %v1621 = vadd.f32 %v1229, %v1497
      %v1622 = vadd.f32 %v1230, %v1506
      %v1623 = vadd.f32 %v1231, %v1515
      %v1624 = vadd.f32 %v1232, %v1524
      %v1625 = vadd.f32 %v1233, %v1533
      %v1626 = vadd.f32 %v1234, %v1542
      %v1627 = vadd.f32 %v1235, %v1551
      %v1628 = vadd.f32 %v1236, %v1560
      %v1629 = vadd.f32 %v1237, %v1569
      %v1630 = vadd.f32 %v1238, %v1578
      %v1631 = vadd.f32 %v1239, %v1587
      %v1632 = vadd.f32 %v1240, %v1596
      %v1633 = vadd.f32 %v1241, %v1605
      %v1634 = vsub.f32 %v1606, 0.6931472
      %v1635 = vsub.f32 %v1607, 0.6931472
      %v1636 = vsub.f32 %v1608, 0.6931472
      %v1637 = vsub.f32 %v1609, 0.6931472
      %v1638 = vsub.f32 %v1610, 0.6931472
      %v1639 = vsub.f32 %v1611, 0.6931472
      %v1640 = vsub.f32 %v1612, 0.6931472
      %v1641 = vsub.f32 %v1613, 0.6931472
      %v1642 = vsub.f32 %v1614, 0.6931472
      %v1643 = vsub.f32 %v1615, 0.6931472
      %v1644 = vsub.f32 %v1616, 0.6931472
      %v1645 = vsub.f32 %v1617, 0.6931472
      %v1646 = vsub.f32 %v1618, 0.6931472
      %v1647 = vsub.f32 %v1619, 0.6931472
      %v1648 = vsub.f32 %v1620, 0.6931472
      %v1649 = vsub.f32 %v1621, 0.6931472
      %v1650 = vsub.f32 %v1622, 0.6931472
      %v1651 = vsub.f32 %v1623, 0.6931472
      %v1652 = vsub.f32 %v1624, 0.6931472
      %v1653 = vsub.f32 %v1625, 0.6931472
      %v1654 = vsub.f32 %v1626, 0.6931472
      %v1655 = vsub.f32 %v1627, 0.6931472
      %v1656 = vsub.f32 %v1628, 0.6931472
      %v1657 = vsub.f32 %v1629, 0.6931472
      %v1658 = vsub.f32 %v1630, 0.6931472
      %v1659 = vsub.f32 %v1631, 0.6931472
      %v1660 = vsub.f32 %v1632, 0.6931472
      %v1661 = vsub.f32 %v1633, 0.6931472
      %v1662 = vpack.c.bf16 %v1636, %v1634
      %v1663 = vpack.c.bf16 %v1637, %v1635
      %v1664 = vpack.c.bf16 %v1640, %v1638
      %v1665 = vpack.c.bf16 %v1641, %v1639
      %v1666 = vpack.c.bf16 %v1644, %v1642
      %v1667 = vpack.c.bf16 %v1645, %v1643
      %v1668 = vpack.c.bf16 %v1648, %v1646
      %v1669 = vpack.c.bf16 %v1649, %v1647
      %v1670 = vpack.c.bf16 %v1652, %v1650
      %v1671 = vpack.c.bf16 %v1653, %v1651
      %v1672 = vpack.c.bf16 %v1656, %v1654
      %v1673 = vpack.c.bf16 %v1657, %v1655
      %v1674 = vpack.c.bf16 %v1660, %v1658
      %v1675 = vpack.c.bf16 %v1661, %v1659
      %v1676 = vld [vmem:[%s7] sm:$0xf]
      %v1677 = vld [vmem:[%s7 + $0x4] sm:$0xf]
      %v1678 = vld [vmem:[%s7 + $0x8] sm:$0xf]
      %v1679 = vld [vmem:[%s7 + $0xc] sm:$0xf]
      %v1680 = vld [vmem:[%s7 + $0x10] sm:$0xf]
      %v1681 = vld [vmem:[%s7 + $0x14] sm:$0xf]
      %v1682 = vld [vmem:[%s7 + $0x18] sm:$0xf]
      %v1683 = vld [vmem:[%s7 + $0x1c] sm:$0xf]
      %v1684 = vld [vmem:[%s7 + $0x20] sm:$0xf]
      %v1685 = vld [vmem:[%s7 + $0x24] sm:$0xf]
      %v1686 = vld [vmem:[%s7 + $0x28] sm:$0xf]
      %v1687 = vld [vmem:[%s7 + $0x2c] sm:$0xf]
      %v1688 = vld [vmem:[%s7 + $0x30] sm:$0xf]
      %v1689 = vld [vmem:[%s7 + $0x34] sm:$0xf]
      %v1690 = vld [vmem:[%s7 + $0x38] sm:$0xf]
      %v1691 = vld [vmem:[%s7 + $0x3c] sm:$0xf]
      %v1692 = vld [vmem:[%s7 + $0x40] sm:$0xf]
      %v1693 = vld [vmem:[%s7 + $0x44] sm:$0xf]
      %v1694 = vld [vmem:[%s7 + $0x48] sm:$0xf]
      %v1695 = vld [vmem:[%s7 + $0x4c] sm:$0xf]
      %v1696 = vld [vmem:[%s7 + $0x50] sm:$0xf]
      %v1697 = vld [vmem:[%s7 + $0x54] sm:$0xf]
      %v1698 = vld [vmem:[%s7 + $0x58] sm:$0xf]
      %v1699 = vld [vmem:[%s7 + $0x5c] sm:$0xf]
      %v1700 = vld [vmem:[%s8] sm:$0x1]
      %v1702 = vlaneseq
      %v1703 = vshrl.u32 %v1702, 7
      %v1704 = vsub.s32 0, %v1703
      %v1705 = vrot.slane %v1700, %v1704
      %v1731 = vunpack.c.l.b16 %v1676
      %v1732 = vunpack.c.l.b16 %v1677
      %v1733 = vunpack.c.l.b16 %v1678
      %v1734 = vunpack.c.l.b16 %v1679
      %v1735 = vunpack.c.l.b16 %v1680
      %v1736 = vunpack.c.l.b16 %v1681
      %v1737 = vunpack.c.l.b16 %v1682
      %v1738 = vunpack.c.l.b16 %v1683
      %v1739 = vunpack.c.l.b16 %v1684
      %v1740 = vunpack.c.l.b16 %v1685
      %v1741 = vunpack.c.l.b16 %v1686
      %v1742 = vunpack.c.l.b16 %v1687
      %v1743 = vunpack.c.l.b16 %v1688
      %v1744 = vunpack.c.l.b16 %v1689
      %v1745 = vunpack.c.l.b16 %v1690
      %v1746 = vunpack.c.l.b16 %v1691
      %v1747 = vunpack.c.l.b16 %v1692
      %v1748 = vunpack.c.l.b16 %v1693
      %v1749 = vunpack.c.l.b16 %v1694
      %v1750 = vunpack.c.l.b16 %v1695
      %v1751 = vunpack.c.l.b16 %v1696
      %v1752 = vunpack.c.l.b16 %v1697
      %v1753 = vunpack.c.l.b16 %v1698
      %v1754 = vunpack.c.l.b16 %v1699
      %v1755 = vpack.c.b16 %v1732, %v1731
      %v1756 = vpack.c.b16 %v1734, %v1733
      %v1757 = vpack.c.b16 %v1736, %v1735
      %v1758 = vpack.c.b16 %v1738, %v1737
      %v1759 = vpack.c.b16 %v1740, %v1739
      %v1760 = vpack.c.b16 %v1742, %v1741
      %v1761 = vpack.c.b16 %v1744, %v1743
      %v1762 = vpack.c.b16 %v1746, %v1745
      %v1763 = vpack.c.b16 %v1748, %v1747
      %v1764 = vpack.c.b16 %v1750, %v1749
      %v1765 = vpack.c.b16 %v1752, %v1751
      %v1766 = vpack.c.b16 %v1754, %v1753
      %vm1779 = vcmask 523264
      %v1781 = vsel %vm1779, %v1663, 0
      %v1784 = vsel %vm1779, %v1665, 0
      %v1787 = vsel %vm1779, %v1667, 0
      %v1790 = vsel %vm1779, %v1669, 0
      %v1793 = vsel %vm1779, %v1671, 0
      %v1796 = vsel %vm1779, %v1673, 0
      %v1799 = vsel %vm1779, %v1675, 0
      %1801 = vmatprep.subr.bf16.mxu0 0
      %1802 = vmatpush1.bf16.msra.mxu0 %v1762
      %1803 = vmatprep.subr.bf16.mxu0 0
      %1804 = vmatpush1.bf16.msra.mxu0 %v1761
      %1805 = vmatprep.subr.bf16.mxu0 0
      %1806 = vmatpush1.bf16.msra.mxu0 %v1760
      %1807 = vmatprep.subr.bf16.mxu0 0
      %1808 = vmatpush1.bf16.msra.mxu0 %v1759
      %1809 = vmatprep.subr.bf16.mxu0 0
      %1810 = vmatpush1.bf16.msra.mxu0 %v1758
      %1811 = vmatprep.subr.bf16.mxu0 0
      %1812 = vmatpush1.bf16.msra.mxu0 %v1757
      %1813 = vmatprep.subr.bf16.mxu0 0
      %1814 = vmatpush1.bf16.msra.mxu0 %v1756
      %1815 = vmatprep.subr.bf16.mxu0 0
      %1816 = vmatpush1.bf16.msra.mxu0 %v1755
      %1817 = vmatprep.subr.bf16.mxu0 0
      %1818 = vmatpush2.bf16.msra.mxu0 0
      %1819 = vmatprep.subr.bf16.mxu0 0
      %1820 = vmatpush2.bf16.msra.mxu0 0
      %1821 = vmatprep.subr.bf16.mxu0 0
      %1822 = vmatpush2.bf16.msra.mxu0 0
      %1823 = vmatprep.subr.bf16.mxu0 0
      %1824 = vmatpush2.bf16.msra.mxu0 0
      %1825 = vmatprep.subr.bf16.mxu0 0
      %1826 = vmatpush2.bf16.msra.mxu0 %v1766
      %1827 = vmatprep.subr.bf16.mxu0 0
      %1828 = vmatpush2.bf16.msra.mxu0 %v1765
      %1829 = vmatprep.subr.bf16.mxu0 0
      %1830 = vmatpush2.bf16.msra.mxu0 %v1764
      %1831 = vmatprep.subr.bf16.mxu0 0
      %1832 = vmatpush2.bf16.msra.mxu0 %v1763
      %1833 = vmatprep.mubr.bf16.mxu0 %v1781
      %1834 = vmatmul.mubr.bf16.gmra.mxu0 %v1662
      %v1835 = vpop.f32.mrf.mxu0
      %v1836 = vadd.f32 %v1705, %v1835
      %v1837 = vpop.f32.mrf.mxu0
      %v1838 = vpop.f32.mrf.mxu0
      %v1839 = vadd.f32 %v1705, %v1838
      %v1840 = vpop.f32.mrf.mxu0
      %1841 = vmatprep.mubr.bf16.mxu0 %v1784
      %1842 = vmatmul.mubr.bf16.gmra.mxu0 %v1664
      %v1843 = vpop.f32.mrf.mxu0
      %v1844 = vadd.f32 %v1705, %v1843
      %v1845 = vpop.f32.mrf.mxu0
      %v1846 = vpop.f32.mrf.mxu0
      %v1847 = vadd.f32 %v1705, %v1846
      %v1848 = vpop.f32.mrf.mxu0
      %1849 = vmatprep.mubr.bf16.mxu0 %v1787
      %1850 = vmatmul.mubr.bf16.gmra.mxu0 %v1666
      %v1851 = vpop.f32.mrf.mxu0
      %v1852 = vadd.f32 %v1705, %v1851
      %v1853 = vpop.f32.mrf.mxu0
      %v1854 = vpop.f32.mrf.mxu0
      %v1855 = vadd.f32 %v1705, %v1854
      %v1856 = vpop.f32.mrf.mxu0
      %1857 = vmatprep.mubr.bf16.mxu0 %v1790
      %1858 = vmatmul.mubr.bf16.gmra.mxu0 %v1668
      %v1859 = vpop.f32.mrf.mxu0
      %v1860 = vadd.f32 %v1705, %v1859
      %v1861 = vpop.f32.mrf.mxu0
      %v1862 = vpop.f32.mrf.mxu0
      %v1863 = vadd.f32 %v1705, %v1862
      %v1864 = vpop.f32.mrf.mxu0
      %1865 = vmatprep.mubr.bf16.mxu0 %v1793
      %1866 = vmatmul.mubr.bf16.gmra.mxu0 %v1670
      %v1867 = vpop.f32.mrf.mxu0
      %v1868 = vadd.f32 %v1705, %v1867
      %v1869 = vpop.f32.mrf.mxu0
      %v1870 = vpop.f32.mrf.mxu0
      %v1871 = vadd.f32 %v1705, %v1870
      %v1872 = vpop.f32.mrf.mxu0
      %1873 = vmatprep.mubr.bf16.mxu0 %v1796
      %1874 = vmatmul.mubr.bf16.gmra.mxu0 %v1672
      %v1875 = vpop.f32.mrf.mxu0
      %v1876 = vadd.f32 %v1705, %v1875
      %v1877 = vpop.f32.mrf.mxu0
      %v1878 = vpop.f32.mrf.mxu0
      %v1879 = vadd.f32 %v1705, %v1878
      %v1880 = vpop.f32.mrf.mxu0
      %1881 = vmatprep.mubr.bf16.mxu0 %v1799
      %1882 = vmatmul.mubr.bf16.gmra.mxu0 %v1674
      %v1883 = vpop.f32.mrf.mxu0
      %v1884 = vadd.f32 %v1705, %v1883
      %v1885 = vpop.f32.mrf.mxu0
      %v1886 = vpop.f32.mrf.mxu0
      %v1887 = vadd.f32 %v1705, %v1886
      %v1888 = vpop.f32.mrf.mxu0
      %1889 = vdwg.mxu0
      %vm1890 = vcmask 39936
      %1891 = vst.msk [vmem:[%s378] sm:$0xff] %vm1890, %v1836
      %1892 = vst.msk [vmem:[%s378 + $0x8] sm:$0xff] %vm1890, %v1839
      %1893 = vst.msk [vmem:[%s378 + $0x10] sm:$0xff] %vm1890, %v1844
      %1894 = vst.msk [vmem:[%s378 + $0x18] sm:$0xff] %vm1890, %v1847
      %1895 = vst.msk [vmem:[%s378 + $0x20] sm:$0xff] %vm1890, %v1852
      %1896 = vst.msk [vmem:[%s378 + $0x28] sm:$0xff] %vm1890, %v1855
      %1897 = vst.msk [vmem:[%s378 + $0x30] sm:$0xff] %vm1890, %v1860
      %1898 = vst.msk [vmem:[%s378 + $0x38] sm:$0xff] %vm1890, %v1863
      %1899 = vst.msk [vmem:[%s378 + $0x40] sm:$0xff] %vm1890, %v1868
      %1900 = vst.msk [vmem:[%s378 + $0x48] sm:$0xff] %vm1890, %v1871
      %1901 = vst.msk [vmem:[%s378 + $0x50] sm:$0xff] %vm1890, %v1876
      %1902 = vst.msk [vmem:[%s378 + $0x58] sm:$0xff] %vm1890, %v1879
      %1903 = vst.msk [vmem:[%s378 + $0x60] sm:$0xff] %vm1890, %v1884
      %1904 = vst.msk [vmem:[%s378 + $0x68] sm:$0xff] %vm1890, %v1887
      %s1905 = smul.u32 14, %s20
      %p1906 = scmp.lt.s32.totalorder %s1905, 27
      %s1907 = scalar_select %p1906, %s1905, 27
      %s1908 = smul.addr %s1907, 8
      %s1909 = scalar_lea.vmem %s9, %s1908
      // Predicated region
      $region57: #{tpu_custom_call.1} parent=55 // pred_check
        %p1910 = pneg %p242
      $region58: #{tpu_custom_call.1} parent=55 // pred_check_branch
        %1912 = sbr.rel (%p1910) target = $region60
      $region59: #{tpu_custom_call.1} parent=55 // pred_region
        %s1913 = smul.u32 14, %s20
      $region60: #{tpu_custom_call.1} parent=55 // pred_fallthru
        _
    $region56: #{tpu_custom_call.1} parent=5 // pred_fallthru
      _
    %p1914 = scmp.le.s32.totalorder 2, %s15
    // Predicated region
    $region61: #{tpu_custom_call.1} parent=5 // pred_check
      %p1915 = pneg %p1914
    $region62: #{tpu_custom_call.1} parent=5 // pred_check_branch
      %1917 = sbr.rel (%p1915) target = $region64
    $region63: #{tpu_custom_call.1} parent=5 // pred_region
      %s1918 = ssub.s32 %s15, 2
      // Predicated region
      $region65: #{tpu_custom_call.1} parent=63 // pred_check
        %p1919 = pneg %p248
      $region66: #{tpu_custom_call.1} parent=63 // pred_check_branch
        %1921 = sbr.rel (%p1919) target = $region68
      $region67: #{tpu_custom_call.1} parent=63 // pred_region
        %s1922 = smul.u32 14, %s21
        %p1923 = scmp.lt.s32.totalorder %s1922, 27
        %s1924 = scalar_select %p1923, %s1922, 27
        %s1925 = smul.addr %s1924, 8
        %s1926 = scalar_lea.vmem %s9, %s1925
      $region68: #{tpu_custom_call.1} parent=63 // pred_fallthru
        _
    $region64: #{tpu_custom_call.1} parent=5 // pred_fallthru
      _
  $region6: #{tpu_custom_call.1} parent=0 // loop_footer
    %s19 = sadd.s32 1, %s15
  $region7: #{tpu_custom_call.1} parent=0 // loop_footer_branch
    %14 = sbr.rel target = $region3
  $region8: #{tpu_custom_call.1} parent=0 // loop_exit
    _

// kernel: tpu_custom_call.1
$region0: #{tpu_custom_call.1}
  #allocation0 [shape = 'u32[]', space=smem, size = 0x4, offset = 0x4, fixed_abs, tag = 'smem constant byte address 0x4 - core index']
  #allocation1 [shape = 'u32[144,128]{1,0:T(1,128)}', space=vmem, size = 0x12000, scoped, tag = 'internal scratch']
  %s0 = inlined_call_operand.vmem [shape: bf16[224,128], index: 0, kind: input, shape index: {}]
  %s1 = inlined_call_operand.vmem [shape: bf16[224,128], index: 1, kind: input, shape index: {}]
  %s2 = inlined_call_operand.vmem [shape: bf16[224,128], index: 2, kind: input, shape index: {}]
  %s3 = inlined_call_operand.vmem [shape: bf16[128,192], index: 3, kind: input, shape index: {}]
  %s4 = inlined_call_operand.vmem [shape: bf16[128,192], index: 4, kind: input, shape index: {}]
  %s5 = inlined_call_operand.vmem [shape: bf16[128,192], index: 5, kind: input, shape index: {}]
  %s6 = inlined_call_operand.vmem [shape: f32[1,192], index: 6, kind: input, shape index: {}]
  %s7 = inlined_call_operand.vmem [shape: bf16[192,5], index: 7, kind: input, shape index: {}]
  %s8 = inlined_call_operand.vmem [shape: f32[1,5], index: 8, kind: input, shape index: {}]
  %s9 = inlined_call_operand.vmem [shape: f32[224,5], index: 9, kind: output, shape index: {}]
  %s10 = sld [smem:[#allocation0]]
  $region69: #{tpu_custom_call.1} parent=0
    _
  %s12 = ssub.s32 1, %s10
  %s13 = scalar_select 0, %s12, %s10
  loop: start=0, step=1, limit=4
  $region2: #{tpu_custom_call.1} parent=0 // loop_pre_header
    _
  $region3: #{tpu_custom_call.1} parent=0 // loop_header
    %s15 = sphi 0, %s19
    %p16 = scmp.ge.s32.totalorder %s15, 4
    %s25 = sphi 0, %s27
    %s28 = sphi 0, %s25
    %s29 = sphi 0, %s28
    %s45 = sphi 0, %s29
    %s51 = sphi 0, %s53
    %s54 = sphi 0, %s51
    %s55 = sphi 0, %s54
    %s71 = sphi 0, %s55
    %s77 = sphi 0, %s79
    %s80 = sphi 0, %s77
    %s81 = sphi 0, %s80
    %s97 = sphi 0, %s81
    %s101 = sphi 0, %s101
    %s103 = sphi 0, %s101
    %s104 = sphi 0, %s103
    %s118 = sphi 0, %s104
    %s122 = sphi 0, %s122
    %s124 = sphi 0, %s122
    %s125 = sphi 0, %s124
    %s139 = sphi 0, %s125
    %s143 = sphi 0, %s143
    %s145 = sphi 0, %s143
    %s146 = sphi 0, %s145
    %s160 = sphi 0, %s146
    %s164 = sphi 0, %s164
    %s166 = sphi 0, %s164
    %s167 = sphi 0, %s166
    %s181 = sphi 0, %s167
    %s185 = sphi 0, %s185
    %s187 = sphi 0, %s185
    %s188 = sphi 0, %s187
    %s202 = sphi 0, %s188
    %s206 = sphi 0, %s206
    %s208 = sphi 0, %s206
    %s209 = sphi 0, %s208
    %s223 = sphi 0, %s209
    %s229 = sphi 0, %s231
    %s232 = sphi 0, %s229
    %s233 = sphi 0, %s232
    %s249 = sphi 0, %s233
  $region4: #{tpu_custom_call.1} parent=0 // loop_header_branch
    %18 = sbr.rel (%p16) target = $region8
  $region5: #{tpu_custom_call.1} parent=0 // loop_body
    %s20 = ssub.s32 %s15, 1
    %s21 = ssub.s32 %s15, 2
    %s22 = sadd.s32 %s15, 1
    %s23 = ssub.s32 %s15, %s22
    %p24 = scmp.eq.s32.totalorder %s23, 0
    %s26 = sadd.s32 %s25, 1
    %s27 = scalar_select %p24, %s25, %s26
    %p30 = pneg %p24
    %p31 = scmp.eq.s32.totalorder %s15, 1
    %p32 = por %p30, %p31
    %p33 = scmp.ne.s32.totalorder %s25, %s28
    %p34 = scmp.eq.s32.totalorder %s15, 0
    %p35 = por %p33, %p34
    %p36 = scmp.ne.s32.totalorder %s25, %s28
    %p37 = scmp.eq.s32.totalorder %s20, 1
    %p38 = por %p36, %p37
    %p39 = scmp.ne.s32.totalorder %s28, %s29
    %p40 = scmp.eq.s32.totalorder %s20, 0
    %p41 = por %p39, %p40
    %p42 = scmp.ne.s32.totalorder %s28, %s29
    %p43 = scmp.eq.s32.totalorder %s21, 1
    %p44 = por %p42, %p43
    %p46 = scmp.ne.s32.totalorder %s29, %s45
    %p47 = scmp.eq.s32.totalorder %s21, 0
    %p48 = por %p46, %p47
    %s49 = ssub.s32 %s15, %s22
    %p50 = scmp.eq.s32.totalorder %s49, 0
    %s52 = sadd.s32 %s51, 1
    %s53 = scalar_select %p50, %s51, %s52
    %p56 = pneg %p50
    %p57 = scmp.eq.s32.totalorder %s15, 1
    %p58 = por %p56, %p57
    %p59 = scmp.ne.s32.totalorder %s51, %s54
    %p60 = scmp.eq.s32.totalorder %s15, 0
    %p61 = por %p59, %p60
    %p62 = scmp.ne.s32.totalorder %s51, %s54
    %p63 = scmp.eq.s32.totalorder %s20, 1
    %p64 = por %p62, %p63
    %p65 = scmp.ne.s32.totalorder %s54, %s55
    %p66 = scmp.eq.s32.totalorder %s20, 0
    %p67 = por %p65, %p66
    %p68 = scmp.ne.s32.totalorder %s54, %s55
    %p69 = scmp.eq.s32.totalorder %s21, 1
    %p70 = por %p68, %p69
    %p72 = scmp.ne.s32.totalorder %s55, %s71
    %p73 = scmp.eq.s32.totalorder %s21, 0
    %p74 = por %p72, %p73
    %s75 = ssub.s32 %s15, %s22
    %p76 = scmp.eq.s32.totalorder %s75, 0
    %s78 = sadd.s32 %s77, 1
    %s79 = scalar_select %p76, %s77, %s78
    %p82 = pneg %p76
    %p83 = scmp.eq.s32.totalorder %s15, 1
    %p84 = por %p82, %p83
    %p85 = scmp.ne.s32.totalorder %s77, %s80
    %p86 = scmp.eq.s32.totalorder %s15, 0
    %p87 = por %p85, %p86
    %p88 = scmp.ne.s32.totalorder %s77, %s80
    %p89 = scmp.eq.s32.totalorder %s20, 1
    %p90 = por %p88, %p89
    %p91 = scmp.ne.s32.totalorder %s80, %s81
    %p92 = scmp.eq.s32.totalorder %s20, 0
    %p93 = por %p91, %p92
    %p94 = scmp.ne.s32.totalorder %s80, %s81
    %p95 = scmp.eq.s32.totalorder %s21, 1
    %p96 = por %p94, %p95
    %p98 = scmp.ne.s32.totalorder %s81, %s97
    %p99 = scmp.eq.s32.totalorder %s21, 0
    %p100 = por %p98, %p99
    %s102 = sadd.s32 %s101, 1
    %p105 = scmp.eq.s32.totalorder %s15, 1
    %p106 = scmp.ne.s32.totalorder %s101, %s103
    %p107 = scmp.eq.s32.totalorder %s15, 0
    %p108 = por %p106, %p107
    %p109 = scmp.ne.s32.totalorder %s101, %s103
    %p110 = scmp.eq.s32.totalorder %s20, 1
    %p111 = por %p109, %p110
    %p112 = scmp.ne.s32.totalorder %s103, %s104
    %p113 = scmp.eq.s32.totalorder %s20, 0
    %p114 = por %p112, %p113
    %p115 = scmp.ne.s32.totalorder %s103, %s104
    %p116 = scmp.eq.s32.totalorder %s21, 1
    %p117 = por %p115, %p116
    %p119 = scmp.ne.s32.totalorder %s104, %s118
    %p120 = scmp.eq.s32.totalorder %s21, 0
    %p121 = por %p119, %p120
    %s123 = sadd.s32 %s122, 1
    %p126 = scmp.eq.s32.totalorder %s15, 1
    %p127 = scmp.ne.s32.totalorder %s122, %s124
    %p128 = scmp.eq.s32.totalorder %s15, 0
    %p129 = por %p127, %p128
    %p130 = scmp.ne.s32.totalorder %s122, %s124
    %p131 = scmp.eq.s32.totalorder %s20, 1
    %p132 = por %p130, %p131
    %p133 = scmp.ne.s32.totalorder %s124, %s125
    %p134 = scmp.eq.s32.totalorder %s20, 0
    %p135 = por %p133, %p134
    %p136 = scmp.ne.s32.totalorder %s124, %s125
    %p137 = scmp.eq.s32.totalorder %s21, 1
    %p138 = por %p136, %p137
    %p140 = scmp.ne.s32.totalorder %s125, %s139
    %p141 = scmp.eq.s32.totalorder %s21, 0
    %p142 = por %p140, %p141
    %s144 = sadd.s32 %s143, 1
    %p147 = scmp.eq.s32.totalorder %s15, 1
    %p148 = scmp.ne.s32.totalorder %s143, %s145
    %p149 = scmp.eq.s32.totalorder %s15, 0
    %p150 = por %p148, %p149
    %p151 = scmp.ne.s32.totalorder %s143, %s145
    %p152 = scmp.eq.s32.totalorder %s20, 1
    %p153 = por %p151, %p152
    %p154 = scmp.ne.s32.totalorder %s145, %s146
    %p155 = scmp.eq.s32.totalorder %s20, 0
    %p156 = por %p154, %p155
    %p157 = scmp.ne.s32.totalorder %s145, %s146
    %p158 = scmp.eq.s32.totalorder %s21, 1
    %p159 = por %p157, %p158
    %p161 = scmp.ne.s32.totalorder %s146, %s160
    %p162 = scmp.eq.s32.totalorder %s21, 0
    %p163 = por %p161, %p162
    %s165 = sadd.s32 %s164, 1
    %p168 = scmp.eq.s32.totalorder %s15, 1
    %p169 = scmp.ne.s32.totalorder %s164, %s166
    %p170 = scmp.eq.s32.totalorder %s15, 0
    %p171 = por %p169, %p170
    %p172 = scmp.ne.s32.totalorder %s164, %s166
    %p173 = scmp.eq.s32.totalorder %s20, 1
    %p174 = por %p172, %p173
    %p175 = scmp.ne.s32.totalorder %s166, %s167
    %p176 = scmp.eq.s32.totalorder %s20, 0
    %p177 = por %p175, %p176
    %p178 = scmp.ne.s32.totalorder %s166, %s167
    %p179 = scmp.eq.s32.totalorder %s21, 1
    %p180 = por %p178, %p179
    %p182 = scmp.ne.s32.totalorder %s167, %s181
    %p183 = scmp.eq.s32.totalorder %s21, 0
    %p184 = por %p182, %p183
    %s186 = sadd.s32 %s185, 1
    %p189 = scmp.eq.s32.totalorder %s15, 1
    %p190 = scmp.ne.s32.totalorder %s185, %s187
    %p191 = scmp.eq.s32.totalorder %s15, 0
    %p192 = por %p190, %p191
    %p193 = scmp.ne.s32.totalorder %s185, %s187
    %p194 = scmp.eq.s32.totalorder %s20, 1
    %p195 = por %p193, %p194
    %p196 = scmp.ne.s32.totalorder %s187, %s188
    %p197 = scmp.eq.s32.totalorder %s20, 0
    %p198 = por %p196, %p197
    %p199 = scmp.ne.s32.totalorder %s187, %s188
    %p200 = scmp.eq.s32.totalorder %s21, 1
    %p201 = por %p199, %p200
    %p203 = scmp.ne.s32.totalorder %s188, %s202
    %p204 = scmp.eq.s32.totalorder %s21, 0
    %p205 = por %p203, %p204
    %s207 = sadd.s32 %s206, 1
    %p210 = scmp.eq.s32.totalorder %s15, 1
    %p211 = scmp.ne.s32.totalorder %s206, %s208
    %p212 = scmp.eq.s32.totalorder %s15, 0
    %p213 = por %p211, %p212
    %p214 = scmp.ne.s32.totalorder %s206, %s208
    %p215 = scmp.eq.s32.totalorder %s20, 1
    %p216 = por %p214, %p215
    %p217 = scmp.ne.s32.totalorder %s208, %s209
    %p218 = scmp.eq.s32.totalorder %s20, 0
    %p219 = por %p217, %p218
    %p220 = scmp.ne.s32.totalorder %s208, %s209
    %p221 = scmp.eq.s32.totalorder %s21, 1
    %p222 = por %p220, %p221
    %p224 = scmp.ne.s32.totalorder %s209, %s223
    %p225 = scmp.eq.s32.totalorder %s21, 0
    %p226 = por %p224, %p225
    %s227 = ssub.s32 %s15, %s22
    %p228 = scmp.eq.s32.totalorder %s227, 0
    %s230 = sadd.s32 %s229, 1
    %s231 = scalar_select %p228, %s229, %s230
    %p234 = pneg %p228
    %p235 = scmp.eq.s32.totalorder %s15, 1
    %p236 = por %p234, %p235
    %p237 = scmp.ne.s32.totalorder %s229, %s232
    %p238 = scmp.eq.s32.totalorder %s15, 0
    %p239 = por %p237, %p238
    %p240 = scmp.ne.s32.totalorder %s229, %s232
    %p241 = scmp.eq.s32.totalorder %s20, 1
    %p242 = por %p240, %p241
    %p243 = scmp.ne.s32.totalorder %s232, %s233
    %p244 = scmp.eq.s32.totalorder %s20, 0
    %p245 = por %p243, %p244
    %p246 = scmp.ne.s32.totalorder %s232, %s233
    %p247 = scmp.eq.s32.totalorder %s21, 1
    %p248 = por %p246, %p247
    %p250 = scmp.ne.s32.totalorder %s233, %s249
    %p251 = scmp.eq.s32.totalorder %s21, 0
    %p252 = por %p250, %p251
    %p253 = scmp.le.s32.totalorder 1, %s15
    %p254 = scmp.lt.s32.totalorder %s15, 3
    %p255 = pnand %p253, %p254
    %p256 = pneg %p255
    // Predicated region
    $region9: #{tpu_custom_call.1} parent=5 // pred_check
      _
    $region10: #{tpu_custom_call.1} parent=5 // pred_check_branch
      %258 = sbr.rel (%p255) target = $region12
    $region11: #{tpu_custom_call.1} parent=5 // pred_region
      %s259 = ssub.s32 %s15, 1
      // Predicated region
      $region13: #{tpu_custom_call.1} parent=11 // pred_check
        %p260 = pneg %p114
      $region14: #{tpu_custom_call.1} parent=11 // pred_check_branch
        %262 = sbr.rel (%p260) target = $region16
      $region15: #{tpu_custom_call.1} parent=11 // pred_region
        _
      $region16: #{tpu_custom_call.1} parent=11 // pred_fallthru
        _
      // Predicated region
      $region17: #{tpu_custom_call.1} parent=11 // pred_check
        %p263 = pneg %p135
      $region18: #{tpu_custom_call.1} parent=11 // pred_check_branch
        %265 = sbr.rel (%p263) target = $region20
      $region19: #{tpu_custom_call.1} parent=11 // pred_region
        _
      $region20: #{tpu_custom_call.1} parent=11 // pred_fallthru
        _
      // Predicated region
      $region21: #{tpu_custom_call.1} parent=11 // pred_check
        %p266 = pneg %p156
      $region22: #{tpu_custom_call.1} parent=11 // pred_check_branch
        %268 = sbr.rel (%p266) target = $region24
      $region23: #{tpu_custom_call.1} parent=11 // pred_region
        _
      $region24: #{tpu_custom_call.1} parent=11 // pred_fallthru
        _
      // Predicated region
      $region25: #{tpu_custom_call.1} parent=11 // pred_check
        %p269 = pneg %p177
      $region26: #{tpu_custom_call.1} parent=11 // pred_check_branch
        %271 = sbr.rel (%p269) target = $region28
      $region27: #{tpu_custom_call.1} parent=11 // pred_region
        _
      $region28: #{tpu_custom_call.1} parent=11 // pred_fallthru
        _
      // Predicated region
      $region29: #{tpu_custom_call.1} parent=11 // pred_check
        %p272 = pneg %p198
      $region30: #{tpu_custom_call.1} parent=11 // pred_check_branch
        %274 = sbr.rel (%p272) target = $region32
      $region31: #{tpu_custom_call.1} parent=11 // pred_region
        _
      $region32: #{tpu_custom_call.1} parent=11 // pred_fallthru
        _
      // Predicated region
      $region33: #{tpu_custom_call.1} parent=11 // pred_check
        %p275 = pneg %p219
      $region34: #{tpu_custom_call.1} parent=11 // pred_check_branch
        %277 = sbr.rel (%p275) target = $region36
      $region35: #{tpu_custom_call.1} parent=11 // pred_region
        _
      $region36: #{tpu_custom_call.1} parent=11 // pred_fallthru
        _
    $region12: #{tpu_custom_call.1} parent=5 // pred_fallthru
      _
    %p278 = scmp.lt.s32.totalorder %s15, 2
    // Predicated region
    $region37: #{tpu_custom_call.1} parent=5 // pred_check
      %p279 = pneg %p278
    $region38: #{tpu_custom_call.1} parent=5 // pred_check_branch
      %281 = sbr.rel (%p279) target = $region40
    $region39: #{tpu_custom_call.1} parent=5 // pred_region
      // Predicated region
      $region41: #{tpu_custom_call.1} parent=39 // pred_check
        %p282 = pneg %p35
      $region42: #{tpu_custom_call.1} parent=39 // pred_check_branch
        %284 = sbr.rel (%p282) target = $region44
      $region43: #{tpu_custom_call.1} parent=39 // pred_region
        %s285 = smul.u32 14, %s15
        %p286 = scmp.lt.s32.totalorder %s285, 27
        %s287 = scalar_select %p286, %s285, 27
        %s288 = smul.addr %s287, 4
        %s289 = scalar_lea.vmem %s0, %s288
        %s290 = smul.u32 14, %s15
      $region44: #{tpu_custom_call.1} parent=39 // pred_fallthru
        _
      // Predicated region
      $region45: #{tpu_custom_call.1} parent=39 // pred_check
        %p291 = pneg %p61
      $region46: #{tpu_custom_call.1} parent=39 // pred_check_branch
        %293 = sbr.rel (%p291) target = $region48
      $region47: #{tpu_custom_call.1} parent=39 // pred_region
        %s294 = smul.u32 14, %s15
        %p295 = scmp.lt.s32.totalorder %s294, 27
        %s296 = scalar_select %p295, %s294, 27
        %s297 = smul.addr %s296, 4
        %s298 = scalar_lea.vmem %s1, %s297
        %s299 = smul.u32 14, %s15
      $region48: #{tpu_custom_call.1} parent=39 // pred_fallthru
        _
      // Predicated region
      $region49: #{tpu_custom_call.1} parent=39 // pred_check
        %p300 = pneg %p87
      $region50: #{tpu_custom_call.1} parent=39 // pred_check_branch
        %302 = sbr.rel (%p300) target = $region52
      $region51: #{tpu_custom_call.1} parent=39 // pred_region
        %s303 = smul.u32 14, %s15
        %p304 = scmp.lt.s32.totalorder %s303, 27
        %s305 = scalar_select %p304, %s303, 27
        %s306 = smul.addr %s305, 4
        %s307 = scalar_lea.vmem %s2, %s306
        %s308 = smul.u32 14, %s15
      $region52: #{tpu_custom_call.1} parent=39 // pred_fallthru
        _
    $region40: #{tpu_custom_call.1} parent=5 // pred_fallthru
      _
    %p309 = scmp.le.s32.totalorder 1, %s15
    %p310 = scmp.lt.s32.totalorder %s15, 3
    %p311 = pnand %p309, %p310
    %p312 = pneg %p311
    // Predicated region
    $region53: #{tpu_custom_call.1} parent=5 // pred_check
      _
    $region54: #{tpu_custom_call.1} parent=5 // pred_check_branch
      %314 = sbr.rel (%p311) target = $region56
    $region55: #{tpu_custom_call.1} parent=5 // pred_region
      %s315 = ssub.s32 %s15, 1
      %s316 = smul.u32 14, %s20
      %p317 = scmp.lt.s32.totalorder %s316, 27
      %s318 = scalar_select %p317, %s316, 27
      %s319 = smul.addr %s318, 4
      %s320 = scalar_lea.vmem %s0, %s319
      %p321 = pneg %p41
      %p322 = pneg %p38
      %s323 = smul.u32 14, %s20
      %p324 = scmp.lt.s32.totalorder %s323, 27
      %s325 = scalar_select %p324, %s323, 27
      %s326 = smul.addr %s325, 4
      %s327 = scalar_lea.vmem %s1, %s326
      %p328 = pneg %p67
      %p329 = pneg %p64
      %s330 = smul.u32 14, %s20
      %p331 = scmp.lt.s32.totalorder %s330, 27
      %s332 = scalar_select %p331, %s330, 27
      %s333 = smul.addr %s332, 4
      %s334 = scalar_lea.vmem %s2, %s333
      %p335 = pneg %p93
      %p336 = pneg %p90
      %p337 = pneg %p114
      %p338 = pneg %p111
      %p339 = pneg %p135
      %p340 = pneg %p132
      %p341 = pneg %p156
      %p342 = pneg %p153
      %p343 = pneg %p177
      %p344 = pneg %p174
      %p345 = pneg %p198
      %p346 = pneg %p195
      %p347 = pneg %p219
      %p348 = pneg %p216
      %p349 = pneg %p245
      %p350 = pneg %p242
      %s351 = smul.u32 14, %s20
      %p352 = scmp.lt.s32.totalorder %s351, 27
      %s353 = scalar_select %p352, %s351, 27
      %s354 = smul.addr %s353, 8
      %s355 = scalar_lea.vmem %s9, %s354
      %s356 = smul.u32 14, %s20
      %p357 = scmp.lt.s32.totalorder %s356, 27
      %s358 = scalar_select %p357, %s356, 27
      %s359 = smul.addr %s358, 4
      %s360 = scalar_lea.vmem %s0, %s359
      %s361 = smul.u32 14, %s20
      %s362 = smul.u32 14, %s20
      %p363 = scmp.lt.s32.totalorder %s362, 27
      %s364 = scalar_select %p363, %s362, 27
      %s365 = smul.addr %s364, 4
      %s366 = scalar_lea.vmem %s1, %s365
      %s367 = smul.u32 14, %s20
      %s368 = smul.u32 14, %s20
      %p369 = scmp.lt.s32.totalorder %s368, 27
      %s370 = scalar_select %p369, %s368, 27
      %s371 = smul.addr %s370, 4
      %s372 = scalar_lea.vmem %s2, %s371
      %s373 = smul.u32 14, %s20
      %s374 = smul.u32 14, %s20
      %p375 = scmp.lt.s32.totalorder %s374, 27
      %s376 = scalar_select %p375, %s374, 27
      %s377 = smul.addr %s376, 8
      %s378 = scalar_lea.vmem %s9, %s377
      %s379 = smul.u32 14, %s20
      %v381 = vld [vmem:[%s360] sm:$0xf]
      %v382 = vld [vmem:[%s360 + $0x4] sm:$0xf]
      %v383 = vld [vmem:[%s360 + $0x8] sm:$0xf]
      %v384 = vld [vmem:[%s360 + $0xc] sm:$0xf]
      %v385 = vld [vmem:[%s360 + $0x10] sm:$0xf]
      %v386 = vld [vmem:[%s360 + $0x14] sm:$0xf]
      %v387 = vld [vmem:[%s360 + $0x18] sm:$0xf]
      %v388 = vld [vmem:[%s360 + $0x1c] sm:$0xf]
      %v389 = vld [vmem:[%s360 + $0x20] sm:$0xf]
      %v390 = vld [vmem:[%s360 + $0x24] sm:$0xf]
      %v391 = vld [vmem:[%s360 + $0x28] sm:$0xf]
      %v392 = vld [vmem:[%s360 + $0x2c] sm:$0xf]
      %v393 = vld [vmem:[%s360 + $0x30] sm:$0xf]
      %v394 = vld [vmem:[%s360 + $0x34] sm:$0xf]
      %v395 = vld [vmem:[%s3] sm:$0xff]
      %v396 = vld [vmem:[%s3 + $0x8] sm:$0xff]
      %v397 = vld [vmem:[%s3 + $0x10] sm:$0xff]
      %v398 = vld [vmem:[%s3 + $0x18] sm:$0xff]
      %v399 = vld [vmem:[%s3 + $0x20] sm:$0xff]
      %v400 = vld [vmem:[%s3 + $0x28] sm:$0xff]
      %v401 = vld [vmem:[%s3 + $0x30] sm:$0xff]
      %v402 = vld [vmem:[%s3 + $0x38] sm:$0xff]
      %v403 = vld [vmem:[%s3 + $0x40] sm:$0xff]
      %v404 = vld [vmem:[%s3 + $0x48] sm:$0xff]
      %v405 = vld [vmem:[%s3 + $0x50] sm:$0xff]
      %v406 = vld [vmem:[%s3 + $0x58] sm:$0xff]
      %v407 = vld [vmem:[%s3 + $0x60] sm:$0xff]
      %v408 = vld [vmem:[%s3 + $0x68] sm:$0xff]
      %v409 = vld [vmem:[%s3 + $0x70] sm:$0xff]
      %v410 = vld [vmem:[%s3 + $0x78] sm:$0xff]
      %v411 = vld [vmem:[%s366] sm:$0xf]
      %v412 = vld [vmem:[%s366 + $0x4] sm:$0xf]
      %v413 = vld [vmem:[%s366 + $0x8] sm:$0xf]
      %v414 = vld [vmem:[%s366 + $0xc] sm:$0xf]
      %v415 = vld [vmem:[%s366 + $0x10] sm:$0xf]
      %v416 = vld [vmem:[%s366 + $0x14] sm:$0xf]
      %v417 = vld [vmem:[%s366 + $0x18] sm:$0xf]
      %v418 = vld [vmem:[%s366 + $0x1c] sm:$0xf]
      %v419 = vld [vmem:[%s366 + $0x20] sm:$0xf]
      %v420 = vld [vmem:[%s366 + $0x24] sm:$0xf]
      %v421 = vld [vmem:[%s366 + $0x28] sm:$0xf]
      %v422 = vld [vmem:[%s366 + $0x2c] sm:$0xf]
      %v423 = vld [vmem:[%s366 + $0x30] sm:$0xf]
      %v424 = vld [vmem:[%s366 + $0x34] sm:$0xf]
      %v425 = vld [vmem:[%s4] sm:$0xff]
      %v426 = vld [vmem:[%s4 + $0x8] sm:$0xff]
      %v427 = vld [vmem:[%s4 + $0x10] sm:$0xff]
      %v428 = vld [vmem:[%s4 + $0x18] sm:$0xff]
      %v429 = vld [vmem:[%s4 + $0x20] sm:$0xff]
      %v430 = vld [vmem:[%s4 + $0x28] sm:$0xff]
      %v431 = vld [vmem:[%s4 + $0x30] sm:$0xff]
      %v432 = vld [vmem:[%s4 + $0x38] sm:$0xff]
      %v433 = vld [vmem:[%s4 + $0x40] sm:$0xff]
      %v434 = vld [vmem:[%s4 + $0x48] sm:$0xff]
      %v435 = vld [vmem:[%s4 + $0x50] sm:$0xff]
      %v436 = vld [vmem:[%s4 + $0x58] sm:$0xff]
      %v437 = vld [vmem:[%s4 + $0x60] sm:$0xff]
      %v438 = vld [vmem:[%s4 + $0x68] sm:$0xff]
      %v439 = vld [vmem:[%s4 + $0x70] sm:$0xff]
      %v440 = vld [vmem:[%s4 + $0x78] sm:$0xff]
      %v455 = vunpack.c.l.b16 %v411
      %v456 = vunpack.c.l.b16 %v412
      %v457 = vunpack.c.l.b16 %v413
      %v458 = vunpack.c.l.b16 %v414
      %v459 = vunpack.c.l.b16 %v415
      %v460 = vunpack.c.l.b16 %v416
      %v461 = vunpack.c.l.b16 %v417
      %v462 = vunpack.c.l.b16 %v418
      %v463 = vunpack.c.l.b16 %v419
      %v464 = vunpack.c.l.b16 %v420
      %v465 = vunpack.c.l.b16 %v421
      %v466 = vunpack.c.l.b16 %v422
      %v467 = vunpack.c.l.b16 %v423
      %v468 = vunpack.c.l.b16 %v424
      %v469 = vpack.c.b16 %v456, %v455
      %v470 = vpack.c.b16 %v458, %v457
      %v471 = vpack.c.b16 %v460, %v459
      %v472 = vpack.c.b16 %v462, %v461
      %v473 = vpack.c.b16 %v464, %v463
      %v474 = vpack.c.b16 %v466, %v465
      %v475 = vpack.c.b16 %v468, %v467
      %v499 = vunpack.c.l.b16 %v425
      %v500 = vunpack.c.h.b16 %v425
      %v501 = vunpack.c.l.b16 %v426
      %v502 = vunpack.c.h.b16 %v426
      %v503 = vunpack.c.l.b16 %v427
      %v504 = vunpack.c.h.b16 %v427
      %v505 = vunpack.c.l.b16 %v428
      %v506 = vunpack.c.h.b16 %v428
      %v507 = vunpack.c.l.b16 %v429
      %v508 = vunpack.c.h.b16 %v429
      %v509 = vunpack.c.l.b16 %v430
      %v510 = vunpack.c.h.b16 %v430
      %v511 = vunpack.c.l.b16 %v431
      %v512 = vunpack.c.h.b16 %v431
      %v513 = vunpack.c.l.b16 %v432
      %v514 = vunpack.c.h.b16 %v432
      %v515 = vunpack.c.l.b16 %v433
      %v516 = vunpack.c.h.b16 %v433
      %v517 = vunpack.c.l.b16 %v434
      %v518 = vunpack.c.h.b16 %v434
      %v519 = vunpack.c.l.b16 %v435
      %v520 = vunpack.c.h.b16 %v435
      %v521 = vunpack.c.l.b16 %v436
      %v522 = vunpack.c.h.b16 %v436
      %v523 = vunpack.c.l.b16 %v437
      %v524 = vunpack.c.h.b16 %v437
      %v525 = vunpack.c.l.b16 %v438
      %v526 = vunpack.c.h.b16 %v438
      %v527 = vunpack.c.l.b16 %v439
      %v528 = vunpack.c.h.b16 %v439
      %v529 = vunpack.c.l.b16 %v440
      %v530 = vunpack.c.h.b16 %v440
      %v531 = vpack.c.b16 %v501, %v499
      %v532 = vpack.c.b16 %v502, %v500
      %v533 = vpack.c.b16 %v505, %v503
      %v534 = vpack.c.b16 %v506, %v504
      %v535 = vpack.c.b16 %v509, %v507
      %v536 = vpack.c.b16 %v510, %v508
      %v537 = vpack.c.b16 %v513, %v511
      %v538 = vpack.c.b16 %v514, %v512
      %v539 = vpack.c.b16 %v517, %v515
      %v540 = vpack.c.b16 %v518, %v516
      %v541 = vpack.c.b16 %v521, %v519
      %v542 = vpack.c.b16 %v522, %v520
      %v543 = vpack.c.b16 %v525, %v523
      %v544 = vpack.c.b16 %v526, %v524
      %v545 = vpack.c.b16 %v529, %v527
      %v546 = vpack.c.b16 %v530, %v528
      %563 = vmatprep.subr.bf16.mxu0 %v546
      %564 = vmatpush1.bf16.msra.mxu0 %v545
      %565 = vmatprep.subr.bf16.mxu0 %v544
      %566 = vmatpush1.bf16.msra.mxu0 %v543
      %567 = vmatprep.subr.bf16.mxu0 %v542
      %568 = vmatpush1.bf16.msra.mxu0 %v541
      %569 = vmatprep.subr.bf16.mxu0 %v540
      %570 = vmatpush1.bf16.msra.mxu0 %v539
      %571 = vmatprep.subr.bf16.mxu0 %v538
      %572 = vmatpush1.bf16.msra.mxu0 %v537
      %573 = vmatprep.subr.bf16.mxu0 %v536
      %574 = vmatpush1.bf16.msra.mxu0 %v535
      %575 = vmatprep.subr.bf16.mxu0 %v534
      %576 = vmatpush1.bf16.msra.mxu0 %v533
      %577 = vmatprep.subr.bf16.mxu0 %v532
      %578 = vmatpush1.bf16.msra.mxu0 %v531
      %579 = vmatprep.subr.bf16.mxu0 0
      %580 = vmatpush2.bf16.msra.mxu0 0
      %581 = vmatprep.subr.bf16.mxu0 0
      %582 = vmatpush2.bf16.msra.mxu0 0
      %583 = vmatprep.subr.bf16.mxu0 0
      %584 = vmatpush2.bf16.msra.mxu0 0
      %585 = vmatprep.subr.bf16.mxu0 0
      %586 = vmatpush2.bf16.msra.mxu0 0
      %587 = vmatprep.subr.bf16.mxu0 0
      %588 = vmatpush2.bf16.msra.mxu0 0
      %589 = vmatprep.subr.bf16.mxu0 0
      %590 = vmatpush2.bf16.msra.mxu0 0
      %591 = vmatprep.subr.bf16.mxu0 0
      %592 = vmatpush2.bf16.msra.mxu0 0
      %593 = vmatprep.subr.bf16.mxu0 0
      %594 = vmatpush2.bf16.msra.mxu0 0
      %595 = vmatprep.mubr.bf16.mxu0 0
      %596 = vmatmul.mubr.bf16.gmra.mxu0 %v469
      %v597 = vpop.f32.mrf.mxu0
      %v598 = vadd.f32 0.0, %v597
      %v599 = vpop.f32.mrf.mxu0
      %v600 = vadd.f32 0.0, %v599
      %v601 = vpop.f32.mrf.mxu0
      %v602 = vadd.f32 0.0, %v601
      %v603 = vpop.f32.mrf.mxu0
      %v604 = vadd.f32 0.0, %v603
      %605 = vmatprep.mubr.bf16.mxu0 0
      %606 = vmatmul.mubr.bf16.gmra.mxu0 %v470
      %v607 = vpop.f32.mrf.mxu0
      %v608 = vadd.f32 0.0, %v607
      %v609 = vpop.f32.mrf.mxu0
      %v610 = vadd.f32 0.0, %v609
      %v611 = vpop.f32.mrf.mxu0
      %v612 = vadd.f32 0.0, %v611
      %v613 = vpop.f32.mrf.mxu0
      %v614 = vadd.f32 0.0, %v613
      %615 = vmatprep.mubr.bf16.mxu0 0
      %616 = vmatmul.mubr.bf16.gmra.mxu0 %v471
      %v617 = vpop.f32.mrf.mxu0
      %v618 = vadd.f32 0.0, %v617
      %v619 = vpop.f32.mrf.mxu0
      %v620 = vadd.f32 0.0, %v619
      %v621 = vpop.f32.mrf.mxu0
      %v622 = vadd.f32 0.0, %v621
      %v623 = vpop.f32.mrf.mxu0
      %v624 = vadd.f32 0.0, %v623
      %625 = vmatprep.mubr.bf16.mxu0 0
      %626 = vmatmul.mubr.bf16.gmra.mxu0 %v472
      %v627 = vpop.f32.mrf.mxu0
      %v628 = vadd.f32 0.0, %v627
      %v629 = vpop.f32.mrf.mxu0
      %v630 = vadd.f32 0.0, %v629
      %v631 = vpop.f32.mrf.mxu0
      %v632 = vadd.f32 0.0, %v631
      %v633 = vpop.f32.mrf.mxu0
      %v634 = vadd.f32 0.0, %v633
      %635 = vmatprep.mubr.bf16.mxu0 0
      %636 = vmatmul.mubr.bf16.gmra.mxu0 %v473
      %v637 = vpop.f32.mrf.mxu0
      %v638 = vadd.f32 0.0, %v637
      %v639 = vpop.f32.mrf.mxu0
      %v640 = vadd.f32 0.0, %v639
      %v641 = vpop.f32.mrf.mxu0
      %v642 = vadd.f32 0.0, %v641
      %v643 = vpop.f32.mrf.mxu0
      %v644 = vadd.f32 0.0, %v643
      %645 = vmatprep.mubr.bf16.mxu0 0
      %646 = vmatmul.mubr.bf16.gmra.mxu0 %v474
      %v647 = vpop.f32.mrf.mxu0
      %v648 = vadd.f32 0.0, %v647
      %v649 = vpop.f32.mrf.mxu0
      %v650 = vadd.f32 0.0, %v649
      %v651 = vpop.f32.mrf.mxu0
      %v652 = vadd.f32 0.0, %v651
      %v653 = vpop.f32.mrf.mxu0
      %v654 = vadd.f32 0.0, %v653
      %655 = vmatprep.mubr.bf16.mxu0 0
      %656 = vmatmul.mubr.bf16.gmra.mxu0 %v475
      %v657 = vpop.f32.mrf.mxu0
      %v658 = vadd.f32 0.0, %v657
      %v659 = vpop.f32.mrf.mxu0
      %v660 = vadd.f32 0.0, %v659
      %v661 = vpop.f32.mrf.mxu0
      %v662 = vadd.f32 0.0, %v661
      %v663 = vpop.f32.mrf.mxu0
      %v664 = vadd.f32 0.0, %v663
      %665 = vdwg.mxu0
      %v680 = vunpack.c.l.b16 %v381
      %v681 = vunpack.c.l.b16 %v382
      %v682 = vunpack.c.l.b16 %v383
      %v683 = vunpack.c.l.b16 %v384
      %v684 = vunpack.c.l.b16 %v385
      %v685 = vunpack.c.l.b16 %v386
      %v686 = vunpack.c.l.b16 %v387
      %v687 = vunpack.c.l.b16 %v388
      %v688 = vunpack.c.l.b16 %v389
      %v689 = vunpack.c.l.b16 %v390
      %v690 = vunpack.c.l.b16 %v391
      %v691 = vunpack.c.l.b16 %v392
      %v692 = vunpack.c.l.b16 %v393
      %v693 = vunpack.c.l.b16 %v394
      %v694 = vpack.c.b16 %v681, %v680
      %v695 = vpack.c.b16 %v683, %v682
      %v696 = vpack.c.b16 %v685, %v684
      %v697 = vpack.c.b16 %v687, %v686
      %v698 = vpack.c.b16 %v689, %v688
      %v699 = vpack.c.b16 %v691, %v690
      %v700 = vpack.c.b16 %v693, %v692
      %v724 = vunpack.c.l.b16 %v395
      %v725 = vunpack.c.h.b16 %v395
      %v726 = vunpack.c.l.b16 %v396
      %v727 = vunpack.c.h.b16 %v396
      %v728 = vunpack.c.l.b16 %v397
      %v729 = vunpack.c.h.b16 %v397
      %v730 = vunpack.c.l.b16 %v398
      %v731 = vunpack.c.h.b16 %v398
      %v732 = vunpack.c.l.b16 %v399
      %v733 = vunpack.c.h.b16 %v399
      %v734 = vunpack.c.l.b16 %v400
      %v735 = vunpack.c.h.b16 %v400
      %v736 = vunpack.c.l.b16 %v401
      %v737 = vunpack.c.h.b16 %v401
      %v738 = vunpack.c.l.b16 %v402
      %v739 = vunpack.c.h.b16 %v402
      %v740 = vunpack.c.l.b16 %v403
      %v741 = vunpack.c.h.b16 %v403
      %v742 = vunpack.c.l.b16 %v404
      %v743 = vunpack.c.h.b16 %v404
      %v744 = vunpack.c.l.b16 %v405
      %v745 = vunpack.c.h.b16 %v405
      %v746 = vunpack.c.l.b16 %v406
      %v747 = vunpack.c.h.b16 %v406
      %v748 = vunpack.c.l.b16 %v407
      %v749 = vunpack.c.h.b16 %v407
      %v750 = vunpack.c.l.b16 %v408
      %v751 = vunpack.c.h.b16 %v408
      %v752 = vunpack.c.l.b16 %v409
      %v753 = vunpack.c.h.b16 %v409
      %v754 = vunpack.c.l.b16 %v410
      %v755 = vunpack.c.h.b16 %v410
      %v756 = vpack.c.b16 %v726, %v724
      %v757 = vpack.c.b16 %v727, %v725
      %v758 = vpack.c.b16 %v730, %v728
      %v759 = vpack.c.b16 %v731, %v729
      %v760 = vpack.c.b16 %v734, %v732
      %v761 = vpack.c.b16 %v735, %v733
      %v762 = vpack.c.b16 %v738, %v736
      %v763 = vpack.c.b16 %v739, %v737
      %v764 = vpack.c.b16 %v742, %v740
      %v765 = vpack.c.b16 %v743, %v741
      %v766 = vpack.c.b16 %v746, %v744
      %v767 = vpack.c.b16 %v747, %v745
      %v768 = vpack.c.b16 %v750, %v748
      %v769 = vpack.c.b16 %v751, %v749
      %v770 = vpack.c.b16 %v754, %v752
      %v771 = vpack.c.b16 %v755, %v753
      %788 = vmatprep.subr.bf16.mxu0 %v771
      %789 = vmatpush1.bf16.msra.mxu0 %v770
      %790 = vmatprep.subr.bf16.mxu0 %v769
      %791 = vmatpush1.bf16.msra.mxu0 %v768
      %792 = vmatprep.subr.bf16.mxu0 %v767
      %793 = vmatpush1.bf16.msra.mxu0 %v766
      %794 = vmatprep.subr.bf16.mxu0 %v765
      %795 = vmatpush1.bf16.msra.mxu0 %v764
      %796 = vmatprep.subr.bf16.mxu0 %v763
      %797 = vmatpush1.bf16.msra.mxu0 %v762
      %798 = vmatprep.subr.bf16.mxu0 %v761
      %799 = vmatpush1.bf16.msra.mxu0 %v760
      %800 = vmatprep.subr.bf16.mxu0 %v759
      %801 = vmatpush1.bf16.msra.mxu0 %v758
      %802 = vmatprep.subr.bf16.mxu0 %v757
      %803 = vmatpush1.bf16.msra.mxu0 %v756
      %804 = vmatprep.subr.bf16.mxu0 0
      %805 = vmatpush2.bf16.msra.mxu0 0
      %806 = vmatprep.subr.bf16.mxu0 0
      %807 = vmatpush2.bf16.msra.mxu0 0
      %808 = vmatprep.subr.bf16.mxu0 0
      %809 = vmatpush2.bf16.msra.mxu0 0
      %810 = vmatprep.subr.bf16.mxu0 0
      %811 = vmatpush2.bf16.msra.mxu0 0
      %812 = vmatprep.subr.bf16.mxu0 0
      %813 = vmatpush2.bf16.msra.mxu0 0
      %814 = vmatprep.subr.bf16.mxu0 0
      %815 = vmatpush2.bf16.msra.mxu0 0
      %816 = vmatprep.subr.bf16.mxu0 0
      %817 = vmatpush2.bf16.msra.mxu0 0
      %818 = vmatprep.subr.bf16.mxu0 0
      %819 = vmatpush2.bf16.msra.mxu0 0
      %820 = vmatprep.mubr.bf16.mxu0 0
      %821 = vmatmul.mubr.bf16.gmra.mxu0 %v694
      %v822 = vpop.f32.mrf.mxu0
      %v823 = vadd.f32 %v598, %v822
      %v824 = vpop.f32.mrf.mxu0
      %v825 = vadd.f32 %v600, %v824
      %v826 = vpop.f32.mrf.mxu0
      %v827 = vadd.f32 %v602, %v826
      %v828 = vpop.f32.mrf.mxu0
      %v829 = vadd.f32 %v604, %v828
      %830 = vmatprep.mubr.bf16.mxu0 0
      %831 = vmatmul.mubr.bf16.gmra.mxu0 %v695
      %v832 = vpop.f32.mrf.mxu0
      %v833 = vadd.f32 %v608, %v832
      %v834 = vpop.f32.mrf.mxu0
      %v835 = vadd.f32 %v610, %v834
      %v836 = vpop.f32.mrf.mxu0
      %v837 = vadd.f32 %v612, %v836
      %v838 = vpop.f32.mrf.mxu0
      %v839 = vadd.f32 %v614, %v838
      %840 = vmatprep.mubr.bf16.mxu0 0
      %841 = vmatmul.mubr.bf16.gmra.mxu0 %v696
      %v842 = vpop.f32.mrf.mxu0
      %v843 = vadd.f32 %v618, %v842
      %v844 = vpop.f32.mrf.mxu0
      %v845 = vadd.f32 %v620, %v844
      %v846 = vpop.f32.mrf.mxu0
      %v847 = vadd.f32 %v622, %v846
      %v848 = vpop.f32.mrf.mxu0
      %v849 = vadd.f32 %v624, %v848
      %850 = vmatprep.mubr.bf16.mxu0 0
      %851 = vmatmul.mubr.bf16.gmra.mxu0 %v697
      %v852 = vpop.f32.mrf.mxu0
      %v853 = vadd.f32 %v628, %v852
      %v854 = vpop.f32.mrf.mxu0
      %v855 = vadd.f32 %v630, %v854
      %v856 = vpop.f32.mrf.mxu0
      %v857 = vadd.f32 %v632, %v856
      %v858 = vpop.f32.mrf.mxu0
      %v859 = vadd.f32 %v634, %v858
      %860 = vmatprep.mubr.bf16.mxu0 0
      %861 = vmatmul.mubr.bf16.gmra.mxu0 %v698
      %v862 = vpop.f32.mrf.mxu0
      %v863 = vadd.f32 %v638, %v862
      %v864 = vpop.f32.mrf.mxu0
      %v865 = vadd.f32 %v640, %v864
      %v866 = vpop.f32.mrf.mxu0
      %v867 = vadd.f32 %v642, %v866
      %v868 = vpop.f32.mrf.mxu0
      %v869 = vadd.f32 %v644, %v868
      %870 = vmatprep.mubr.bf16.mxu0 0
      %871 = vmatmul.mubr.bf16.gmra.mxu0 %v699
      %v872 = vpop.f32.mrf.mxu0
      %v873 = vadd.f32 %v648, %v872
      %v874 = vpop.f32.mrf.mxu0
      %v875 = vadd.f32 %v650, %v874
      %v876 = vpop.f32.mrf.mxu0
      %v877 = vadd.f32 %v652, %v876
      %v878 = vpop.f32.mrf.mxu0
      %v879 = vadd.f32 %v654, %v878
      %880 = vmatprep.mubr.bf16.mxu0 0
      %881 = vmatmul.mubr.bf16.gmra.mxu0 %v700
      %v882 = vpop.f32.mrf.mxu0
      %v883 = vadd.f32 %v658, %v882
      %v884 = vpop.f32.mrf.mxu0
      %v885 = vadd.f32 %v660, %v884
      %v886 = vpop.f32.mrf.mxu0
      %v887 = vadd.f32 %v662, %v886
      %v888 = vpop.f32.mrf.mxu0
      %v889 = vadd.f32 %v664, %v888
      %890 = vdwg.mxu0
      %v891 = vld [vmem:[%s372] sm:$0xf]
      %v892 = vld [vmem:[%s372 + $0x4] sm:$0xf]
      %v893 = vld [vmem:[%s372 + $0x8] sm:$0xf]
      %v894 = vld [vmem:[%s372 + $0xc] sm:$0xf]
      %v895 = vld [vmem:[%s372 + $0x10] sm:$0xf]
      %v896 = vld [vmem:[%s372 + $0x14] sm:$0xf]
      %v897 = vld [vmem:[%s372 + $0x18] sm:$0xf]
      %v898 = vld [vmem:[%s372 + $0x1c] sm:$0xf]
      %v899 = vld [vmem:[%s372 + $0x20] sm:$0xf]
      %v900 = vld [vmem:[%s372 + $0x24] sm:$0xf]
      %v901 = vld [vmem:[%s372 + $0x28] sm:$0xf]
      %v902 = vld [vmem:[%s372 + $0x2c] sm:$0xf]
      %v903 = vld [vmem:[%s372 + $0x30] sm:$0xf]
      %v904 = vld [vmem:[%s372 + $0x34] sm:$0xf]
      %v905 = vld [vmem:[%s5] sm:$0xff]
      %v906 = vld [vmem:[%s5 + $0x8] sm:$0xff]
      %v907 = vld [vmem:[%s5 + $0x10] sm:$0xff]
      %v908 = vld [vmem:[%s5 + $0x18] sm:$0xff]
      %v909 = vld [vmem:[%s5 + $0x20] sm:$0xff]
      %v910 = vld [vmem:[%s5 + $0x28] sm:$0xff]
      %v911 = vld [vmem:[%s5 + $0x30] sm:$0xff]
      %v912 = vld [vmem:[%s5 + $0x38] sm:$0xff]
      %v913 = vld [vmem:[%s5 + $0x40] sm:$0xff]
      %v914 = vld [vmem:[%s5 + $0x48] sm:$0xff]
      %v915 = vld [vmem:[%s5 + $0x50] sm:$0xff]
      %v916 = vld [vmem:[%s5 + $0x58] sm:$0xff]
      %v917 = vld [vmem:[%s5 + $0x60] sm:$0xff]
      %v918 = vld [vmem:[%s5 + $0x68] sm:$0xff]
      %v919 = vld [vmem:[%s5 + $0x70] sm:$0xff]
      %v920 = vld [vmem:[%s5 + $0x78] sm:$0xff]
      %v935 = vunpack.c.l.b16 %v891
      %v936 = vunpack.c.l.b16 %v892
      %v937 = vunpack.c.l.b16 %v893
      %v938 = vunpack.c.l.b16 %v894
      %v939 = vunpack.c.l.b16 %v895
      %v940 = vunpack.c.l.b16 %v896
      %v941 = vunpack.c.l.b16 %v897
      %v942 = vunpack.c.l.b16 %v898
      %v943 = vunpack.c.l.b16 %v899
      %v944 = vunpack.c.l.b16 %v900
      %v945 = vunpack.c.l.b16 %v901
      %v946 = vunpack.c.l.b16 %v902
      %v947 = vunpack.c.l.b16 %v903
      %v948 = vunpack.c.l.b16 %v904
      %v949 = vpack.c.b16 %v936, %v935
      %v950 = vpack.c.b16 %v938, %v937
      %v951 = vpack.c.b16 %v940, %v939
      %v952 = vpack.c.b16 %v942, %v941
      %v953 = vpack.c.b16 %v944, %v943
      %v954 = vpack.c.b16 %v946, %v945
      %v955 = vpack.c.b16 %v948, %v947
      %v979 = vunpack.c.l.b16 %v905
      %v980 = vunpack.c.h.b16 %v905
      %v981 = vunpack.c.l.b16 %v906
      %v982 = vunpack.c.h.b16 %v906
      %v983 = vunpack.c.l.b16 %v907
      %v984 = vunpack.c.h.b16 %v907
      %v985 = vunpack.c.l.b16 %v908
      %v986 = vunpack.c.h.b16 %v908
      %v987 = vunpack.c.l.b16 %v909
      %v988 = vunpack.c.h.b16 %v909
      %v989 = vunpack.c.l.b16 %v910
      %v990 = vunpack.c.h.b16 %v910
      %v991 = vunpack.c.l.b16 %v911
      %v992 = vunpack.c.h.b16 %v911
      %v993 = vunpack.c.l.b16 %v912
      %v994 = vunpack.c.h.b16 %v912
      %v995 = vunpack.c.l.b16 %v913
      %v996 = vunpack.c.h.b16 %v913
      %v997 = vunpack.c.l.b16 %v914
      %v998 = vunpack.c.h.b16 %v914
      %v999 = vunpack.c.l.b16 %v915
      %v1000 = vunpack.c.h.b16 %v915
      %v1001 = vunpack.c.l.b16 %v916
      %v1002 = vunpack.c.h.b16 %v916
      %v1003 = vunpack.c.l.b16 %v917
      %v1004 = vunpack.c.h.b16 %v917
      %v1005 = vunpack.c.l.b16 %v918
      %v1006 = vunpack.c.h.b16 %v918
      %v1007 = vunpack.c.l.b16 %v919
      %v1008 = vunpack.c.h.b16 %v919
      %v1009 = vunpack.c.l.b16 %v920
      %v1010 = vunpack.c.h.b16 %v920
      %v1011 = vpack.c.b16 %v981, %v979
      %v1012 = vpack.c.b16 %v982, %v980
      %v1013 = vpack.c.b16 %v985, %v983
      %v1014 = vpack.c.b16 %v986, %v984
      %v1015 = vpack.c.b16 %v989, %v987
      %v1016 = vpack.c.b16 %v990, %v988
      %v1017 = vpack.c.b16 %v993, %v991
      %v1018 = vpack.c.b16 %v994, %v992
      %v1019 = vpack.c.b16 %v997, %v995
      %v1020 = vpack.c.b16 %v998, %v996
      %v1021 = vpack.c.b16 %v1001, %v999
      %v1022 = vpack.c.b16 %v1002, %v1000
      %v1023 = vpack.c.b16 %v1005, %v1003
      %v1024 = vpack.c.b16 %v1006, %v1004
      %v1025 = vpack.c.b16 %v1009, %v1007
      %v1026 = vpack.c.b16 %v1010, %v1008
      %1043 = vmatprep.subr.bf16.mxu0 %v1026
      %1044 = vmatpush1.bf16.msra.mxu0 %v1025
      %1045 = vmatprep.subr.bf16.mxu0 %v1024
      %1046 = vmatpush1.bf16.msra.mxu0 %v1023
      %1047 = vmatprep.subr.bf16.mxu0 %v1022
      %1048 = vmatpush1.bf16.msra.mxu0 %v1021
      %1049 = vmatprep.subr.bf16.mxu0 %v1020
      %1050 = vmatpush1.bf16.msra.mxu0 %v1019
      %1051 = vmatprep.subr.bf16.mxu0 %v1018
      %1052 = vmatpush1.bf16.msra.mxu0 %v1017
      %1053 = vmatprep.subr.bf16.mxu0 %v1016
      %1054 = vmatpush1.bf16.msra.mxu0 %v1015
      %1055 = vmatprep.subr.bf16.mxu0 %v1014
      %1056 = vmatpush1.bf16.msra.mxu0 %v1013
      %1057 = vmatprep.subr.bf16.mxu0 %v1012
      %1058 = vmatpush1.bf16.msra.mxu0 %v1011
      %1059 = vmatprep.subr.bf16.mxu0 0
      %1060 = vmatpush2.bf16.msra.mxu0 0
      %1061 = vmatprep.subr.bf16.mxu0 0
      %1062 = vmatpush2.bf16.msra.mxu0 0
      %1063 = vmatprep.subr.bf16.mxu0 0
      %1064 = vmatpush2.bf16.msra.mxu0 0
      %1065 = vmatprep.subr.bf16.mxu0 0
      %1066 = vmatpush2.bf16.msra.mxu0 0
      %1067 = vmatprep.subr.bf16.mxu0 0
      %1068 = vmatpush2.bf16.msra.mxu0 0
      %1069 = vmatprep.subr.bf16.mxu0 0
      %1070 = vmatpush2.bf16.msra.mxu0 0
      %1071 = vmatprep.subr.bf16.mxu0 0
      %1072 = vmatpush2.bf16.msra.mxu0 0
      %1073 = vmatprep.subr.bf16.mxu0 0
      %1074 = vmatpush2.bf16.msra.mxu0 0
      %1075 = vmatprep.mubr.bf16.mxu0 0
      %1076 = vmatmul.mubr.bf16.gmra.mxu0 %v949
      %v1077 = vpop.f32.mrf.mxu0
      %v1078 = vadd.f32 0.0, %v1077
      %v1079 = vpop.f32.mrf.mxu0
      %v1080 = vadd.f32 0.0, %v1079
      %v1081 = vpop.f32.mrf.mxu0
      %v1082 = vadd.f32 0.0, %v1081
      %v1083 = vpop.f32.mrf.mxu0
      %v1084 = vadd.f32 0.0, %v1083
      %1085 = vmatprep.mubr.bf16.mxu0 0
      %1086 = vmatmul.mubr.bf16.gmra.mxu0 %v950
      %v1087 = vpop.f32.mrf.mxu0
      %v1088 = vadd.f32 0.0, %v1087
      %v1089 = vpop.f32.mrf.mxu0
      %v1090 = vadd.f32 0.0, %v1089
      %v1091 = vpop.f32.mrf.mxu0
      %v1092 = vadd.f32 0.0, %v1091
      %v1093 = vpop.f32.mrf.mxu0
      %v1094 = vadd.f32 0.0, %v1093
      %1095 = vmatprep.mubr.bf16.mxu0 0
      %1096 = vmatmul.mubr.bf16.gmra.mxu0 %v951
      %v1097 = vpop.f32.mrf.mxu0
      %v1098 = vadd.f32 0.0, %v1097
      %v1099 = vpop.f32.mrf.mxu0
      %v1100 = vadd.f32 0.0, %v1099
      %v1101 = vpop.f32.mrf.mxu0
      %v1102 = vadd.f32 0.0, %v1101
      %v1103 = vpop.f32.mrf.mxu0
      %v1104 = vadd.f32 0.0, %v1103
      %1105 = vmatprep.mubr.bf16.mxu0 0
      %1106 = vmatmul.mubr.bf16.gmra.mxu0 %v952
      %v1107 = vpop.f32.mrf.mxu0
      %v1108 = vadd.f32 0.0, %v1107
      %v1109 = vpop.f32.mrf.mxu0
      %v1110 = vadd.f32 0.0, %v1109
      %v1111 = vpop.f32.mrf.mxu0
      %v1112 = vadd.f32 0.0, %v1111
      %v1113 = vpop.f32.mrf.mxu0
      %v1114 = vadd.f32 0.0, %v1113
      %1115 = vmatprep.mubr.bf16.mxu0 0
      %1116 = vmatmul.mubr.bf16.gmra.mxu0 %v953
      %v1117 = vpop.f32.mrf.mxu0
      %v1118 = vadd.f32 0.0, %v1117
      %v1119 = vpop.f32.mrf.mxu0
      %v1120 = vadd.f32 0.0, %v1119
      %v1121 = vpop.f32.mrf.mxu0
      %v1122 = vadd.f32 0.0, %v1121
      %v1123 = vpop.f32.mrf.mxu0
      %v1124 = vadd.f32 0.0, %v1123
      %1125 = vmatprep.mubr.bf16.mxu0 0
      %1126 = vmatmul.mubr.bf16.gmra.mxu0 %v954
      %v1127 = vpop.f32.mrf.mxu0
      %v1128 = vadd.f32 0.0, %v1127
      %v1129 = vpop.f32.mrf.mxu0
      %v1130 = vadd.f32 0.0, %v1129
      %v1131 = vpop.f32.mrf.mxu0
      %v1132 = vadd.f32 0.0, %v1131
      %v1133 = vpop.f32.mrf.mxu0
      %v1134 = vadd.f32 0.0, %v1133
      %1135 = vmatprep.mubr.bf16.mxu0 0
      %1136 = vmatmul.mubr.bf16.gmra.mxu0 %v955
      %v1137 = vpop.f32.mrf.mxu0
      %v1138 = vadd.f32 0.0, %v1137
      %v1139 = vpop.f32.mrf.mxu0
      %v1140 = vadd.f32 0.0, %v1139
      %v1141 = vpop.f32.mrf.mxu0
      %v1142 = vadd.f32 0.0, %v1141
      %v1143 = vpop.f32.mrf.mxu0
      %v1144 = vadd.f32 0.0, %v1143
      %1145 = vdwg.mxu0
      %v1146 = vadd.f32 %v823, %v1078
      %v1147 = vadd.f32 %v825, %v1080
      %v1148 = vadd.f32 %v827, %v1082
      %v1149 = vadd.f32 %v829, %v1084
      %v1150 = vadd.f32 %v833, %v1088
      %v1151 = vadd.f32 %v835, %v1090
      %v1152 = vadd.f32 %v837, %v1092
      %v1153 = vadd.f32 %v839, %v1094
      %v1154 = vadd.f32 %v843, %v1098
      %v1155 = vadd.f32 %v845, %v1100
      %v1156 = vadd.f32 %v847, %v1102
      %v1157 = vadd.f32 %v849, %v1104
      %v1158 = vadd.f32 %v853, %v1108
      %v1159 = vadd.f32 %v855, %v1110
      %v1160 = vadd.f32 %v857, %v1112
      %v1161 = vadd.f32 %v859, %v1114
      %v1162 = vadd.f32 %v863, %v1118
      %v1163 = vadd.f32 %v865, %v1120
      %v1164 = vadd.f32 %v867, %v1122
      %v1165 = vadd.f32 %v869, %v1124
      %v1166 = vadd.f32 %v873, %v1128
      %v1167 = vadd.f32 %v875, %v1130
      %v1168 = vadd.f32 %v877, %v1132
      %v1169 = vadd.f32 %v879, %v1134
      %v1170 = vadd.f32 %v883, %v1138
      %v1171 = vadd.f32 %v885, %v1140
      %v1172 = vadd.f32 %v887, %v1142
      %v1173 = vadd.f32 %v889, %v1144
      %v1174 = vld [vmem:[%s6] sm:$0x3]
      %v1176 = vlaneseq
      %v1177 = vshrl.u32 %v1176, 7
      %v1178 = vsub.s32 0, %v1177
      %v1179 = vrot.slane %v1174, %v1178
      %v1180 = vlaneseq
      %v1181 = vshrl.u32 %v1180, 7
      %v1182 = vsub.s32 1, %v1181
      %v1183 = vrot.slane %v1174, %v1182
      %v1186 = vadd.f32 %v1146, %v1179
      %v1187 = vadd.f32 %v1147, %v1183
      %v1188 = vadd.f32 %v1148, %v1179
      %v1189 = vadd.f32 %v1149, %v1183
      %v1190 = vadd.f32 %v1150, %v1179
      %v1191 = vadd.f32 %v1151, %v1183
      %v1192 = vadd.f32 %v1152, %v1179
      %v1193 = vadd.f32 %v1153, %v1183
      %v1194 = vadd.f32 %v1154, %v1179
      %v1195 = vadd.f32 %v1155, %v1183
      %v1196 = vadd.f32 %v1156, %v1179
      %v1197 = vadd.f32 %v1157, %v1183
      %v1198 = vadd.f32 %v1158, %v1179
      %v1199 = vadd.f32 %v1159, %v1183
      %v1200 = vadd.f32 %v1160, %v1179
      %v1201 = vadd.f32 %v1161, %v1183
      %v1202 = vadd.f32 %v1162, %v1179
      %v1203 = vadd.f32 %v1163, %v1183
      %v1204 = vadd.f32 %v1164, %v1179
      %v1205 = vadd.f32 %v1165, %v1183
      %v1206 = vadd.f32 %v1166, %v1179
      %v1207 = vadd.f32 %v1167, %v1183
      %v1208 = vadd.f32 %v1168, %v1179
      %v1209 = vadd.f32 %v1169, %v1183
      %v1210 = vadd.f32 %v1170, %v1179
      %v1211 = vadd.f32 %v1171, %v1183
      %v1212 = vadd.f32 %v1172, %v1179
      %v1213 = vadd.f32 %v1173, %v1183
      %v1214 = vmax.f32 %v1186, 0.0
      %v1215 = vmax.f32 %v1187, 0.0
      %v1216 = vmax.f32 %v1188, 0.0
      %v1217 = vmax.f32 %v1189, 0.0
      %v1218 = vmax.f32 %v1190, 0.0
      %v1219 = vmax.f32 %v1191, 0.0
      %v1220 = vmax.f32 %v1192, 0.0
      %v1221 = vmax.f32 %v1193, 0.0
      %v1222 = vmax.f32 %v1194, 0.0
      %v1223 = vmax.f32 %v1195, 0.0
      %v1224 = vmax.f32 %v1196, 0.0
      %v1225 = vmax.f32 %v1197, 0.0
      %v1226 = vmax.f32 %v1198, 0.0
      %v1227 = vmax.f32 %v1199, 0.0
      %v1228 = vmax.f32 %v1200, 0.0
      %v1229 = vmax.f32 %v1201, 0.0
      %v1230 = vmax.f32 %v1202, 0.0
      %v1231 = vmax.f32 %v1203, 0.0
      %v1232 = vmax.f32 %v1204, 0.0
      %v1233 = vmax.f32 %v1205, 0.0
      %v1234 = vmax.f32 %v1206, 0.0
      %v1235 = vmax.f32 %v1207, 0.0
      %v1236 = vmax.f32 %v1208, 0.0
      %v1237 = vmax.f32 %v1209, 0.0
      %v1238 = vmax.f32 %v1210, 0.0
      %v1239 = vmax.f32 %v1211, 0.0
      %v1240 = vmax.f32 %v1212, 0.0
      %v1241 = vmax.f32 %v1213, 0.0
      %v1242 = vand.u32 2147483647, %v1186
      %v1243 = vand.u32 2147483647, %v1187
      %v1244 = vand.u32 2147483647, %v1188
      %v1245 = vand.u32 2147483647, %v1189
      %v1246 = vand.u32 2147483647, %v1190
      %v1247 = vand.u32 2147483647, %v1191
      %v1248 = vand.u32 2147483647, %v1192
      %v1249 = vand.u32 2147483647, %v1193
      %v1250 = vand.u32 2147483647, %v1194
      %v1251 = vand.u32 2147483647, %v1195
      %v1252 = vand.u32 2147483647, %v1196
      %v1253 = vand.u32 2147483647, %v1197
      %v1254 = vand.u32 2147483647, %v1198
      %v1255 = vand.u32 2147483647, %v1199
      %v1256 = vand.u32 2147483647, %v1200
      %v1257 = vand.u32 2147483647, %v1201
      %v1258 = vand.u32 2147483647, %v1202
      %v1259 = vand.u32 2147483647, %v1203
      %v1260 = vand.u32 2147483647, %v1204
      %v1261 = vand.u32 2147483647, %v1205
      %v1262 = vand.u32 2147483647, %v1206
      %v1263 = vand.u32 2147483647, %v1207
      %v1264 = vand.u32 2147483647, %v1208
      %v1265 = vand.u32 2147483647, %v1209
      %v1266 = vand.u32 2147483647, %v1210
      %v1267 = vand.u32 2147483647, %v1211
      %v1268 = vand.u32 2147483647, %v1212
      %v1269 = vand.u32 2147483647, %v1213
      %v1270 = vsub.f32 0.0, %v1242
      %v1271 = vsub.f32 0.0, %v1243
      %v1272 = vsub.f32 0.0, %v1244
      %v1273 = vsub.f32 0.0, %v1245
      %v1274 = vsub.f32 0.0, %v1246
      %v1275 = vsub.f32 0.0, %v1247
      %v1276 = vsub.f32 0.0, %v1248
      %v1277 = vsub.f32 0.0, %v1249
      %v1278 = vsub.f32 0.0, %v1250
      %v1279 = vsub.f32 0.0, %v1251
      %v1280 = vsub.f32 0.0, %v1252
      %v1281 = vsub.f32 0.0, %v1253
      %v1282 = vsub.f32 0.0, %v1254
      %v1283 = vsub.f32 0.0, %v1255
      %v1284 = vsub.f32 0.0, %v1256
      %v1285 = vsub.f32 0.0, %v1257
      %v1286 = vsub.f32 0.0, %v1258
      %v1287 = vsub.f32 0.0, %v1259
      %v1288 = vsub.f32 0.0, %v1260
      %v1289 = vsub.f32 0.0, %v1261
      %v1290 = vsub.f32 0.0, %v1262
      %v1291 = vsub.f32 0.0, %v1263
      %v1292 = vsub.f32 0.0, %v1264
      %v1293 = vsub.f32 0.0, %v1265
      %v1294 = vsub.f32 0.0, %v1266
      %v1295 = vsub.f32 0.0, %v1267
      %v1296 = vsub.f32 0.0, %v1268
      %v1297 = vsub.f32 0.0, %v1269
      %v1298 = vmul.f32 %v1270, 1.442695
      %v1299 = vpow.pop %v1298
      %v1300 = vmul.f32 %v1271, 1.442695
      %v1301 = vpow.pop %v1300
      %v1302 = vmul.f32 %v1272, 1.442695
      %v1303 = vpow.pop %v1302
      %v1304 = vmul.f32 %v1273, 1.442695
      %v1305 = vpow.pop %v1304
      %v1306 = vmul.f32 %v1274, 1.442695
      %v1307 = vpow.pop %v1306
      %v1308 = vmul.f32 %v1275, 1.442695
      %v1309 = vpow.pop %v1308
      %v1310 = vmul.f32 %v1276, 1.442695
      %v1311 = vpow.pop %v1310
      %v1312 = vmul.f32 %v1277, 1.442695
      %v1313 = vpow.pop %v1312
      %v1314 = vmul.f32 %v1278, 1.442695
      %v1315 = vpow.pop %v1314
      %v1316 = vmul.f32 %v1279, 1.442695
      %v1317 = vpow.pop %v1316
      %v1318 = vmul.f32 %v1280, 1.442695
      %v1319 = vpow.pop %v1318
      %v1320 = vmul.f32 %v1281, 1.442695
      %v1321 = vpow.pop %v1320
      %v1322 = vmul.f32 %v1282, 1.442695
      %v1323 = vpow.pop %v1322
      %v1324 = vmul.f32 %v1283, 1.442695
      %v1325 = vpow.pop %v1324
      %v1326 = vmul.f32 %v1284, 1.442695
      %v1327 = vpow.pop %v1326
      %v1328 = vmul.f32 %v1285, 1.442695
      %v1329 = vpow.pop %v1328
      %v1330 = vmul.f32 %v1286, 1.442695
      %v1331 = vpow.pop %v1330
      %v1332 = vmul.f32 %v1287, 1.442695
      %v1333 = vpow.pop %v1332
      %v1334 = vmul.f32 %v1288, 1.442695
      %v1335 = vpow.pop %v1334
      %v1336 = vmul.f32 %v1289, 1.442695
      %v1337 = vpow.pop %v1336
      %v1338 = vmul.f32 %v1290, 1.442695
      %v1339 = vpow.pop %v1338
      %v1340 = vmul.f32 %v1291, 1.442695
      %v1341 = vpow.pop %v1340
      %v1342 = vmul.f32 %v1292, 1.442695
      %v1343 = vpow.pop %v1342
      %v1344 = vmul.f32 %v1293, 1.442695
      %v1345 = vpow.pop %v1344
      %v1346 = vmul.f32 %v1294, 1.442695
      %v1347 = vpow.pop %v1346
      %v1348 = vmul.f32 %v1295, 1.442695
      %v1349 = vpow.pop %v1348
      %v1350 = vmul.f32 %v1296, 1.442695
      %v1351 = vpow.pop %v1350
      %v1352 = vmul.f32 %v1297, 1.442695
      %v1353 = vpow.pop %v1352
      %v1354 = vadd.f32 %v1299, 1.0
      %v1355 = vlog2.pop %v1354
      %v1356 = vmul.f32 %v1355, 0.6931472
      %v1357 = vmul.f32 -0.5, %v1299
      %v1358 = vadd.f32 %v1357, 1.0
      %v1359 = vmul.f32 %v1358, %v1299
      %v1360 = vand.u32 2147483647, %v1299
      %vm1361 = vcmp.lt.f32.partialorder %v1360, 0.0004427343
      %v1362 = vsel %vm1361, %v1359, %v1356
      %v1363 = vadd.f32 %v1301, 1.0
      %v1364 = vlog2.pop %v1363
      %v1365 = vmul.f32 %v1364, 0.6931472
      %v1366 = vmul.f32 -0.5, %v1301
      %v1367 = vadd.f32 %v1366, 1.0
      %v1368 = vmul.f32 %v1367, %v1301
      %v1369 = vand.u32 2147483647, %v1301
      %vm1370 = vcmp.lt.f32.partialorder %v1369, 0.0004427343
      %v1371 = vsel %vm1370, %v1368, %v1365
      %v1372 = vadd.f32 %v1303, 1.0
      %v1373 = vlog2.pop %v1372
      %v1374 = vmul.f32 %v1373, 0.6931472
      %v1375 = vmul.f32 -0.5, %v1303
      %v1376 = vadd.f32 %v1375, 1.0
      %v1377 = vmul.f32 %v1376, %v1303
      %v1378 = vand.u32 2147483647, %v1303
      %vm1379 = vcmp.lt.f32.partialorder %v1378, 0.0004427343
      %v1380 = vsel %vm1379, %v1377, %v1374
      %v1381 = vadd.f32 %v1305, 1.0
      %v1382 = vlog2.pop %v1381
      %v1383 = vmul.f32 %v1382, 0.6931472
      %v1384 = vmul.f32 -0.5, %v1305
      %v1385 = vadd.f32 %v1384, 1.0
      %v1386 = vmul.f32 %v1385, %v1305
      %v1387 = vand.u32 2147483647, %v1305
      %vm1388 = vcmp.lt.f32.partialorder %v1387, 0.0004427343
      %v1389 = vsel %vm1388, %v1386, %v1383
      %v1390 = vadd.f32 %v1307, 1.0
      %v1391 = vlog2.pop %v1390
      %v1392 = vmul.f32 %v1391, 0.6931472
      %v1393 = vmul.f32 -0.5, %v1307
      %v1394 = vadd.f32 %v1393, 1.0
      %v1395 = vmul.f32 %v1394, %v1307
      %v1396 = vand.u32 2147483647, %v1307
      %vm1397 = vcmp.lt.f32.partialorder %v1396, 0.0004427343
      %v1398 = vsel %vm1397, %v1395, %v1392
      %v1399 = vadd.f32 %v1309, 1.0
      %v1400 = vlog2.pop %v1399
      %v1401 = vmul.f32 %v1400, 0.6931472
      %v1402 = vmul.f32 -0.5, %v1309
      %v1403 = vadd.f32 %v1402, 1.0
      %v1404 = vmul.f32 %v1403, %v1309
      %v1405 = vand.u32 2147483647, %v1309
      %vm1406 = vcmp.lt.f32.partialorder %v1405, 0.0004427343
      %v1407 = vsel %vm1406, %v1404, %v1401
      %v1408 = vadd.f32 %v1311, 1.0
      %v1409 = vlog2.pop %v1408
      %v1410 = vmul.f32 %v1409, 0.6931472
      %v1411 = vmul.f32 -0.5, %v1311
      %v1412 = vadd.f32 %v1411, 1.0
      %v1413 = vmul.f32 %v1412, %v1311
      %v1414 = vand.u32 2147483647, %v1311
      %vm1415 = vcmp.lt.f32.partialorder %v1414, 0.0004427343
      %v1416 = vsel %vm1415, %v1413, %v1410
      %v1417 = vadd.f32 %v1313, 1.0
      %v1418 = vlog2.pop %v1417
      %v1419 = vmul.f32 %v1418, 0.6931472
      %v1420 = vmul.f32 -0.5, %v1313
      %v1421 = vadd.f32 %v1420, 1.0
      %v1422 = vmul.f32 %v1421, %v1313
      %v1423 = vand.u32 2147483647, %v1313
      %vm1424 = vcmp.lt.f32.partialorder %v1423, 0.0004427343
      %v1425 = vsel %vm1424, %v1422, %v1419
      %v1426 = vadd.f32 %v1315, 1.0
      %v1427 = vlog2.pop %v1426
      %v1428 = vmul.f32 %v1427, 0.6931472
      %v1429 = vmul.f32 -0.5, %v1315
      %v1430 = vadd.f32 %v1429, 1.0
      %v1431 = vmul.f32 %v1430, %v1315
      %v1432 = vand.u32 2147483647, %v1315
      %vm1433 = vcmp.lt.f32.partialorder %v1432, 0.0004427343
      %v1434 = vsel %vm1433, %v1431, %v1428
      %v1435 = vadd.f32 %v1317, 1.0
      %v1436 = vlog2.pop %v1435
      %v1437 = vmul.f32 %v1436, 0.6931472
      %v1438 = vmul.f32 -0.5, %v1317
      %v1439 = vadd.f32 %v1438, 1.0
      %v1440 = vmul.f32 %v1439, %v1317
      %v1441 = vand.u32 2147483647, %v1317
      %vm1442 = vcmp.lt.f32.partialorder %v1441, 0.0004427343
      %v1443 = vsel %vm1442, %v1440, %v1437
      %v1444 = vadd.f32 %v1319, 1.0
      %v1445 = vlog2.pop %v1444
      %v1446 = vmul.f32 %v1445, 0.6931472
      %v1447 = vmul.f32 -0.5, %v1319
      %v1448 = vadd.f32 %v1447, 1.0
      %v1449 = vmul.f32 %v1448, %v1319
      %v1450 = vand.u32 2147483647, %v1319
      %vm1451 = vcmp.lt.f32.partialorder %v1450, 0.0004427343
      %v1452 = vsel %vm1451, %v1449, %v1446
      %v1453 = vadd.f32 %v1321, 1.0
      %v1454 = vlog2.pop %v1453
      %v1455 = vmul.f32 %v1454, 0.6931472
      %v1456 = vmul.f32 -0.5, %v1321
      %v1457 = vadd.f32 %v1456, 1.0
      %v1458 = vmul.f32 %v1457, %v1321
      %v1459 = vand.u32 2147483647, %v1321
      %vm1460 = vcmp.lt.f32.partialorder %v1459, 0.0004427343
      %v1461 = vsel %vm1460, %v1458, %v1455
      %v1462 = vadd.f32 %v1323, 1.0
      %v1463 = vlog2.pop %v1462
      %v1464 = vmul.f32 %v1463, 0.6931472
      %v1465 = vmul.f32 -0.5, %v1323
      %v1466 = vadd.f32 %v1465, 1.0
      %v1467 = vmul.f32 %v1466, %v1323
      %v1468 = vand.u32 2147483647, %v1323
      %vm1469 = vcmp.lt.f32.partialorder %v1468, 0.0004427343
      %v1470 = vsel %vm1469, %v1467, %v1464
      %v1471 = vadd.f32 %v1325, 1.0
      %v1472 = vlog2.pop %v1471
      %v1473 = vmul.f32 %v1472, 0.6931472
      %v1474 = vmul.f32 -0.5, %v1325
      %v1475 = vadd.f32 %v1474, 1.0
      %v1476 = vmul.f32 %v1475, %v1325
      %v1477 = vand.u32 2147483647, %v1325
      %vm1478 = vcmp.lt.f32.partialorder %v1477, 0.0004427343
      %v1479 = vsel %vm1478, %v1476, %v1473
      %v1480 = vadd.f32 %v1327, 1.0
      %v1481 = vlog2.pop %v1480
      %v1482 = vmul.f32 %v1481, 0.6931472
      %v1483 = vmul.f32 -0.5, %v1327
      %v1484 = vadd.f32 %v1483, 1.0
      %v1485 = vmul.f32 %v1484, %v1327
      %v1486 = vand.u32 2147483647, %v1327
      %vm1487 = vcmp.lt.f32.partialorder %v1486, 0.0004427343
      %v1488 = vsel %vm1487, %v1485, %v1482
      %v1489 = vadd.f32 %v1329, 1.0
      %v1490 = vlog2.pop %v1489
      %v1491 = vmul.f32 %v1490, 0.6931472
      %v1492 = vmul.f32 -0.5, %v1329
      %v1493 = vadd.f32 %v1492, 1.0
      %v1494 = vmul.f32 %v1493, %v1329
      %v1495 = vand.u32 2147483647, %v1329
      %vm1496 = vcmp.lt.f32.partialorder %v1495, 0.0004427343
      %v1497 = vsel %vm1496, %v1494, %v1491
      %v1498 = vadd.f32 %v1331, 1.0
      %v1499 = vlog2.pop %v1498
      %v1500 = vmul.f32 %v1499, 0.6931472
      %v1501 = vmul.f32 -0.5, %v1331
      %v1502 = vadd.f32 %v1501, 1.0
      %v1503 = vmul.f32 %v1502, %v1331
      %v1504 = vand.u32 2147483647, %v1331
      %vm1505 = vcmp.lt.f32.partialorder %v1504, 0.0004427343
      %v1506 = vsel %vm1505, %v1503, %v1500
      %v1507 = vadd.f32 %v1333, 1.0
      %v1508 = vlog2.pop %v1507
      %v1509 = vmul.f32 %v1508, 0.6931472
      %v1510 = vmul.f32 -0.5, %v1333
      %v1511 = vadd.f32 %v1510, 1.0
      %v1512 = vmul.f32 %v1511, %v1333
      %v1513 = vand.u32 2147483647, %v1333
      %vm1514 = vcmp.lt.f32.partialorder %v1513, 0.0004427343
      %v1515 = vsel %vm1514, %v1512, %v1509
      %v1516 = vadd.f32 %v1335, 1.0
      %v1517 = vlog2.pop %v1516
      %v1518 = vmul.f32 %v1517, 0.6931472
      %v1519 = vmul.f32 -0.5, %v1335
      %v1520 = vadd.f32 %v1519, 1.0
      %v1521 = vmul.f32 %v1520, %v1335
      %v1522 = vand.u32 2147483647, %v1335
      %vm1523 = vcmp.lt.f32.partialorder %v1522, 0.0004427343
      %v1524 = vsel %vm1523, %v1521, %v1518
      %v1525 = vadd.f32 %v1337, 1.0
      %v1526 = vlog2.pop %v1525
      %v1527 = vmul.f32 %v1526, 0.6931472
      %v1528 = vmul.f32 -0.5, %v1337
      %v1529 = vadd.f32 %v1528, 1.0
      %v1530 = vmul.f32 %v1529, %v1337
      %v1531 = vand.u32 2147483647, %v1337
      %vm1532 = vcmp.lt.f32.partialorder %v1531, 0.0004427343
      %v1533 = vsel %vm1532, %v1530, %v1527
      %v1534 = vadd.f32 %v1339, 1.0
      %v1535 = vlog2.pop %v1534
      %v1536 = vmul.f32 %v1535, 0.6931472
      %v1537 = vmul.f32 -0.5, %v1339
      %v1538 = vadd.f32 %v1537, 1.0
      %v1539 = vmul.f32 %v1538, %v1339
      %v1540 = vand.u32 2147483647, %v1339
      %vm1541 = vcmp.lt.f32.partialorder %v1540, 0.0004427343
      %v1542 = vsel %vm1541, %v1539, %v1536
      %v1543 = vadd.f32 %v1341, 1.0
      %v1544 = vlog2.pop %v1543
      %v1545 = vmul.f32 %v1544, 0.6931472
      %v1546 = vmul.f32 -0.5, %v1341
      %v1547 = vadd.f32 %v1546, 1.0
      %v1548 = vmul.f32 %v1547, %v1341
      %v1549 = vand.u32 2147483647, %v1341
      %vm1550 = vcmp.lt.f32.partialorder %v1549, 0.0004427343
      %v1551 = vsel %vm1550, %v1548, %v1545
      %v1552 = vadd.f32 %v1343, 1.0
      %v1553 = vlog2.pop %v1552
      %v1554 = vmul.f32 %v1553, 0.6931472
      %v1555 = vmul.f32 -0.5, %v1343
      %v1556 = vadd.f32 %v1555, 1.0
      %v1557 = vmul.f32 %v1556, %v1343
      %v1558 = vand.u32 2147483647, %v1343
      %vm1559 = vcmp.lt.f32.partialorder %v1558, 0.0004427343
      %v1560 = vsel %vm1559, %v1557, %v1554
      %v1561 = vadd.f32 %v1345, 1.0
      %v1562 = vlog2.pop %v1561
      %v1563 = vmul.f32 %v1562, 0.6931472
      %v1564 = vmul.f32 -0.5, %v1345
      %v1565 = vadd.f32 %v1564, 1.0
      %v1566 = vmul.f32 %v1565, %v1345
      %v1567 = vand.u32 2147483647, %v1345
      %vm1568 = vcmp.lt.f32.partialorder %v1567, 0.0004427343
      %v1569 = vsel %vm1568, %v1566, %v1563
      %v1570 = vadd.f32 %v1347, 1.0
      %v1571 = vlog2.pop %v1570
      %v1572 = vmul.f32 %v1571, 0.6931472
      %v1573 = vmul.f32 -0.5, %v1347
      %v1574 = vadd.f32 %v1573, 1.0
      %v1575 = vmul.f32 %v1574, %v1347
      %v1576 = vand.u32 2147483647, %v1347
      %vm1577 = vcmp.lt.f32.partialorder %v1576, 0.0004427343
      %v1578 = vsel %vm1577, %v1575, %v1572
      %v1579 = vadd.f32 %v1349, 1.0
      %v1580 = vlog2.pop %v1579
      %v1581 = vmul.f32 %v1580, 0.6931472
      %v1582 = vmul.f32 -0.5, %v1349
      %v1583 = vadd.f32 %v1582, 1.0
      %v1584 = vmul.f32 %v1583, %v1349
      %v1585 = vand.u32 2147483647, %v1349
      %vm1586 = vcmp.lt.f32.partialorder %v1585, 0.0004427343
      %v1587 = vsel %vm1586, %v1584, %v1581
      %v1588 = vadd.f32 %v1351, 1.0
      %v1589 = vlog2.pop %v1588
      %v1590 = vmul.f32 %v1589, 0.6931472
      %v1591 = vmul.f32 -0.5, %v1351
      %v1592 = vadd.f32 %v1591, 1.0
      %v1593 = vmul.f32 %v1592, %v1351
      %v1594 = vand.u32 2147483647, %v1351
      %vm1595 = vcmp.lt.f32.partialorder %v1594, 0.0004427343
      %v1596 = vsel %vm1595, %v1593, %v1590
      %v1597 = vadd.f32 %v1353, 1.0
      %v1598 = vlog2.pop %v1597
      %v1599 = vmul.f32 %v1598, 0.6931472
      %v1600 = vmul.f32 -0.5, %v1353
      %v1601 = vadd.f32 %v1600, 1.0
      %v1602 = vmul.f32 %v1601, %v1353
      %v1603 = vand.u32 2147483647, %v1353
      %vm1604 = vcmp.lt.f32.partialorder %v1603, 0.0004427343
      %v1605 = vsel %vm1604, %v1602, %v1599
      %v1606 = vadd.f32 %v1214, %v1362
      %v1607 = vadd.f32 %v1215, %v1371
      %v1608 = vadd.f32 %v1216, %v1380
      %v1609 = vadd.f32 %v1217, %v1389
      %v1610 = vadd.f32 %v1218, %v1398
      %v1611 = vadd.f32 %v1219, %v1407
      %v1612 = vadd.f32 %v1220, %v1416
      %v1613 = vadd.f32 %v1221, %v1425
      %v1614 = vadd.f32 %v1222, %v1434
      %v1615 = vadd.f32 %v1223, %v1443
      %v1616 = vadd.f32 %v1224, %v1452
      %v1617 = vadd.f32 %v1225, %v1461
      %v1618 = vadd.f32 %v1226, %v1470
      %v1619 = vadd.f32 %v1227, %v1479
      %v1620 = vadd.f32 %v1228, %v1488
      %v1621 = vadd.f32 %v1229, %v1497
      %v1622 = vadd.f32 %v1230, %v1506
      %v1623 = vadd.f32 %v1231, %v1515
      %v1624 = vadd.f32 %v1232, %v1524
      %v1625 = vadd.f32 %v1233, %v1533
      %v1626 = vadd.f32 %v1234, %v1542
      %v1627 = vadd.f32 %v1235, %v1551
      %v1628 = vadd.f32 %v1236, %v1560
      %v1629 = vadd.f32 %v1237, %v1569
      %v1630 = vadd.f32 %v1238, %v1578
      %v1631 = vadd.f32 %v1239, %v1587
      %v1632 = vadd.f32 %v1240, %v1596
      %v1633 = vadd.f32 %v1241, %v1605
      %v1634 = vsub.f32 %v1606, 0.6931472
      %v1635 = vsub.f32 %v1607, 0.6931472
      %v1636 = vsub.f32 %v1608, 0.6931472
      %v1637 = vsub.f32 %v1609, 0.6931472
      %v1638 = vsub.f32 %v1610, 0.6931472
      %v1639 = vsub.f32 %v1611, 0.6931472
      %v1640 = vsub.f32 %v1612, 0.6931472
      %v1641 = vsub.f32 %v1613, 0.6931472
      %v1642 = vsub.f32 %v1614, 0.6931472
      %v1643 = vsub.f32 %v1615, 0.6931472
      %v1644 = vsub.f32 %v1616, 0.6931472
      %v1645 = vsub.f32 %v1617, 0.6931472
      %v1646 = vsub.f32 %v1618, 0.6931472
      %v1647 = vsub.f32 %v1619, 0.6931472
      %v1648 = vsub.f32 %v1620, 0.6931472
      %v1649 = vsub.f32 %v1621, 0.6931472
      %v1650 = vsub.f32 %v1622, 0.6931472
      %v1651 = vsub.f32 %v1623, 0.6931472
      %v1652 = vsub.f32 %v1624, 0.6931472
      %v1653 = vsub.f32 %v1625, 0.6931472
      %v1654 = vsub.f32 %v1626, 0.6931472
      %v1655 = vsub.f32 %v1627, 0.6931472
      %v1656 = vsub.f32 %v1628, 0.6931472
      %v1657 = vsub.f32 %v1629, 0.6931472
      %v1658 = vsub.f32 %v1630, 0.6931472
      %v1659 = vsub.f32 %v1631, 0.6931472
      %v1660 = vsub.f32 %v1632, 0.6931472
      %v1661 = vsub.f32 %v1633, 0.6931472
      %v1662 = vpack.c.bf16 %v1636, %v1634
      %v1663 = vpack.c.bf16 %v1637, %v1635
      %v1664 = vpack.c.bf16 %v1640, %v1638
      %v1665 = vpack.c.bf16 %v1641, %v1639
      %v1666 = vpack.c.bf16 %v1644, %v1642
      %v1667 = vpack.c.bf16 %v1645, %v1643
      %v1668 = vpack.c.bf16 %v1648, %v1646
      %v1669 = vpack.c.bf16 %v1649, %v1647
      %v1670 = vpack.c.bf16 %v1652, %v1650
      %v1671 = vpack.c.bf16 %v1653, %v1651
      %v1672 = vpack.c.bf16 %v1656, %v1654
      %v1673 = vpack.c.bf16 %v1657, %v1655
      %v1674 = vpack.c.bf16 %v1660, %v1658
      %v1675 = vpack.c.bf16 %v1661, %v1659
      %v1676 = vld [vmem:[%s7] sm:$0xf]
      %v1677 = vld [vmem:[%s7 + $0x4] sm:$0xf]
      %v1678 = vld [vmem:[%s7 + $0x8] sm:$0xf]
      %v1679 = vld [vmem:[%s7 + $0xc] sm:$0xf]
      %v1680 = vld [vmem:[%s7 + $0x10] sm:$0xf]
      %v1681 = vld [vmem:[%s7 + $0x14] sm:$0xf]
      %v1682 = vld [vmem:[%s7 + $0x18] sm:$0xf]
      %v1683 = vld [vmem:[%s7 + $0x1c] sm:$0xf]
      %v1684 = vld [vmem:[%s7 + $0x20] sm:$0xf]
      %v1685 = vld [vmem:[%s7 + $0x24] sm:$0xf]
      %v1686 = vld [vmem:[%s7 + $0x28] sm:$0xf]
      %v1687 = vld [vmem:[%s7 + $0x2c] sm:$0xf]
      %v1688 = vld [vmem:[%s7 + $0x30] sm:$0xf]
      %v1689 = vld [vmem:[%s7 + $0x34] sm:$0xf]
      %v1690 = vld [vmem:[%s7 + $0x38] sm:$0xf]
      %v1691 = vld [vmem:[%s7 + $0x3c] sm:$0xf]
      %v1692 = vld [vmem:[%s7 + $0x40] sm:$0xf]
      %v1693 = vld [vmem:[%s7 + $0x44] sm:$0xf]
      %v1694 = vld [vmem:[%s7 + $0x48] sm:$0xf]
      %v1695 = vld [vmem:[%s7 + $0x4c] sm:$0xf]
      %v1696 = vld [vmem:[%s7 + $0x50] sm:$0xf]
      %v1697 = vld [vmem:[%s7 + $0x54] sm:$0xf]
      %v1698 = vld [vmem:[%s7 + $0x58] sm:$0xf]
      %v1699 = vld [vmem:[%s7 + $0x5c] sm:$0xf]
      %v1700 = vld [vmem:[%s8] sm:$0x1]
      %v1702 = vlaneseq
      %v1703 = vshrl.u32 %v1702, 7
      %v1704 = vsub.s32 0, %v1703
      %v1705 = vrot.slane %v1700, %v1704
      %v1731 = vunpack.c.l.b16 %v1676
      %v1732 = vunpack.c.l.b16 %v1677
      %v1733 = vunpack.c.l.b16 %v1678
      %v1734 = vunpack.c.l.b16 %v1679
      %v1735 = vunpack.c.l.b16 %v1680
      %v1736 = vunpack.c.l.b16 %v1681
      %v1737 = vunpack.c.l.b16 %v1682
      %v1738 = vunpack.c.l.b16 %v1683
      %v1739 = vunpack.c.l.b16 %v1684
      %v1740 = vunpack.c.l.b16 %v1685
      %v1741 = vunpack.c.l.b16 %v1686
      %v1742 = vunpack.c.l.b16 %v1687
      %v1743 = vunpack.c.l.b16 %v1688
      %v1744 = vunpack.c.l.b16 %v1689
      %v1745 = vunpack.c.l.b16 %v1690
      %v1746 = vunpack.c.l.b16 %v1691
      %v1747 = vunpack.c.l.b16 %v1692
      %v1748 = vunpack.c.l.b16 %v1693
      %v1749 = vunpack.c.l.b16 %v1694
      %v1750 = vunpack.c.l.b16 %v1695
      %v1751 = vunpack.c.l.b16 %v1696
      %v1752 = vunpack.c.l.b16 %v1697
      %v1753 = vunpack.c.l.b16 %v1698
      %v1754 = vunpack.c.l.b16 %v1699
      %v1755 = vpack.c.b16 %v1732, %v1731
      %v1756 = vpack.c.b16 %v1734, %v1733
      %v1757 = vpack.c.b16 %v1736, %v1735
      %v1758 = vpack.c.b16 %v1738, %v1737
      %v1759 = vpack.c.b16 %v1740, %v1739
      %v1760 = vpack.c.b16 %v1742, %v1741
      %v1761 = vpack.c.b16 %v1744, %v1743
      %v1762 = vpack.c.b16 %v1746, %v1745
      %v1763 = vpack.c.b16 %v1748, %v1747
      %v1764 = vpack.c.b16 %v1750, %v1749
      %v1765 = vpack.c.b16 %v1752, %v1751
      %v1766 = vpack.c.b16 %v1754, %v1753
      %vm1779 = vcmask 523264
      %v1781 = vsel %vm1779, %v1663, 0
      %v1784 = vsel %vm1779, %v1665, 0
      %v1787 = vsel %vm1779, %v1667, 0
      %v1790 = vsel %vm1779, %v1669, 0
      %v1793 = vsel %vm1779, %v1671, 0
      %v1796 = vsel %vm1779, %v1673, 0
      %v1799 = vsel %vm1779, %v1675, 0
      %1801 = vmatprep.subr.bf16.mxu0 0
      %1802 = vmatpush1.bf16.msra.mxu0 %v1762
      %1803 = vmatprep.subr.bf16.mxu0 0
      %1804 = vmatpush1.bf16.msra.mxu0 %v1761
      %1805 = vmatprep.subr.bf16.mxu0 0
      %1806 = vmatpush1.bf16.msra.mxu0 %v1760
      %1807 = vmatprep.subr.bf16.mxu0 0
      %1808 = vmatpush1.bf16.msra.mxu0 %v1759
      %1809 = vmatprep.subr.bf16.mxu0 0
      %1810 = vmatpush1.bf16.msra.mxu0 %v1758
      %1811 = vmatprep.subr.bf16.mxu0 0
      %1812 = vmatpush1.bf16.msra.mxu0 %v1757
      %1813 = vmatprep.subr.bf16.mxu0 0
      %1814 = vmatpush1.bf16.msra.mxu0 %v1756
      %1815 = vmatprep.subr.bf16.mxu0 0
      %1816 = vmatpush1.bf16.msra.mxu0 %v1755
      %1817 = vmatprep.subr.bf16.mxu0 0
      %1818 = vmatpush2.bf16.msra.mxu0 0
      %1819 = vmatprep.subr.bf16.mxu0 0
      %1820 = vmatpush2.bf16.msra.mxu0 0
      %1821 = vmatprep.subr.bf16.mxu0 0
      %1822 = vmatpush2.bf16.msra.mxu0 0
      %1823 = vmatprep.subr.bf16.mxu0 0
      %1824 = vmatpush2.bf16.msra.mxu0 0
      %1825 = vmatprep.subr.bf16.mxu0 0
      %1826 = vmatpush2.bf16.msra.mxu0 %v1766
      %1827 = vmatprep.subr.bf16.mxu0 0
      %1828 = vmatpush2.bf16.msra.mxu0 %v1765
      %1829 = vmatprep.subr.bf16.mxu0 0
      %1830 = vmatpush2.bf16.msra.mxu0 %v1764
      %1831 = vmatprep.subr.bf16.mxu0 0
      %1832 = vmatpush2.bf16.msra.mxu0 %v1763
      %1833 = vmatprep.mubr.bf16.mxu0 %v1781
      %1834 = vmatmul.mubr.bf16.gmra.mxu0 %v1662
      %v1835 = vpop.f32.mrf.mxu0
      %v1836 = vadd.f32 %v1705, %v1835
      %v1837 = vpop.f32.mrf.mxu0
      %v1838 = vpop.f32.mrf.mxu0
      %v1839 = vadd.f32 %v1705, %v1838
      %v1840 = vpop.f32.mrf.mxu0
      %1841 = vmatprep.mubr.bf16.mxu0 %v1784
      %1842 = vmatmul.mubr.bf16.gmra.mxu0 %v1664
      %v1843 = vpop.f32.mrf.mxu0
      %v1844 = vadd.f32 %v1705, %v1843
      %v1845 = vpop.f32.mrf.mxu0
      %v1846 = vpop.f32.mrf.mxu0
      %v1847 = vadd.f32 %v1705, %v1846
      %v1848 = vpop.f32.mrf.mxu0
      %1849 = vmatprep.mubr.bf16.mxu0 %v1787
      %1850 = vmatmul.mubr.bf16.gmra.mxu0 %v1666
      %v1851 = vpop.f32.mrf.mxu0
      %v1852 = vadd.f32 %v1705, %v1851
      %v1853 = vpop.f32.mrf.mxu0
      %v1854 = vpop.f32.mrf.mxu0
      %v1855 = vadd.f32 %v1705, %v1854
      %v1856 = vpop.f32.mrf.mxu0
      %1857 = vmatprep.mubr.bf16.mxu0 %v1790
      %1858 = vmatmul.mubr.bf16.gmra.mxu0 %v1668
      %v1859 = vpop.f32.mrf.mxu0
      %v1860 = vadd.f32 %v1705, %v1859
      %v1861 = vpop.f32.mrf.mxu0
      %v1862 = vpop.f32.mrf.mxu0
      %v1863 = vadd.f32 %v1705, %v1862
      %v1864 = vpop.f32.mrf.mxu0
      %1865 = vmatprep.mubr.bf16.mxu0 %v1793
      %1866 = vmatmul.mubr.bf16.gmra.mxu0 %v1670
      %v1867 = vpop.f32.mrf.mxu0
      %v1868 = vadd.f32 %v1705, %v1867
      %v1869 = vpop.f32.mrf.mxu0
      %v1870 = vpop.f32.mrf.mxu0
      %v1871 = vadd.f32 %v1705, %v1870
      %v1872 = vpop.f32.mrf.mxu0
      %1873 = vmatprep.mubr.bf16.mxu0 %v1796
      %1874 = vmatmul.mubr.bf16.gmra.mxu0 %v1672
      %v1875 = vpop.f32.mrf.mxu0
      %v1876 = vadd.f32 %v1705, %v1875
      %v1877 = vpop.f32.mrf.mxu0
      %v1878 = vpop.f32.mrf.mxu0
      %v1879 = vadd.f32 %v1705, %v1878
      %v1880 = vpop.f32.mrf.mxu0
      %1881 = vmatprep.mubr.bf16.mxu0 %v1799
      %1882 = vmatmul.mubr.bf16.gmra.mxu0 %v1674
      %v1883 = vpop.f32.mrf.mxu0
      %v1884 = vadd.f32 %v1705, %v1883
      %v1885 = vpop.f32.mrf.mxu0
      %v1886 = vpop.f32.mrf.mxu0
      %v1887 = vadd.f32 %v1705, %v1886
      %v1888 = vpop.f32.mrf.mxu0
      %1889 = vdwg.mxu0
      %vm1890 = vcmask 39936
      %1891 = vst.msk [vmem:[%s378] sm:$0xff] %vm1890, %v1836
      %1892 = vst.msk [vmem:[%s378 + $0x8] sm:$0xff] %vm1890, %v1839
      %1893 = vst.msk [vmem:[%s378 + $0x10] sm:$0xff] %vm1890, %v1844
      %1894 = vst.msk [vmem:[%s378 + $0x18] sm:$0xff] %vm1890, %v1847
      %1895 = vst.msk [vmem:[%s378 + $0x20] sm:$0xff] %vm1890, %v1852
      %1896 = vst.msk [vmem:[%s378 + $0x28] sm:$0xff] %vm1890, %v1855
      %1897 = vst.msk [vmem:[%s378 + $0x30] sm:$0xff] %vm1890, %v1860
      %1898 = vst.msk [vmem:[%s378 + $0x38] sm:$0xff] %vm1890, %v1863
      %1899 = vst.msk [vmem:[%s378 + $0x40] sm:$0xff] %vm1890, %v1868
      %1900 = vst.msk [vmem:[%s378 + $0x48] sm:$0xff] %vm1890, %v1871
      %1901 = vst.msk [vmem:[%s378 + $0x50] sm:$0xff] %vm1890, %v1876
      %1902 = vst.msk [vmem:[%s378 + $0x58] sm:$0xff] %vm1890, %v1879
      %1903 = vst.msk [vmem:[%s378 + $0x60] sm:$0xff] %vm1890, %v1884
      %1904 = vst.msk [vmem:[%s378 + $0x68] sm:$0xff] %vm1890, %v1887
      %s1905 = smul.u32 14, %s20
      %p1906 = scmp.lt.s32.totalorder %s1905, 27
      %s1907 = scalar_select %p1906, %s1905, 27
      %s1908 = smul.addr %s1907, 8
      %s1909 = scalar_lea.vmem %s9, %s1908
      // Predicated region
      $region57: #{tpu_custom_call.1} parent=55 // pred_check
        %p1910 = pneg %p242
      $region58: #{tpu_custom_call.1} parent=55 // pred_check_branch
        %1912 = sbr.rel (%p1910) target = $region60
      $region59: #{tpu_custom_call.1} parent=55 // pred_region
        %s1913 = smul.u32 14, %s20
      $region60: #{tpu_custom_call.1} parent=55 // pred_fallthru
        _
    $region56: #{tpu_custom_call.1} parent=5 // pred_fallthru
      _
    %p1914 = scmp.le.s32.totalorder 2, %s15
    // Predicated region
    $region61: #{tpu_custom_call.1} parent=5 // pred_check
      %p1915 = pneg %p1914
    $region62: #{tpu_custom_call.1} parent=5 // pred_check_branch
      %1917 = sbr.rel (%p1915) target = $region64
    $region63: #{tpu_custom_call.1} parent=5 // pred_region
      %s1918 = ssub.s32 %s15, 2
      // Predicated region
      $region65: #{tpu_custom_call.1} parent=63 // pred_check
        %p1919 = pneg %p248
      $region66: #{tpu_custom_call.1} parent=63 // pred_check_branch
        %1921 = sbr.rel (%p1919) target = $region68
      $region67: #{tpu_custom_call.1} parent=63 // pred_region
        %s1922 = smul.u32 14, %s21
        %p1923 = scmp.lt.s32.totalorder %s1922, 27
        %s1924 = scalar_select %p1923, %s1922, 27
        %s1925 = smul.addr %s1924, 8
        %s1926 = scalar_lea.vmem %s9, %s1925
      $region68: #{tpu_custom_call.1} parent=63 // pred_fallthru
        _
    $region64: #{tpu_custom_call.1} parent=5 // pred_fallthru
      _
  $region6: #{tpu_custom_call.1} parent=0 // loop_footer
    %s19 = sadd.s32 1, %s15
  $region7: #{tpu_custom_call.1} parent=0 // loop_footer_branch
    %14 = sbr.rel target = $region3
  $region8: #{tpu_custom_call.1} parent=0 // loop_exit
    _

</llo_original>
